<compile_context>
chip_gen: v7x
topology: tpu7x:2x2x1
jax: 0.10.0
libtpu: 0.0.40
codegen_flags: <defaults>
</compile_context>

<pallas_src>
from functools import partial

import jax
import jax.numpy as jnp
import numpy as np
from jax.experimental import pallas as pl
from jax.experimental.pallas import tpu as pltpu


# ----------------------------- Fused full-forward kernel -----------------------------
def _net_kernel(p_ref, wc_ref, bc_ref, w1_ref, b1_ref, w2_ref, b2_ref,
                w3_ref, b3_ref, out_ref, xflat_ref, *, B, C, S):
    # p_ref  : (63, B*S)  combined im2col patches (lanes = b*S + s), f32
    # wc_ref : (8, 63)    block-diagonal conv weights (rows 0..2 conv0, 3..5 conv1), f32
    # bc_ref : (8, 1)     stacked conv biases, f32
    # w1_ref : (C*S, D1s) fc1 weight column slice (torch channel-major rows), bf16
    # b1_ref : (1, D1s)   fc1 bias slice, f32
    # w2_ref : (D1s, D2)  fc2 weight row slice, bf16 ; b2_ref: (1, D2) f32
    # w3_ref : (D2, D3)   bf16                       ; b3_ref: (1, D3) f32
    # out_ref: (1, B, D3) this program's partial output (summed over the grid in XLA)
    # xflat_ref: (B, C*S) VMEM scratch holding the channel-major flattened conv output.

    # --- conv stage: single block-diagonal MXU matmul over (lanes = batch x spatial) ---
    slab = jnp.dot(wc_ref[...], p_ref[...],
                   preferred_element_type=jnp.float32) + bc_ref[...]      # (8, B*S)

    # --- channel-major flatten (== torch.cat(dim=1) + torch.flatten) into scratch -----
    for b in range(B):
        for c in range(C):
            xflat_ref[b:b + 1, c * S:(c + 1) * S] = slab[c:c + 1, b * S:(b + 1) * S]

    # --- fc1 (this program's D1 column slice), then partial fc2 / fc3 -----------------
    x = xflat_ref[...].astype(w1_ref.dtype)                               # (B, C*S) bf16
    h = jnp.dot(x, w1_ref[...], preferred_element_type=jnp.float32) + b1_ref[...]

    # Shared biases (b2, b3) are added by program 0 only; the grid-partial outputs are
    # summed in the wrapper, which is exact because fc2/fc3 are linear in h.
    gate = (pl.program_id(0) == 0).astype(jnp.float32)
    z = jnp.dot(h.astype(w2_ref.dtype), w2_ref[...],
                preferred_element_type=jnp.float32) + gate * b2_ref[...]
    o = jnp.dot(z.astype(w3_ref.dtype), w3_ref[...],
                preferred_element_type=jnp.float32) + gate * b3_ref[...]
    out_ref[...] = o[None]


# ----------------------------- JAX glue: padding + im2col + weight packing ------------
def _im2col(x, padding, Ho, Wo):
    """x: (B, Cin, H, W) -> (B, Cin*9, Ho*Wo), tap order ci*9 + kh*3 + kw."""
    B, Cin, _, _ = x.shape
    xp = jnp.pad(x, ((0, 0), (0, 0), (padding, padding), (padding, padding)))
    cols = []
    for ci in range(Cin):
        for kh in range(3):
            for kw in range(3):
                cols.append(xp[:, ci, kh:kh + Ho, kw:kw + Wo].reshape(B, Ho * Wo))
    return jnp.stack(cols, axis=1)


def net_forward(in0, in1, p):
    B, _, H, W = in0.shape
    Ho, Wo = H + 2, W + 2                       # 3x3 conv, stride 1, pad 2
    S = Ho * Wo
    c0, cin0 = p["w_f0"].shape[0], p["w_f0"].shape[1]
    c1, cin1 = p["w_f1"].shape[0], p["w_f1"].shape[1]
    C = c0 + c1
    k0, k1 = cin0 * 9, cin1 * 9
    D1 = p["w1"].shape[1]
    D2 = p["w2"].shape[1]
    D3 = p["w3"].shape[1]

    # --- im2col patches of both streams, folded into one lane-dense (63, B*S) matrix --
    p0 = _im2col(in0, 2, Ho, Wo)                                     # (B, k0, S)
    p1 = _im2col(in1, 2, Ho, Wo)                                     # (B, k1, S)
    patches = jnp.concatenate([p0, p1], axis=1)                      # (B, k0+k1, S)
    patches = jnp.transpose(patches, (1, 0, 2)).reshape(k0 + k1, B * S)

    # --- block-diagonal conv weight (padded to 8 sublanes) + stacked bias column ------
    CP = 8
    w_blk = jnp.zeros((CP, k0 + k1), jnp.float32)
    w_blk = w_blk.at[:c0, :k0].set(p["w_f0"].reshape(c0, k0))
    w_blk = w_blk.at[c0:C, k0:].set(p["w_f1"].reshape(c1, k1))
    b_blk = jnp.zeros((CP, 1), jnp.float32)
    b_blk = b_blk.at[:c0, 0].set(p["b_f0"]).at[c0:C, 0].set(p["b_f1"])

    # fc weights in bf16 (dominant HBM traffic halved); f32 accumulation in-kernel.
    # p["w1"] rows are already torch.flatten channel-major order (c*S + s).
    w1 = p["w1"].astype(jnp.bfloat16)
    w2 = p["w2"].astype(jnp.bfloat16)
    w3 = p["w3"].astype(jnp.bfloat16)
    b1 = p["b1"].reshape(1, D1)
    b2 = p["b2"].reshape(1, D2)
    b3 = p["b3"].reshape(1, D3)

    # Split the D1 hidden dim into column blocks: on v7x/megacore the "parallel" grid
    # axis shards weight DMA + FLOPs across both TensorCores; single-TC chips just run
    # two cheap sequential steps.
    NSPLIT = 2 if (D1 % 2 == 0 and (D1 // 2) % 128 == 0) else 1
    D1s = D1 // NSPLIT

    flops = (2 * CP * (k0 + k1) * B * S
             + 2 * B * (C * S * D1 + D1 * D2 + D2 * D3))
    bytes_accessed = (patches.size * 4 + w_blk.size * 4 + b_blk.size * 4
                      + w1.size * 2 + w2.size * 2 + w3.size * 2
                      + (D1 + D2 + D3) * 4 + NSPLIT * B * D3 * 4)

    kernel = partial(_net_kernel, B=B, C=C, S=S)

    parts = pl.pallas_call(
        kernel,
        out_shape=jax.ShapeDtypeStruct((NSPLIT, B, D3), jnp.float32),
        grid=(NSPLIT,),
        in_specs=[
            pl.BlockSpec((k0 + k1, B * S), lambda j: (0, 0)),    # patches
            pl.BlockSpec((CP, k0 + k1), lambda j: (0, 0)),       # block-diag conv weight
            pl.BlockSpec((CP, 1), lambda j: (0, 0)),             # conv bias column
            pl.BlockSpec((C * S, D1s), lambda j: (0, j)),        # w1 column slice
            pl.BlockSpec((1, D1s), lambda j: (0, j)),            # b1 slice
            pl.BlockSpec((D1s, D2), lambda j: (j, 0)),           # w2 row slice
            pl.BlockSpec((1, D2), lambda j: (0, 0)),             # b2
            pl.BlockSpec((D2, D3), lambda j: (0, 0)),            # w3
            pl.BlockSpec((1, D3), lambda j: (0, 0)),             # b3
        ],
        out_specs=pl.BlockSpec((1, B, D3), lambda j: (j, 0, 0)),
        scratch_shapes=[pltpu.VMEM((B, C * S), jnp.float32)],
        compiler_params=pltpu.CompilerParams(
            dimension_semantics=("parallel",),
            vmem_limit_bytes=32 * 1024 * 1024),
        cost_estimate=pl.CostEstimate(flops=flops, transcendentals=0,
                                      bytes_accessed=bytes_accessed),
    )(patches, w_blk, b_blk, w1, b1, w2, b2, w3, b3)

    return parts.sum(axis=0)                                       # (B, D3)


# ----------------------------- Pure-JAX reference for validation ----------------------
def ref_forward(in0, in1, p):
    def conv(x, w, b):
        y = jax.lax.conv_general_dilated(
            x, w, window_strides=(1, 1), padding=[(2, 2), (2, 2)],
            dimension_numbers=("NCHW", "OIHW", "NCHW"))
        return y + b[None, :, None, None]
    y0 = conv(in0, p["w_f0"], p["b_f0"])
    y1 = conv(in1, p["w_f1"], p["b_f1"])
    x = jnp.concatenate([y0, y1], axis=1).reshape(in0.shape[0], -1)
    x = x @ p["w1"] + p["b1"]
    x = x @ p["w2"] + p["b2"]
    return x @ p["w3"] + p["b3"]


if __name__ == "__main__":
    B, H, W = 2, 14, 14
    Ho, Wo = H + 2, W + 2            # 16 x 16
    F_in = 6 * Ho * Wo               # 1536 (scaled-down analogue of the original 399384)
    D1, D2, D3 = 1024, 256, 4

    key = jax.random.PRNGKey(0)
    ks = jax.random.split(key, 12)

    def uinit(k, shape, fan_in):
        bound = 1.0 / np.sqrt(fan_in)
        return jax.random.uniform(k, shape, jnp.float32, -bound, bound)

    params = {
        "w_f0": uinit(ks[0], (3, 3, 3, 3), 3 * 9),   # Conv2d(3 -> 3)
        "b_f0": uinit(ks[1], (3,), 3 * 9),
        "w_f1": uinit(ks[2], (3, 4, 3, 3), 4 * 9),   # Conv2d(4 -> 3)
        "b_f1": uinit(ks[3], (4 * 0 + 3,), 4 * 9),
        "w1": uinit(ks[4], (F_in, D1), F_in),        # fc1, stored (in, out)
        "b1": uinit(ks[5], (D1,), F_in),
        "w2": uinit(ks[6], (D1, D2), D1),            # fc2
        "b2": uinit(ks[7], (D2,), D1),
        "w3": uinit(ks[8], (D2, D3), D2),            # fc3
        "b3": uinit(ks[9], (D3,), D2),
    }

    in0 = jax.random.normal(ks[10], (B, 3, H, W), jnp.float32)
    in1 = jax.random.normal(ks[11], (B, 4, H, W), jnp.float32)

    out = jax.block_until_ready(jax.jit(net_forward)(in0, in1, params))
    ref = jax.block_until_ready(ref_forward(in0, in1, params))
    np.testing.assert_allclose(np.asarray(out), np.asarray(ref), rtol=2e-2, atol=2e-2)

    print("KERNEL_OK")
</pallas_src>

<mosaic_0001>
module attributes {stable_mosaic.version = 11 : i64} {
  func.func @_net_kernel(%arg0: i32, %arg1: memref<63x512xf32, #tpu.memory_space<vmem>>, %arg2: memref<8x63xf32, #tpu.memory_space<vmem>>, %arg3: memref<8x1xf32, #tpu.memory_space<vmem>>, %arg4: memref<1536x512xbf16, #tpu.memory_space<vmem>>, %arg5: memref<1x512xf32, #tpu.memory_space<vmem>>, %arg6: memref<512x256xbf16, #tpu.memory_space<vmem>>, %arg7: memref<1x256xf32, #tpu.memory_space<vmem>>, %arg8: memref<256x4xbf16, #tpu.memory_space<vmem>>, %arg9: memref<1x4xf32, #tpu.memory_space<vmem>>, %arg10: memref<1x2x4xf32, #tpu.memory_space<vmem>>, %arg11: memref<2x1536xf32, #tpu.memory_space<vmem>>) attributes {dimension_semantics = [#tpu.dimension_semantics<parallel>], iteration_bounds = array<i64: 2>, scalar_prefetch = 0 : i64, scratch_operands = 1 : i64, tpu.core_type = #tpu.core_type<tc>, window_params = [{pipeline_mode = #tpu.pipeline_mode<synchronous>, transform_indices = @transform_0, window_bounds = array<i64: 63, 512>}, {pipeline_mode = #tpu.pipeline_mode<synchronous>, transform_indices = @transform_1, window_bounds = array<i64: 8, 63>}, {pipeline_mode = #tpu.pipeline_mode<synchronous>, transform_indices = @transform_2, window_bounds = array<i64: 8, 1>}, {transform_indices = @transform_3, window_bounds = array<i64: 1536, 512>}, {transform_indices = @transform_4, window_bounds = array<i64: 1, 512>}, {transform_indices = @transform_5, window_bounds = array<i64: 512, 256>}, {pipeline_mode = #tpu.pipeline_mode<synchronous>, transform_indices = @transform_6, window_bounds = array<i64: 1, 256>}, {pipeline_mode = #tpu.pipeline_mode<synchronous>, transform_indices = @transform_7, window_bounds = array<i64: 256, 4>}, {pipeline_mode = #tpu.pipeline_mode<synchronous>, transform_indices = @transform_8, window_bounds = array<i64: 1, 4>}, {transform_indices = @transform_9, window_bounds = array<i64: 1, 2, 4>}]} {
    %c0 = arith.constant 0 : index
    %c0_0 = arith.constant 0 : index
    %0 = vector.load %arg2[%c0, %c0_0] : memref<8x63xf32, #tpu.memory_space<vmem>>, vector<8x63xf32>
    %c0_1 = arith.constant 0 : index
    %c0_2 = arith.constant 0 : index
    %1 = vector.load %arg1[%c0_1, %c0_2] : memref<63x512xf32, #tpu.memory_space<vmem>>, vector<63x512xf32>
    %cst = arith.constant dense<0.000000e+00> : vector<8x512xf32>
    %2 = tpu.matmul %0, %1, %cst {dimension_numbers = #tpu.dot_dimension_numbers<[1], [0], [0], [1], [0, 0, 1, 1], [], []>} : vector<8x63xf32>, vector<63x512xf32>, vector<8x512xf32> -> vector<8x512xf32>
    %c0_3 = arith.constant 0 : index
    %c0_4 = arith.constant 0 : index
    %3 = vector.load %arg3[%c0_3, %c0_4] : memref<8x1xf32, #tpu.memory_space<vmem>>, vector<8x1xf32>
    %4 = vector.broadcast %3 : vector<8x1xf32> to vector<8x512xf32>
    %5 = arith.addf %2, %4 : vector<8x512xf32>
    %6 = vector.extract_strided_slice %5 {offsets = [0, 0], sizes = [1, 256], strides = [1, 1]} : vector<8x512xf32> to vector<1x256xf32>
    %c0_5 = arith.constant 0 : index
    %c0_6 = arith.constant 0 : index
    %7 = vector.load %arg11[%c0_5, %c0_6] : memref<2x1536xf32, #tpu.memory_space<vmem>>, vector<1x256xf32>
    tpu.vector_store %arg11[%c0_5, %c0_6], %6 {strides = array<i32>} : memref<2x1536xf32, #tpu.memory_space<vmem>>, vector<1x256xf32>,
    %8 = vector.extract_strided_slice %5 {offsets = [1, 0], sizes = [1, 256], strides = [1, 1]} : vector<8x512xf32> to vector<1x256xf32>
    %c0_7 = arith.constant 0 : index
    %c256 = arith.constant 256 : index
    %9 = vector.load %arg11[%c0_7, %c256] : memref<2x1536xf32, #tpu.memory_space<vmem>>, vector<1x256xf32>
    tpu.vector_store %arg11[%c0_7, %c256], %8 {strides = array<i32>} : memref<2x1536xf32, #tpu.memory_space<vmem>>, vector<1x256xf32>,
    %10 = vector.extract_strided_slice %5 {offsets = [2, 0], sizes = [1, 256], strides = [1, 1]} : vector<8x512xf32> to vector<1x256xf32>
    %c0_8 = arith.constant 0 : index
    %c512 = arith.constant 512 : index
    %11 = vector.load %arg11[%c0_8, %c512] : memref<2x1536xf32, #tpu.memory_space<vmem>>, vector<1x256xf32>
    tpu.vector_store %arg11[%c0_8, %c512], %10 {strides = array<i32>} : memref<2x1536xf32, #tpu.memory_space<vmem>>, vector<1x256xf32>,
    %12 = vector.extract_strided_slice %5 {offsets = [3, 0], sizes = [1, 256], strides = [1, 1]} : vector<8x512xf32> to vector<1x256xf32>
    %c0_9 = arith.constant 0 : index
    %c768 = arith.constant 768 : index
    %13 = vector.load %arg11[%c0_9, %c768] : memref<2x1536xf32, #tpu.memory_space<vmem>>, vector<1x256xf32>
    tpu.vector_store %arg11[%c0_9, %c768], %12 {strides = array<i32>} : memref<2x1536xf32, #tpu.memory_space<vmem>>, vector<1x256xf32>,
    %14 = vector.extract_strided_slice %5 {offsets = [4, 0], sizes = [1, 256], strides = [1, 1]} : vector<8x512xf32> to vector<1x256xf32>
    %c0_10 = arith.constant 0 : index
    %c1024 = arith.constant 1024 : index
    %15 = vector.load %arg11[%c0_10, %c1024] : memref<2x1536xf32, #tpu.memory_space<vmem>>, vector<1x256xf32>
    tpu.vector_store %arg11[%c0_10, %c1024], %14 {strides = array<i32>} : memref<2x1536xf32, #tpu.memory_space<vmem>>, vector<1x256xf32>,
    %16 = vector.extract_strided_slice %5 {offsets = [5, 0], sizes = [1, 256], strides = [1, 1]} : vector<8x512xf32> to vector<1x256xf32>
    %c0_11 = arith.constant 0 : index
    %c1280 = arith.constant 1280 : index
    %17 = vector.load %arg11[%c0_11, %c1280] : memref<2x1536xf32, #tpu.memory_space<vmem>>, vector<1x256xf32>
    tpu.vector_store %arg11[%c0_11, %c1280], %16 {strides = array<i32>} : memref<2x1536xf32, #tpu.memory_space<vmem>>, vector<1x256xf32>,
    %18 = vector.extract_strided_slice %5 {offsets = [0, 256], sizes = [1, 256], strides = [1, 1]} : vector<8x512xf32> to vector<1x256xf32>
    %c1 = arith.constant 1 : index
    %c0_12 = arith.constant 0 : index
    %19 = vector.load %arg11[%c1, %c0_12] : memref<2x1536xf32, #tpu.memory_space<vmem>>, vector<1x256xf32>
    tpu.vector_store %arg11[%c1, %c0_12], %18 {strides = array<i32>} : memref<2x1536xf32, #tpu.memory_space<vmem>>, vector<1x256xf32>,
    %20 = vector.extract_strided_slice %5 {offsets = [1, 256], sizes = [1, 256], strides = [1, 1]} : vector<8x512xf32> to vector<1x256xf32>
    %c1_13 = arith.constant 1 : index
    %c256_14 = arith.constant 256 : index
    %21 = vector.load %arg11[%c1_13, %c256_14] : memref<2x1536xf32, #tpu.memory_space<vmem>>, vector<1x256xf32>
    tpu.vector_store %arg11[%c1_13, %c256_14], %20 {strides = array<i32>} : memref<2x1536xf32, #tpu.memory_space<vmem>>, vector<1x256xf32>,
    %22 = vector.extract_strided_slice %5 {offsets = [2, 256], sizes = [1, 256], strides = [1, 1]} : vector<8x512xf32> to vector<1x256xf32>
    %c1_15 = arith.constant 1 : index
    %c512_16 = arith.constant 512 : index
    %23 = vector.load %arg11[%c1_15, %c512_16] : memref<2x1536xf32, #tpu.memory_space<vmem>>, vector<1x256xf32>
    tpu.vector_store %arg11[%c1_15, %c512_16], %22 {strides = array<i32>} : memref<2x1536xf32, #tpu.memory_space<vmem>>, vector<1x256xf32>,
    %24 = vector.extract_strided_slice %5 {offsets = [3, 256], sizes = [1, 256], strides = [1, 1]} : vector<8x512xf32> to vector<1x256xf32>
    %c1_17 = arith.constant 1 : index
    %c768_18 = arith.constant 768 : index
    %25 = vector.load %arg11[%c1_17, %c768_18] : memref<2x1536xf32, #tpu.memory_space<vmem>>, vector<1x256xf32>
    tpu.vector_store %arg11[%c1_17, %c768_18], %24 {strides = array<i32>} : memref<2x1536xf32, #tpu.memory_space<vmem>>, vector<1x256xf32>,
    %26 = vector.extract_strided_slice %5 {offsets = [4, 256], sizes = [1, 256], strides = [1, 1]} : vector<8x512xf32> to vector<1x256xf32>
    %c1_19 = arith.constant 1 : index
    %c1024_20 = arith.constant 1024 : index
    %27 = vector.load %arg11[%c1_19, %c1024_20] : memref<2x1536xf32, #tpu.memory_space<vmem>>, vector<1x256xf32>
    tpu.vector_store %arg11[%c1_19, %c1024_20], %26 {strides = array<i32>} : memref<2x1536xf32, #tpu.memory_space<vmem>>, vector<1x256xf32>,
    %28 = vector.extract_strided_slice %5 {offsets = [5, 256], sizes = [1, 256], strides = [1, 1]} : vector<8x512xf32> to vector<1x256xf32>
    %c1_21 = arith.constant 1 : index
    %c1280_22 = arith.constant 1280 : index
    %29 = vector.load %arg11[%c1_21, %c1280_22] : memref<2x1536xf32, #tpu.memory_space<vmem>>, vector<1x256xf32>
    tpu.vector_store %arg11[%c1_21, %c1280_22], %28 {strides = array<i32>} : memref<2x1536xf32, #tpu.memory_space<vmem>>, vector<1x256xf32>,
    %c0_23 = arith.constant 0 : index
    %c0_24 = arith.constant 0 : index
    %30 = vector.load %arg11[%c0_23, %c0_24] : memref<2x1536xf32, #tpu.memory_space<vmem>>, vector<2x1536xf32>
    %31 = arith.truncf %30 : vector<2x1536xf32> to vector<2x1536xbf16>
    %c0_25 = arith.constant 0 : index
    %c0_26 = arith.constant 0 : index
    %32 = vector.load %arg4[%c0_25, %c0_26] : memref<1536x512xbf16, #tpu.memory_space<vmem>>, vector<1536x512xbf16>
    %cst_27 = arith.constant dense<0.000000e+00> : vector<2x512xf32>
    %33 = tpu.matmul %31, %32, %cst_27 {dimension_numbers = #tpu.dot_dimension_numbers<[1], [0], [0], [1], [0, 0, 1, 1], [], []>} : vector<2x1536xbf16>, vector<1536x512xbf16>, vector<2x512xf32> -> vector<2x512xf32>
    %c0_28 = arith.constant 0 : index
    %c0_29 = arith.constant 0 : index
    %34 = vector.load %arg5[%c0_28, %c0_29] : memref<1x512xf32, #tpu.memory_space<vmem>>, vector<1x512xf32>
    %35 = vector.broadcast %34 : vector<1x512xf32> to vector<2x512xf32>
    %36 = arith.addf %33, %35 : vector<2x512xf32>
    %c0_i32 = arith.constant 0 : i32
    %37 = arith.cmpi eq, %arg0, %c0_i32 : i32
    %38 = arith.extui %37 : i1 to i32
    %39 = arith.sitofp %38 : i32 to f32
    %40 = arith.truncf %36 : vector<2x512xf32> to vector<2x512xbf16>
    %c0_30 = arith.constant 0 : index
    %c0_31 = arith.constant 0 : index
    %41 = vector.load %arg6[%c0_30, %c0_31] : memref<512x256xbf16, #tpu.memory_space<vmem>>, vector<512x256xbf16>
    %cst_32 = arith.constant dense<0.000000e+00> : vector<2x256xf32>
    %42 = tpu.matmul %40, %41, %cst_32 {dimension_numbers = #tpu.dot_dimension_numbers<[1], [0], [0], [1], [0, 0, 1, 1], [], []>} : vector<2x512xbf16>, vector<512x256xbf16>, vector<2x256xf32> -> vector<2x256xf32>
    %c0_33 = arith.constant 0 : index
    %c0_34 = arith.constant 0 : index
    %43 = vector.load %arg7[%c0_33, %c0_34] : memref<1x256xf32, #tpu.memory_space<vmem>>, vector<1x256xf32>
    %44 = vector.broadcast %39 : f32 to vector<1x256xf32>
    %45 = arith.mulf %44, %43 : vector<1x256xf32>
    %46 = vector.broadcast %45 : vector<1x256xf32> to vector<2x256xf32>
    %47 = arith.addf %42, %46 : vector<2x256xf32>
    %48 = arith.truncf %47 : vector<2x256xf32> to vector<2x256xbf16>
    %c0_35 = arith.constant 0 : index
    %c0_36 = arith.constant 0 : index
    %49 = vector.load %arg8[%c0_35, %c0_36] : memref<256x4xbf16, #tpu.memory_space<vmem>>, vector<256x4xbf16>
    %cst_37 = arith.constant dense<0.000000e+00> : vector<2x4xf32>
    %50 = tpu.matmul %48, %49, %cst_37 {dimension_numbers = #tpu.dot_dimension_numbers<[1], [0], [0], [1], [0, 0, 1, 1], [], []>} : vector<2x256xbf16>, vector<256x4xbf16>, vector<2x4xf32> -> vector<2x4xf32>
    %c0_38 = arith.constant 0 : index
    %c0_39 = arith.constant 0 : index
    %51 = vector.load %arg9[%c0_38, %c0_39] : memref<1x4xf32, #tpu.memory_space<vmem>>, vector<1x4xf32>
    %52 = vector.broadcast %39 : f32 to vector<1x4xf32>
    %53 = arith.mulf %52, %51 : vector<1x4xf32>
    %54 = vector.broadcast %53 : vector<1x4xf32> to vector<2x4xf32>
    %55 = arith.addf %50, %54 : vector<2x4xf32>
    %56 = vector.shape_cast %55 : vector<2x4xf32> to vector<1x2x4xf32>
    %c0_40 = arith.constant 0 : index
    %c0_41 = arith.constant 0 : index
    %c0_42 = arith.constant 0 : index
    %57 = vector.load %arg10[%c0_40, %c0_41, %c0_42] : memref<1x2x4xf32, #tpu.memory_space<vmem>>, vector<1x2x4xf32>
    tpu.vector_store %arg10[%c0_40, %c0_41, %c0_42], %56 {strides = array<i32>} : memref<1x2x4xf32, #tpu.memory_space<vmem>>, vector<1x2x4xf32>,
    return
  }
  func.func @transform_0(%arg0: i32) -> (i32, i32) {
    %c0_i32 = arith.constant 0 : i32
    %c0_i32_0 = arith.constant 0 : i32
    %c0_i32_1 = arith.constant 0 : i32
    return %c0_i32, %c0_i32_0 : i32, i32
  }
  func.func @transform_1(%arg0: i32) -> (i32, i32) {
    %c0_i32 = arith.constant 0 : i32
    %c0_i32_0 = arith.constant 0 : i32
    %c0_i32_1 = arith.constant 0 : i32
    return %c0_i32, %c0_i32_0 : i32, i32
  }
  func.func @transform_2(%arg0: i32) -> (i32, i32) {
    %c0_i32 = arith.constant 0 : i32
    %c0_i32_0 = arith.constant 0 : i32
    %c0_i32_1 = arith.constant 0 : i32
    return %c0_i32, %c0_i32_0 : i32, i32
  }
  func.func @transform_3(%arg0: i32) -> (i32, i32) {
    %c0_i32 = arith.constant 0 : i32
    %c0_i32_0 = arith.constant 0 : i32
    return %c0_i32, %arg0 : i32, i32
  }
  func.func @transform_4(%arg0: i32) -> (i32, i32) {
    %c0_i32 = arith.constant 0 : i32
    %c0_i32_0 = arith.constant 0 : i32
    return %c0_i32, %arg0 : i32, i32
  }
  func.func @transform_5(%arg0: i32) -> (i32, i32) {
    %c0_i32 = arith.constant 0 : i32
    %c0_i32_0 = arith.constant 0 : i32
    return %arg0, %c0_i32 : i32, i32
  }
  func.func @transform_6(%arg0: i32) -> (i32, i32) {
    %c0_i32 = arith.constant 0 : i32
    %c0_i32_0 = arith.constant 0 : i32
    %c0_i32_1 = arith.constant 0 : i32
    return %c0_i32, %c0_i32_0 : i32, i32
  }
  func.func @transform_7(%arg0: i32) -> (i32, i32) {
    %c0_i32 = arith.constant 0 : i32
    %c0_i32_0 = arith.constant 0 : i32
    %c0_i32_1 = arith.constant 0 : i32
    return %c0_i32, %c0_i32_0 : i32, i32
  }
  func.func @transform_8(%arg0: i32) -> (i32, i32) {
    %c0_i32 = arith.constant 0 : i32
    %c0_i32_0 = arith.constant 0 : i32
    %c0_i32_1 = arith.constant 0 : i32
    return %c0_i32, %c0_i32_0 : i32, i32
  }
  func.func @transform_9(%arg0: i32) -> (i32, i32, i32) {
    %c0_i32 = arith.constant 0 : i32
    %c0_i32_0 = arith.constant 0 : i32
    %c0_i32_1 = arith.constant 0 : i32
    return %arg0, %c0_i32, %c0_i32_0 : i32, i32, i32
  }
}

</mosaic_0001>

<llo_original>
// kernel: squeeze.88
$region0: #{squeeze.88}
  %s0 = inlined_call_operand.vmem [shape: f32[2,1,16,16], index: 0, kind: input, shape index: {}]
  %s1 = inlined_call_operand.vmem [shape: f32[2,1,256], index: 1, kind: output, shape index: {}]
  $region1: #{squeeze.88} parent=0
    #allocation0 [shape = 'u8[8192]{0}', space=vmem, size = 0x2000, scoped, tag = 'scoped mem for output reshape']
    %v2 = vld [vmem:[%s0] ss:$8 sm:$0xf]
    %vm3 = vcmask 130048
    %4 = vst.msk [vmem:[#allocation0] ss:$8 sm:$0x3] %vm3, %v2
    %s5 = scalar_lea.vmem [#allocation0], 4294967281
    %6 = vst.msk [vmem:[%s5] ss:$8 sm:$0xc] %vm3, %v2
    %s7 = scalar_lea.vmem %s0, 7
    %s8 = smov 3
    %v9 = vld [vmem:[%s7] ss:$16 sm:%s8]
    %s10 = scalar_lea.vmem %s0, 4294967279
    %s11 = smov 12
    %v12 = vld [vmem:[%s10] ss:$16 sm:%s11]
    %vm13 = vcmask 1043458
    %v14 = vsel %vm13, %v12, %v9
    %15 = vrot.lane.b32.xlu0 %v14, 112
    %v16 = vpop.permute.xlu0 %15
    %vm17 = vcmask 1048448
    %18 = vst.msk [vmem:[#allocation0] sm:$0x3] %vm17, %v16
    %s19 = scalar_lea.vmem [#allocation0], 6
    %20 = vst.msk [vmem:[%s19] sm:$0xc] %vm17, %v16
    %s21 = scalar_lea.vmem %s0, 6
    %s22 = smov 3
    %v23 = vld [vmem:[%s21] ss:$16 sm:%s22]
    %s24 = scalar_lea.vmem %s0, 4294967278
    %s25 = smov 12
    %v26 = vld [vmem:[%s24] ss:$16 sm:%s25]
    %vm27 = vcmask 1043458
    %v28 = vsel %vm27, %v26, %v23
    %29 = vrot.lane.b32.xlu0 %v28, 96
    %v30 = vpop.permute.xlu0 %29
    %vm31 = vcmask 917248
    %32 = vst.msk [vmem:[#allocation0] sm:$0x3] %vm31, %v30
    %s33 = scalar_lea.vmem [#allocation0], 6
    %34 = vst.msk [vmem:[%s33] sm:$0xc] %vm31, %v30
    %s35 = scalar_lea.vmem %s0, 5
    %s36 = smov 3
    %v37 = vld [vmem:[%s35] ss:$16 sm:%s36]
    %s38 = scalar_lea.vmem %s0, 4294967277
    %s39 = smov 12
    %v40 = vld [vmem:[%s38] ss:$16 sm:%s39]
    %vm41 = vcmask 1043458
    %v42 = vsel %vm41, %v40, %v37
    %43 = vrot.lane.b32.xlu0 %v42, 80
    %v44 = vpop.permute.xlu0 %43
    %vm45 = vcmask 786048
    %46 = vst.msk [vmem:[#allocation0] sm:$0x3] %vm45, %v44
    %s47 = scalar_lea.vmem [#allocation0], 6
    %48 = vst.msk [vmem:[%s47] sm:$0xc] %vm45, %v44
    %s49 = scalar_lea.vmem %s0, 4
    %s50 = smov 3
    %v51 = vld [vmem:[%s49] ss:$16 sm:%s50]
    %s52 = scalar_lea.vmem %s0, 4294967276
    %s53 = smov 12
    %v54 = vld [vmem:[%s52] ss:$16 sm:%s53]
    %vm55 = vcmask 1043458
    %v56 = vsel %vm55, %v54, %v51
    %57 = vrot.lane.b32.xlu0 %v56, 64
    %v58 = vpop.permute.xlu0 %57
    %vm59 = vcmask 654848
    %60 = vst.msk [vmem:[#allocation0] sm:$0x3] %vm59, %v58
    %s61 = scalar_lea.vmem [#allocation0], 6
    %62 = vst.msk [vmem:[%s61] sm:$0xc] %vm59, %v58
    %s63 = scalar_lea.vmem %s0, 3
    %s64 = smov 3
    %v65 = vld [vmem:[%s63] ss:$16 sm:%s64]
    %s66 = scalar_lea.vmem %s0, 4294967275
    %s67 = smov 12
    %v68 = vld [vmem:[%s66] ss:$16 sm:%s67]
    %vm69 = vcmask 1043458
    %v70 = vsel %vm69, %v68, %v65
    %71 = vrot.lane.b32.xlu0 %v70, 48
    %v72 = vpop.permute.xlu0 %71
    %vm73 = vcmask 523648
    %74 = vst.msk [vmem:[#allocation0] sm:$0x3] %vm73, %v72
    %s75 = scalar_lea.vmem [#allocation0], 6
    %76 = vst.msk [vmem:[%s75] sm:$0xc] %vm73, %v72
    %s77 = scalar_lea.vmem %s0, 2
    %s78 = smov 3
    %v79 = vld [vmem:[%s77] ss:$16 sm:%s78]
    %s80 = scalar_lea.vmem %s0, 4294967274
    %s81 = smov 12
    %v82 = vld [vmem:[%s80] ss:$16 sm:%s81]
    %vm83 = vcmask 1043458
    %v84 = vsel %vm83, %v82, %v79
    %85 = vrot.lane.b32.xlu0 %v84, 32
    %v86 = vpop.permute.xlu0 %85
    %vm87 = vcmask 392448
    %88 = vst.msk [vmem:[#allocation0] sm:$0x3] %vm87, %v86
    %s89 = scalar_lea.vmem [#allocation0], 6
    %90 = vst.msk [vmem:[%s89] sm:$0xc] %vm87, %v86
    %s91 = scalar_lea.vmem %s0, 1
    %s92 = smov 3
    %v93 = vld [vmem:[%s91] ss:$16 sm:%s92]
    %s94 = scalar_lea.vmem %s0, 4294967273
    %s95 = smov 12
    %v96 = vld [vmem:[%s94] ss:$16 sm:%s95]
    %vm97 = vcmask 1043458
    %v98 = vsel %vm97, %v96, %v93
    %99 = vrot.lane.b32.xlu0 %v98, 16
    %v100 = vpop.permute.xlu0 %99
    %vm101 = vcmask 261248
    %102 = vst.msk [vmem:[#allocation0] sm:$0x3] %vm101, %v100
    %s103 = scalar_lea.vmem [#allocation0], 6
    %104 = vst.msk [vmem:[%s103] sm:$0xc] %vm101, %v100
    %s106 = sshllo.u32 0, 2
    %v108 = vld [vmem:[#allocation0] sm:%s106]
    %s109 = sshllo.u32 0, 2
    %110 = vst [vmem:[%s1] sm:%s109] %v108
    %s111 = scalar_lea.vmem [#allocation0], 8
    %v112 = vld [vmem:[%s111] sm:%s106]
    %s113 = sshllo.u32 0, 2
    %s114 = scalar_lea.vmem %s1, 2
    %115 = vst [vmem:[%s114] sm:%s113] %v112

// kernel: squeeze.125
$region0: #{squeeze.125}
  %s0 = inlined_call_operand.vmem [shape: f32[2,16,16], index: 0, kind: input, shape index: {}]
  %s1 = inlined_call_operand.vmem [shape: f32[2,1,256], index: 1, kind: output, shape index: {}]
  $region1: #{squeeze.125} parent=0
    #allocation0 [shape = 'u8[8192]{0}', space=vmem, size = 0x2000, scoped, tag = 'scoped mem for output reshape']
    %v2 = vld [vmem:[%s0] ss:$8 sm:$0xf]
    %vm3 = vcmask 130048
    %4 = vst.msk [vmem:[#allocation0] ss:$8 sm:$0x3] %vm3, %v2
    %s5 = scalar_lea.vmem [#allocation0], 4294967281
    %6 = vst.msk [vmem:[%s5] ss:$8 sm:$0xc] %vm3, %v2
    %s7 = scalar_lea.vmem %s0, 7
    %s8 = smov 3
    %v9 = vld [vmem:[%s7] ss:$16 sm:%s8]
    %s10 = scalar_lea.vmem %s0, 4294967279
    %s11 = smov 12
    %v12 = vld [vmem:[%s10] ss:$16 sm:%s11]
    %vm13 = vcmask 1043458
    %v14 = vsel %vm13, %v12, %v9
    %15 = vrot.lane.b32.xlu0 %v14, 112
    %v16 = vpop.permute.xlu0 %15
    %vm17 = vcmask 1048448
    %18 = vst.msk [vmem:[#allocation0] sm:$0x3] %vm17, %v16
    %s19 = scalar_lea.vmem [#allocation0], 6
    %20 = vst.msk [vmem:[%s19] sm:$0xc] %vm17, %v16
    %s21 = scalar_lea.vmem %s0, 6
    %s22 = smov 3
    %v23 = vld [vmem:[%s21] ss:$16 sm:%s22]
    %s24 = scalar_lea.vmem %s0, 4294967278
    %s25 = smov 12
    %v26 = vld [vmem:[%s24] ss:$16 sm:%s25]
    %vm27 = vcmask 1043458
    %v28 = vsel %vm27, %v26, %v23
    %29 = vrot.lane.b32.xlu0 %v28, 96
    %v30 = vpop.permute.xlu0 %29
    %vm31 = vcmask 917248
    %32 = vst.msk [vmem:[#allocation0] sm:$0x3] %vm31, %v30
    %s33 = scalar_lea.vmem [#allocation0], 6
    %34 = vst.msk [vmem:[%s33] sm:$0xc] %vm31, %v30
    %s35 = scalar_lea.vmem %s0, 5
    %s36 = smov 3
    %v37 = vld [vmem:[%s35] ss:$16 sm:%s36]
    %s38 = scalar_lea.vmem %s0, 4294967277
    %s39 = smov 12
    %v40 = vld [vmem:[%s38] ss:$16 sm:%s39]
    %vm41 = vcmask 1043458
    %v42 = vsel %vm41, %v40, %v37
    %43 = vrot.lane.b32.xlu0 %v42, 80
    %v44 = vpop.permute.xlu0 %43
    %vm45 = vcmask 786048
    %46 = vst.msk [vmem:[#allocation0] sm:$0x3] %vm45, %v44
    %s47 = scalar_lea.vmem [#allocation0], 6
    %48 = vst.msk [vmem:[%s47] sm:$0xc] %vm45, %v44
    %s49 = scalar_lea.vmem %s0, 4
    %s50 = smov 3
    %v51 = vld [vmem:[%s49] ss:$16 sm:%s50]
    %s52 = scalar_lea.vmem %s0, 4294967276
    %s53 = smov 12
    %v54 = vld [vmem:[%s52] ss:$16 sm:%s53]
    %vm55 = vcmask 1043458
    %v56 = vsel %vm55, %v54, %v51
    %57 = vrot.lane.b32.xlu0 %v56, 64
    %v58 = vpop.permute.xlu0 %57
    %vm59 = vcmask 654848
    %60 = vst.msk [vmem:[#allocation0] sm:$0x3] %vm59, %v58
    %s61 = scalar_lea.vmem [#allocation0], 6
    %62 = vst.msk [vmem:[%s61] sm:$0xc] %vm59, %v58
    %s63 = scalar_lea.vmem %s0, 3
    %s64 = smov 3
    %v65 = vld [vmem:[%s63] ss:$16 sm:%s64]
    %s66 = scalar_lea.vmem %s0, 4294967275
    %s67 = smov 12
    %v68 = vld [vmem:[%s66] ss:$16 sm:%s67]
    %vm69 = vcmask 1043458
    %v70 = vsel %vm69, %v68, %v65
    %71 = vrot.lane.b32.xlu0 %v70, 48
    %v72 = vpop.permute.xlu0 %71
    %vm73 = vcmask 523648
    %74 = vst.msk [vmem:[#allocation0] sm:$0x3] %vm73, %v72
    %s75 = scalar_lea.vmem [#allocation0], 6
    %76 = vst.msk [vmem:[%s75] sm:$0xc] %vm73, %v72
    %s77 = scalar_lea.vmem %s0, 2
    %s78 = smov 3
    %v79 = vld [vmem:[%s77] ss:$16 sm:%s78]
    %s80 = scalar_lea.vmem %s0, 4294967274
    %s81 = smov 12
    %v82 = vld [vmem:[%s80] ss:$16 sm:%s81]
    %vm83 = vcmask 1043458
    %v84 = vsel %vm83, %v82, %v79
    %85 = vrot.lane.b32.xlu0 %v84, 32
    %v86 = vpop.permute.xlu0 %85
    %vm87 = vcmask 392448
    %88 = vst.msk [vmem:[#allocation0] sm:$0x3] %vm87, %v86
    %s89 = scalar_lea.vmem [#allocation0], 6
    %90 = vst.msk [vmem:[%s89] sm:$0xc] %vm87, %v86
    %s91 = scalar_lea.vmem %s0, 1
    %s92 = smov 3
    %v93 = vld [vmem:[%s91] ss:$16 sm:%s92]
    %s94 = scalar_lea.vmem %s0, 4294967273
    %s95 = smov 12
    %v96 = vld [vmem:[%s94] ss:$16 sm:%s95]
    %vm97 = vcmask 1043458
    %v98 = vsel %vm97, %v96, %v93
    %99 = vrot.lane.b32.xlu0 %v98, 16
    %v100 = vpop.permute.xlu0 %99
    %vm101 = vcmask 261248
    %102 = vst.msk [vmem:[#allocation0] sm:$0x3] %vm101, %v100
    %s103 = scalar_lea.vmem [#allocation0], 6
    %104 = vst.msk [vmem:[%s103] sm:$0xc] %vm101, %v100
    %s106 = sshllo.u32 0, 2
    %v108 = vld [vmem:[#allocation0] sm:%s106]
    %s109 = sshllo.u32 0, 2
    %110 = vst [vmem:[%s1] sm:%s109] %v108
    %s111 = scalar_lea.vmem [#allocation0], 8
    %v112 = vld [vmem:[%s111] sm:%s106]
    %s113 = sshllo.u32 0, 2
    %s114 = scalar_lea.vmem %s1, 2
    %115 = vst [vmem:[%s114] sm:%s113] %v112

// kernel: net_forward.1
$region0: #{net_forward.1}
  #allocation0 [shape = 'u32[]', space=smem, size = 0x4, offset = 0x4, fixed_abs, tag = 'smem constant byte address 0x4 - core index']
  #allocation1 [shape = 'u32[144,128]{1,0:T(1,128)}', space=vmem, size = 0x12000, scoped, tag = 'internal scratch']
  #allocation2 [shape = 'f32[2,1536]{1,0:T(2,128)}', space=vmem, size = 0x3000, scoped, tag = 'scratch operand']
  %s0 = inlined_call_operand.vmem [shape: f32[63,512], index: 0, kind: input, shape index: {}]
  %s1 = inlined_call_operand.vmem [shape: f32[8,63], index: 1, kind: input, shape index: {}]
  %s2 = inlined_call_operand.vmem [shape: f32[8,1], index: 2, kind: input, shape index: {}]
  %s3 = inlined_call_operand.vmem [shape: bf16[1536,1024], index: 3, kind: input, shape index: {}]
  %s4 = inlined_call_operand.vmem [shape: f32[1,1024], index: 4, kind: input, shape index: {}]
  %s5 = inlined_call_operand.vmem [shape: bf16[1024,256], index: 5, kind: input, shape index: {}]
  %s6 = inlined_call_operand.vmem [shape: f32[1,256], index: 6, kind: input, shape index: {}]
  %s7 = inlined_call_operand.vmem [shape: bf16[256,4], index: 7, kind: input, shape index: {}]
  %s8 = inlined_call_operand.vmem [shape: f32[1,4], index: 8, kind: input, shape index: {}]
  %s9 = inlined_call_operand.vmem [shape: f32[2,2,4], index: 9, kind: output, shape index: {}]
  %s10 = sld [smem:[#allocation0]]
  $region92: #{net_forward.1} parent=0
    _
  %s12 = ssub.s32 1, %s10
  %s13 = scalar_select 0, %s12, %s10
  $region1: #{net_forward.1} parent=0
    #allocation3 [shape = 'u8[3145728]{0}', space=vmem, size = 0x300000, scoped, tag = 'input window, operand 3']
    loop: start=0, step=1, limit=4
    $region2: #{net_forward.1} parent=1 // loop_pre_header
      _
    $region3: #{net_forward.1} parent=1 // loop_header
      %s15 = sphi 0, %s19
      %p16 = scmp.ge.s32.totalorder %s15, 4
      %s23 = sphi 0, %s23
      %s25 = sphi 0, %s23
      %s26 = sphi 0, %s25
      %s40 = sphi 0, %s26
      %s44 = sphi 0, %s44
      %s46 = sphi 0, %s44
      %s47 = sphi 0, %s46
      %s61 = sphi 0, %s47
      %s65 = sphi 0, %s65
      %s67 = sphi 0, %s65
      %s68 = sphi 0, %s67
      %s82 = sphi 0, %s68
      %s88 = sphi 0, %s90
      %s91 = sphi 0, %s88
      %s92 = sphi 0, %s91
      %s108 = sphi 0, %s92
      %s114 = sphi 0, %s116
      %s117 = sphi 0, %s114
      %s118 = sphi 0, %s117
      %s134 = sphi 0, %s118
      %s140 = sphi 0, %s142
      %s143 = sphi 0, %s140
      %s144 = sphi 0, %s143
      %s160 = sphi 0, %s144
      %s164 = sphi 0, %s164
      %s166 = sphi 0, %s164
      %s167 = sphi 0, %s166
      %s181 = sphi 0, %s167
      %s185 = sphi 0, %s185
      %s187 = sphi 0, %s185
      %s188 = sphi 0, %s187
      %s202 = sphi 0, %s188
      %s206 = sphi 0, %s206
      %s208 = sphi 0, %s206
      %s209 = sphi 0, %s208
      %s223 = sphi 0, %s209
      %s229 = sphi 0, %s231
      %s232 = sphi 0, %s229
      %s233 = sphi 0, %s232
      %s249 = sphi 0, %s233
    $region4: #{net_forward.1} parent=1 // loop_header_branch
      %18 = sbr.rel (%p16) target = $region8
    $region5: #{net_forward.1} parent=1 // loop_body
      %s20 = ssub.s32 %s15, 1
      %s21 = ssub.s32 %s15, 2
      %s22 = sadd.s32 %s15, 1
      %s24 = sadd.s32 %s23, 1
      %p27 = scmp.eq.s32.totalorder %s15, 1
      %p28 = scmp.ne.s32.totalorder %s23, %s25
      %p29 = scmp.eq.s32.totalorder %s15, 0
      %p30 = por %p28, %p29
      %p31 = scmp.ne.s32.totalorder %s23, %s25
      %p32 = scmp.eq.s32.totalorder %s20, 1
      %p33 = por %p31, %p32
      %p34 = scmp.ne.s32.totalorder %s25, %s26
      %p35 = scmp.eq.s32.totalorder %s20, 0
      %p36 = por %p34, %p35
      %p37 = scmp.ne.s32.totalorder %s25, %s26
      %p38 = scmp.eq.s32.totalorder %s21, 1
      %p39 = por %p37, %p38
      %p41 = scmp.ne.s32.totalorder %s26, %s40
      %p42 = scmp.eq.s32.totalorder %s21, 0
      %p43 = por %p41, %p42
      %s45 = sadd.s32 %s44, 1
      %p48 = scmp.eq.s32.totalorder %s15, 1
      %p49 = scmp.ne.s32.totalorder %s44, %s46
      %p50 = scmp.eq.s32.totalorder %s15, 0
      %p51 = por %p49, %p50
      %p52 = scmp.ne.s32.totalorder %s44, %s46
      %p53 = scmp.eq.s32.totalorder %s20, 1
      %p54 = por %p52, %p53
      %p55 = scmp.ne.s32.totalorder %s46, %s47
      %p56 = scmp.eq.s32.totalorder %s20, 0
      %p57 = por %p55, %p56
      %p58 = scmp.ne.s32.totalorder %s46, %s47
      %p59 = scmp.eq.s32.totalorder %s21, 1
      %p60 = por %p58, %p59
      %p62 = scmp.ne.s32.totalorder %s47, %s61
      %p63 = scmp.eq.s32.totalorder %s21, 0
      %p64 = por %p62, %p63
      %s66 = sadd.s32 %s65, 1
      %p69 = scmp.eq.s32.totalorder %s15, 1
      %p70 = scmp.ne.s32.totalorder %s65, %s67
      %p71 = scmp.eq.s32.totalorder %s15, 0
      %p72 = por %p70, %p71
      %p73 = scmp.ne.s32.totalorder %s65, %s67
      %p74 = scmp.eq.s32.totalorder %s20, 1
      %p75 = por %p73, %p74
      %p76 = scmp.ne.s32.totalorder %s67, %s68
      %p77 = scmp.eq.s32.totalorder %s20, 0
      %p78 = por %p76, %p77
      %p79 = scmp.ne.s32.totalorder %s67, %s68
      %p80 = scmp.eq.s32.totalorder %s21, 1
      %p81 = por %p79, %p80
      %p83 = scmp.ne.s32.totalorder %s68, %s82
      %p84 = scmp.eq.s32.totalorder %s21, 0
      %p85 = por %p83, %p84
      %s86 = ssub.s32 %s15, %s22
      %p87 = scmp.eq.s32.totalorder %s86, 0
      %s89 = sadd.s32 %s88, 1
      %s90 = scalar_select %p87, %s88, %s89
      %p93 = pneg %p87
      %p94 = scmp.eq.s32.totalorder %s15, 1
      %p95 = por %p93, %p94
      %p96 = scmp.ne.s32.totalorder %s88, %s91
      %p97 = scmp.eq.s32.totalorder %s15, 0
      %p98 = por %p96, %p97
      %p99 = scmp.ne.s32.totalorder %s88, %s91
      %p100 = scmp.eq.s32.totalorder %s20, 1
      %p101 = por %p99, %p100
      %p102 = scmp.ne.s32.totalorder %s91, %s92
      %p103 = scmp.eq.s32.totalorder %s20, 0
      %p104 = por %p102, %p103
      %p105 = scmp.ne.s32.totalorder %s91, %s92
      %p106 = scmp.eq.s32.totalorder %s21, 1
      %p107 = por %p105, %p106
      %p109 = scmp.ne.s32.totalorder %s92, %s108
      %p110 = scmp.eq.s32.totalorder %s21, 0
      %p111 = por %p109, %p110
      %s112 = ssub.s32 %s15, %s22
      %p113 = scmp.eq.s32.totalorder %s112, 0
      %s115 = sadd.s32 %s114, 1
      %s116 = scalar_select %p113, %s114, %s115
      %p119 = pneg %p113
      %p120 = scmp.eq.s32.totalorder %s15, 1
      %p121 = por %p119, %p120
      %p122 = scmp.ne.s32.totalorder %s114, %s117
      %p123 = scmp.eq.s32.totalorder %s15, 0
      %p124 = por %p122, %p123
      %p125 = scmp.ne.s32.totalorder %s114, %s117
      %p126 = scmp.eq.s32.totalorder %s20, 1
      %p127 = por %p125, %p126
      %p128 = scmp.ne.s32.totalorder %s117, %s118
      %p129 = scmp.eq.s32.totalorder %s20, 0
      %p130 = por %p128, %p129
      %p131 = scmp.ne.s32.totalorder %s117, %s118
      %p132 = scmp.eq.s32.totalorder %s21, 1
      %p133 = por %p131, %p132
      %p135 = scmp.ne.s32.totalorder %s118, %s134
      %p136 = scmp.eq.s32.totalorder %s21, 0
      %p137 = por %p135, %p136
      %s138 = ssub.s32 %s15, %s22
      %p139 = scmp.eq.s32.totalorder %s138, 0
      %s141 = sadd.s32 %s140, 1
      %s142 = scalar_select %p139, %s140, %s141
      %p145 = pneg %p139
      %p146 = scmp.eq.s32.totalorder %s15, 1
      %p147 = por %p145, %p146
      %p148 = scmp.ne.s32.totalorder %s140, %s143
      %p149 = scmp.eq.s32.totalorder %s15, 0
      %p150 = por %p148, %p149
      %p151 = scmp.ne.s32.totalorder %s140, %s143
      %p152 = scmp.eq.s32.totalorder %s20, 1
      %p153 = por %p151, %p152
      %p154 = scmp.ne.s32.totalorder %s143, %s144
      %p155 = scmp.eq.s32.totalorder %s20, 0
      %p156 = por %p154, %p155
      %p157 = scmp.ne.s32.totalorder %s143, %s144
      %p158 = scmp.eq.s32.totalorder %s21, 1
      %p159 = por %p157, %p158
      %p161 = scmp.ne.s32.totalorder %s144, %s160
      %p162 = scmp.eq.s32.totalorder %s21, 0
      %p163 = por %p161, %p162
      %s165 = sadd.s32 %s164, 1
      %p168 = scmp.eq.s32.totalorder %s15, 1
      %p169 = scmp.ne.s32.totalorder %s164, %s166
      %p170 = scmp.eq.s32.totalorder %s15, 0
      %p171 = por %p169, %p170
      %p172 = scmp.ne.s32.totalorder %s164, %s166
      %p173 = scmp.eq.s32.totalorder %s20, 1
      %p174 = por %p172, %p173
      %p175 = scmp.ne.s32.totalorder %s166, %s167
      %p176 = scmp.eq.s32.totalorder %s20, 0
      %p177 = por %p175, %p176
      %p178 = scmp.ne.s32.totalorder %s166, %s167
      %p179 = scmp.eq.s32.totalorder %s21, 1
      %p180 = por %p178, %p179
      %p182 = scmp.ne.s32.totalorder %s167, %s181
      %p183 = scmp.eq.s32.totalorder %s21, 0
      %p184 = por %p182, %p183
      %s186 = sadd.s32 %s185, 1
      %p189 = scmp.eq.s32.totalorder %s15, 1
      %p190 = scmp.ne.s32.totalorder %s185, %s187
      %p191 = scmp.eq.s32.totalorder %s15, 0
      %p192 = por %p190, %p191
      %p193 = scmp.ne.s32.totalorder %s185, %s187
      %p194 = scmp.eq.s32.totalorder %s20, 1
      %p195 = por %p193, %p194
      %p196 = scmp.ne.s32.totalorder %s187, %s188
      %p197 = scmp.eq.s32.totalorder %s20, 0
      %p198 = por %p196, %p197
      %p199 = scmp.ne.s32.totalorder %s187, %s188
      %p200 = scmp.eq.s32.totalorder %s21, 1
      %p201 = por %p199, %p200
      %p203 = scmp.ne.s32.totalorder %s188, %s202
      %p204 = scmp.eq.s32.totalorder %s21, 0
      %p205 = por %p203, %p204
      %s207 = sadd.s32 %s206, 1
      %p210 = scmp.eq.s32.totalorder %s15, 1
      %p211 = scmp.ne.s32.totalorder %s206, %s208
      %p212 = scmp.eq.s32.totalorder %s15, 0
      %p213 = por %p211, %p212
      %p214 = scmp.ne.s32.totalorder %s206, %s208
      %p215 = scmp.eq.s32.totalorder %s20, 1
      %p216 = por %p214, %p215
      %p217 = scmp.ne.s32.totalorder %s208, %s209
      %p218 = scmp.eq.s32.totalorder %s20, 0
      %p219 = por %p217, %p218
      %p220 = scmp.ne.s32.totalorder %s208, %s209
      %p221 = scmp.eq.s32.totalorder %s21, 1
      %p222 = por %p220, %p221
      %p224 = scmp.ne.s32.totalorder %s209, %s223
      %p225 = scmp.eq.s32.totalorder %s21, 0
      %p226 = por %p224, %p225
      %s227 = ssub.s32 %s15, %s22
      %p228 = scmp.eq.s32.totalorder %s227, 0
      %s230 = sadd.s32 %s229, 1
      %s231 = scalar_select %p228, %s229, %s230
      %p234 = pneg %p228
      %p235 = scmp.eq.s32.totalorder %s15, 1
      %p236 = por %p234, %p235
      %p237 = scmp.ne.s32.totalorder %s229, %s232
      %p238 = scmp.eq.s32.totalorder %s15, 0
      %p239 = por %p237, %p238
      %p240 = scmp.ne.s32.totalorder %s229, %s232
      %p241 = scmp.eq.s32.totalorder %s20, 1
      %p242 = por %p240, %p241
      %p243 = scmp.ne.s32.totalorder %s232, %s233
      %p244 = scmp.eq.s32.totalorder %s20, 0
      %p245 = por %p243, %p244
      %p246 = scmp.ne.s32.totalorder %s232, %s233
      %p247 = scmp.eq.s32.totalorder %s21, 1
      %p248 = por %p246, %p247
      %p250 = scmp.ne.s32.totalorder %s233, %s249
      %p251 = scmp.eq.s32.totalorder %s21, 0
      %p252 = por %p250, %p251
      %p253 = scmp.le.s32.totalorder 1, %s15
      %p254 = scmp.lt.s32.totalorder %s15, 3
      %p255 = pnand %p253, %p254
      %p256 = pneg %p255
      // Predicated region
      $region9: #{net_forward.1} parent=5 // pred_check
        _
      $region10: #{net_forward.1} parent=5 // pred_check_branch
        %258 = sbr.rel (%p255) target = $region12
      $region11: #{net_forward.1} parent=5 // pred_region
        %s259 = ssub.s32 %s15, 1
        // Predicated region
        $region13: #{net_forward.1} parent=11 // pred_check
          %p260 = pneg %p36
        $region14: #{net_forward.1} parent=11 // pred_check_branch
          %262 = sbr.rel (%p260) target = $region16
        $region15: #{net_forward.1} parent=11 // pred_region
          _
        $region16: #{net_forward.1} parent=11 // pred_fallthru
          _
        // Predicated region
        $region17: #{net_forward.1} parent=11 // pred_check
          %p263 = pneg %p57
        $region18: #{net_forward.1} parent=11 // pred_check_branch
          %265 = sbr.rel (%p263) target = $region20
        $region19: #{net_forward.1} parent=11 // pred_region
          _
        $region20: #{net_forward.1} parent=11 // pred_fallthru
          _
        // Predicated region
        $region21: #{net_forward.1} parent=11 // pred_check
          %p266 = pneg %p78
        $region22: #{net_forward.1} parent=11 // pred_check_branch
          %268 = sbr.rel (%p266) target = $region24
        $region23: #{net_forward.1} parent=11 // pred_region
          _
        $region24: #{net_forward.1} parent=11 // pred_fallthru
          _
        // Predicated region
        $region25: #{net_forward.1} parent=11 // pred_check
          %p269 = pneg %p177
        $region26: #{net_forward.1} parent=11 // pred_check_branch
          %271 = sbr.rel (%p269) target = $region28
        $region27: #{net_forward.1} parent=11 // pred_region
          _
        $region28: #{net_forward.1} parent=11 // pred_fallthru
          _
        // Predicated region
        $region29: #{net_forward.1} parent=11 // pred_check
          %p272 = pneg %p198
        $region30: #{net_forward.1} parent=11 // pred_check_branch
          %274 = sbr.rel (%p272) target = $region32
        $region31: #{net_forward.1} parent=11 // pred_region
          _
        $region32: #{net_forward.1} parent=11 // pred_fallthru
          _
        // Predicated region
        $region33: #{net_forward.1} parent=11 // pred_check
          %p275 = pneg %p219
        $region34: #{net_forward.1} parent=11 // pred_check_branch
          %277 = sbr.rel (%p275) target = $region36
        $region35: #{net_forward.1} parent=11 // pred_region
          _
        $region36: #{net_forward.1} parent=11 // pred_fallthru
          _
      $region12: #{net_forward.1} parent=5 // pred_fallthru
        _
      %p278 = scmp.lt.s32.totalorder %s15, 2
      // Predicated region
      $region37: #{net_forward.1} parent=5 // pred_check
        %p279 = pneg %p278
      $region38: #{net_forward.1} parent=5 // pred_check_branch
        %281 = sbr.rel (%p279) target = $region40
      $region39: #{net_forward.1} parent=5 // pred_region
        // Predicated region
        $region41: #{net_forward.1} parent=39 // pred_check
          %p282 = pneg %p98
        $region42: #{net_forward.1} parent=39 // pred_check_branch
          %284 = sbr.rel (%p282) target = $region44
        $region43: #{net_forward.1} parent=39 // pred_region
          %s285 = sand.u32 %s88, 1
          %s286 = sand.u32 %s88, 1
          %s287 = smul.addr %s286, 3072
          %s288 = scalar_lea.vmem [#allocation3], %s287
          %s289 = smul.u32 4, %s15
          %s290 = smul.addr %s289, 4
          %s291 = scalar_lea.vmem %s3, %s290
          // Predicated region
          $region45: #{net_forward.1} parent=43 // pred_check
            _
          $region46: #{net_forward.1} parent=43 // pred_check_branch
            %293 = sbr.rel (0) target = $region48
          $region47: #{net_forward.1} parent=43 // pred_region
            // Predicated region
            $region49: #{net_forward.1} parent=47 // pred_check
              _
            $region50: #{net_forward.1} parent=47 // pred_check_branch
              %295 = sbr.rel (0) target = $region52
            $region51: #{net_forward.1} parent=47 // pred_region
              loop: start=0, step=1, limit=1
              $region53: #{net_forward.1} parent=51 // loop_pre_header
                _
              $region54: #{net_forward.1} parent=51 // loop_header
                %s297 = sphi 0, %s301
                %p298 = scmp.ge.s32.totalorder %s297, 1
                %s302 = sphi %s291, %s291
                %s303 = sphi %s288, %s288
              $region55: #{net_forward.1} parent=51 // loop_header_branch
                %300 = sbr.rel (%p298) target = $region59
              $region56: #{net_forward.1} parent=51 // loop_body
                %v304 = vld [vmem:[%s302] sm:$0xff]
                %305 = vst [vmem:[%s303] sm:$0xff] %v304
                %v306 = vld [vmem:[%s302 + $0x8] sm:$0xff]
                %307 = vst [vmem:[%s303 + $0x8] sm:$0xff] %v306
                %v308 = vld [vmem:[%s302 + $0x20] sm:$0xff]
                %309 = vst [vmem:[%s303 + $0x10] sm:$0xff] %v308
                %v310 = vld [vmem:[%s302 + $0x28] sm:$0xff]
                %311 = vst [vmem:[%s303 + $0x18] sm:$0xff] %v310
                %v312 = vld [vmem:[%s302 + $0x40] sm:$0xff]
                %313 = vst [vmem:[%s303 + $0x20] sm:$0xff] %v312
                %v314 = vld [vmem:[%s302 + $0x48] sm:$0xff]
                %315 = vst [vmem:[%s303 + $0x28] sm:$0xff] %v314
                %v316 = vld [vmem:[%s302 + $0x60] sm:$0xff]
                %317 = vst [vmem:[%s303 + $0x30] sm:$0xff] %v316
                %v318 = vld [vmem:[%s302 + $0x68] sm:$0xff]
                %319 = vst [vmem:[%s303 + $0x38] sm:$0xff] %v318
                %v320 = vld [vmem:[%s302 + $0x80] sm:$0xff]
                %321 = vst [vmem:[%s303 + $0x40] sm:$0xff] %v320
                %v322 = vld [vmem:[%s302 + $0x88] sm:$0xff]
                %323 = vst [vmem:[%s303 + $0x48] sm:$0xff] %v322
                %v324 = vld [vmem:[%s302 + $0xa0] sm:$0xff]
                %325 = vst [vmem:[%s303 + $0x50] sm:$0xff] %v324
                %v326 = vld [vmem:[%s302 + $0xa8] sm:$0xff]
                %327 = vst [vmem:[%s303 + $0x58] sm:$0xff] %v326
                %v328 = vld [vmem:[%s302 + $0xc0] sm:$0xff]
                %329 = vst [vmem:[%s303 + $0x60] sm:$0xff] %v328
                %v330 = vld [vmem:[%s302 + $0xc8] sm:$0xff]
                %331 = vst [vmem:[%s303 + $0x68] sm:$0xff] %v330
                %v332 = vld [vmem:[%s302 + $0xe0] sm:$0xff]
                %333 = vst [vmem:[%s303 + $0x70] sm:$0xff] %v332
                %v334 = vld [vmem:[%s302 + $0xe8] sm:$0xff]
                %335 = vst [vmem:[%s303 + $0x78] sm:$0xff] %v334
                %v336 = vld [vmem:[%s302 + $0x100] sm:$0xff]
                %337 = vst [vmem:[%s303 + $0x80] sm:$0xff] %v336
                %v338 = vld [vmem:[%s302 + $0x108] sm:$0xff]
                %339 = vst [vmem:[%s303 + $0x88] sm:$0xff] %v338
                %v340 = vld [vmem:[%s302 + $0x120] sm:$0xff]
                %341 = vst [vmem:[%s303 + $0x90] sm:$0xff] %v340
                %v342 = vld [vmem:[%s302 + $0x128] sm:$0xff]
                %343 = vst [vmem:[%s303 + $0x98] sm:$0xff] %v342
                %v344 = vld [vmem:[%s302 + $0x140] sm:$0xff]
                %345 = vst [vmem:[%s303 + $0xa0] sm:$0xff] %v344
                %v346 = vld [vmem:[%s302 + $0x148] sm:$0xff]
                %347 = vst [vmem:[%s303 + $0xa8] sm:$0xff] %v346
                %v348 = vld [vmem:[%s302 + $0x160] sm:$0xff]
                %349 = vst [vmem:[%s303 + $0xb0] sm:$0xff] %v348
                %v350 = vld [vmem:[%s302 + $0x168] sm:$0xff]
                %351 = vst [vmem:[%s303 + $0xb8] sm:$0xff] %v350
                %v352 = vld [vmem:[%s302 + $0x180] sm:$0xff]
                %353 = vst [vmem:[%s303 + $0xc0] sm:$0xff] %v352
                %v354 = vld [vmem:[%s302 + $0x188] sm:$0xff]
                %355 = vst [vmem:[%s303 + $0xc8] sm:$0xff] %v354
                %v356 = vld [vmem:[%s302 + $0x1a0] sm:$0xff]
                %357 = vst [vmem:[%s303 + $0xd0] sm:$0xff] %v356
                %v358 = vld [vmem:[%s302 + $0x1a8] sm:$0xff]
                %359 = vst [vmem:[%s303 + $0xd8] sm:$0xff] %v358
                %v360 = vld [vmem:[%s302 + $0x1c0] sm:$0xff]
                %361 = vst [vmem:[%s303 + $0xe0] sm:$0xff] %v360
                %v362 = vld [vmem:[%s302 + $0x1c8] sm:$0xff]
                %363 = vst [vmem:[%s303 + $0xe8] sm:$0xff] %v362
                %v364 = vld [vmem:[%s302 + $0x1e0] sm:$0xff]
                %365 = vst [vmem:[%s303 + $0xf0] sm:$0xff] %v364
                %v366 = vld [vmem:[%s302 + $0x1e8] sm:$0xff]
                %367 = vst [vmem:[%s303 + $0xf8] sm:$0xff] %v366
                %v368 = vld [vmem:[%s302 + $0x200] sm:$0xff]
                %369 = vst [vmem:[%s303 + $0x100] sm:$0xff] %v368
                %v370 = vld [vmem:[%s302 + $0x208] sm:$0xff]
                %371 = vst [vmem:[%s303 + $0x108] sm:$0xff] %v370
                %v372 = vld [vmem:[%s302 + $0x220] sm:$0xff]
                %373 = vst [vmem:[%s303 + $0x110] sm:$0xff] %v372
                %v374 = vld [vmem:[%s302 + $0x228] sm:$0xff]
                %375 = vst [vmem:[%s303 + $0x118] sm:$0xff] %v374
                %v376 = vld [vmem:[%s302 + $0x240] sm:$0xff]
                %377 = vst [vmem:[%s303 + $0x120] sm:$0xff] %v376
                %v378 = vld [vmem:[%s302 + $0x248] sm:$0xff]
                %379 = vst [vmem:[%s303 + $0x128] sm:$0xff] %v378
                %v380 = vld [vmem:[%s302 + $0x260] sm:$0xff]
                %381 = vst [vmem:[%s303 + $0x130] sm:$0xff] %v380
                %v382 = vld [vmem:[%s302 + $0x268] sm:$0xff]
                %383 = vst [vmem:[%s303 + $0x138] sm:$0xff] %v382
                %v384 = vld [vmem:[%s302 + $0x280] sm:$0xff]
                %385 = vst [vmem:[%s303 + $0x140] sm:$0xff] %v384
                %v386 = vld [vmem:[%s302 + $0x288] sm:$0xff]
                %387 = vst [vmem:[%s303 + $0x148] sm:$0xff] %v386
                %v388 = vld [vmem:[%s302 + $0x2a0] sm:$0xff]
                %389 = vst [vmem:[%s303 + $0x150] sm:$0xff] %v388
                %v390 = vld [vmem:[%s302 + $0x2a8] sm:$0xff]
                %391 = vst [vmem:[%s303 + $0x158] sm:$0xff] %v390
                %v392 = vld [vmem:[%s302 + $0x2c0] sm:$0xff]
                %393 = vst [vmem:[%s303 + $0x160] sm:$0xff] %v392
                %v394 = vld [vmem:[%s302 + $0x2c8] sm:$0xff]
                %395 = vst [vmem:[%s303 + $0x168] sm:$0xff] %v394
                %v396 = vld [vmem:[%s302 + $0x2e0] sm:$0xff]
                %397 = vst [vmem:[%s303 + $0x170] sm:$0xff] %v396
                %v398 = vld [vmem:[%s302 + $0x2e8] sm:$0xff]
                %399 = vst [vmem:[%s303 + $0x178] sm:$0xff] %v398
                %v400 = vld [vmem:[%s302 + $0x300] sm:$0xff]
                %401 = vst [vmem:[%s303 + $0x180] sm:$0xff] %v400
                %v402 = vld [vmem:[%s302 + $0x308] sm:$0xff]
                %403 = vst [vmem:[%s303 + $0x188] sm:$0xff] %v402
                %v404 = vld [vmem:[%s302 + $0x320] sm:$0xff]
                %405 = vst [vmem:[%s303 + $0x190] sm:$0xff] %v404
                %v406 = vld [vmem:[%s302 + $0x328] sm:$0xff]
                %407 = vst [vmem:[%s303 + $0x198] sm:$0xff] %v406
                %v408 = vld [vmem:[%s302 + $0x340] sm:$0xff]
                %409 = vst [vmem:[%s303 + $0x1a0] sm:$0xff] %v408
                %v410 = vld [vmem:[%s302 + $0x348] sm:$0xff]
                %411 = vst [vmem:[%s303 + $0x1a8] sm:$0xff] %v410
                %v412 = vld [vmem:[%s302 + $0x360] sm:$0xff]
                %413 = vst [vmem:[%s303 + $0x1b0] sm:$0xff] %v412
                %v414 = vld [vmem:[%s302 + $0x368] sm:$0xff]
                %415 = vst [vmem:[%s303 + $0x1b8] sm:$0xff] %v414
                %v416 = vld [vmem:[%s302 + $0x380] sm:$0xff]
                %417 = vst [vmem:[%s303 + $0x1c0] sm:$0xff] %v416
                %v418 = vld [vmem:[%s302 + $0x388] sm:$0xff]
                %419 = vst [vmem:[%s303 + $0x1c8] sm:$0xff] %v418
                %v420 = vld [vmem:[%s302 + $0x3a0] sm:$0xff]
                %421 = vst [vmem:[%s303 + $0x1d0] sm:$0xff] %v420
                %v422 = vld [vmem:[%s302 + $0x3a8] sm:$0xff]
                %423 = vst [vmem:[%s303 + $0x1d8] sm:$0xff] %v422
                %v424 = vld [vmem:[%s302 + $0x3c0] sm:$0xff]
                %425 = vst [vmem:[%s303 + $0x1e0] sm:$0xff] %v424
                %v426 = vld [vmem:[%s302 + $0x3c8] sm:$0xff]
                %427 = vst [vmem:[%s303 + $0x1e8] sm:$0xff] %v426
                %v428 = vld [vmem:[%s302 + $0x3e0] sm:$0xff]
                %429 = vst [vmem:[%s303 + $0x1f0] sm:$0xff] %v428
                %v430 = vld [vmem:[%s302 + $0x3e8] sm:$0xff]
                %431 = vst [vmem:[%s303 + $0x1f8] sm:$0xff] %v430
                %v432 = vld [vmem:[%s302 + $0x400] sm:$0xff]
                %433 = vst [vmem:[%s303 + $0x200] sm:$0xff] %v432
                %v434 = vld [vmem:[%s302 + $0x408] sm:$0xff]
                %435 = vst [vmem:[%s303 + $0x208] sm:$0xff] %v434
                %v436 = vld [vmem:[%s302 + $0x420] sm:$0xff]
                %437 = vst [vmem:[%s303 + $0x210] sm:$0xff] %v436
                %v438 = vld [vmem:[%s302 + $0x428] sm:$0xff]
                %439 = vst [vmem:[%s303 + $0x218] sm:$0xff] %v438
                %v440 = vld [vmem:[%s302 + $0x440] sm:$0xff]
                %441 = vst [vmem:[%s303 + $0x220] sm:$0xff] %v440
                %v442 = vld [vmem:[%s302 + $0x448] sm:$0xff]
                %443 = vst [vmem:[%s303 + $0x228] sm:$0xff] %v442
                %v444 = vld [vmem:[%s302 + $0x460] sm:$0xff]
                %445 = vst [vmem:[%s303 + $0x230] sm:$0xff] %v444
                %v446 = vld [vmem:[%s302 + $0x468] sm:$0xff]
                %447 = vst [vmem:[%s303 + $0x238] sm:$0xff] %v446
                %v448 = vld [vmem:[%s302 + $0x480] sm:$0xff]
                %449 = vst [vmem:[%s303 + $0x240] sm:$0xff] %v448
                %v450 = vld [vmem:[%s302 + $0x488] sm:$0xff]
                %451 = vst [vmem:[%s303 + $0x248] sm:$0xff] %v450
                %v452 = vld [vmem:[%s302 + $0x4a0] sm:$0xff]
                %453 = vst [vmem:[%s303 + $0x250] sm:$0xff] %v452
                %v454 = vld [vmem:[%s302 + $0x4a8] sm:$0xff]
                %455 = vst [vmem:[%s303 + $0x258] sm:$0xff] %v454
                %v456 = vld [vmem:[%s302 + $0x4c0] sm:$0xff]
                %457 = vst [vmem:[%s303 + $0x260] sm:$0xff] %v456
                %v458 = vld [vmem:[%s302 + $0x4c8] sm:$0xff]
                %459 = vst [vmem:[%s303 + $0x268] sm:$0xff] %v458
                %v460 = vld [vmem:[%s302 + $0x4e0] sm:$0xff]
                %461 = vst [vmem:[%s303 + $0x270] sm:$0xff] %v460
                %v462 = vld [vmem:[%s302 + $0x4e8] sm:$0xff]
                %463 = vst [vmem:[%s303 + $0x278] sm:$0xff] %v462
                %v464 = vld [vmem:[%s302 + $0x500] sm:$0xff]
                %465 = vst [vmem:[%s303 + $0x280] sm:$0xff] %v464
                %v466 = vld [vmem:[%s302 + $0x508] sm:$0xff]
                %467 = vst [vmem:[%s303 + $0x288] sm:$0xff] %v466
                %v468 = vld [vmem:[%s302 + $0x520] sm:$0xff]
                %469 = vst [vmem:[%s303 + $0x290] sm:$0xff] %v468
                %v470 = vld [vmem:[%s302 + $0x528] sm:$0xff]
                %471 = vst [vmem:[%s303 + $0x298] sm:$0xff] %v470
                %v472 = vld [vmem:[%s302 + $0x540] sm:$0xff]
                %473 = vst [vmem:[%s303 + $0x2a0] sm:$0xff] %v472
                %v474 = vld [vmem:[%s302 + $0x548] sm:$0xff]
                %475 = vst [vmem:[%s303 + $0x2a8] sm:$0xff] %v474
                %v476 = vld [vmem:[%s302 + $0x560] sm:$0xff]
                %477 = vst [vmem:[%s303 + $0x2b0] sm:$0xff] %v476
                %v478 = vld [vmem:[%s302 + $0x568] sm:$0xff]
                %479 = vst [vmem:[%s303 + $0x2b8] sm:$0xff] %v478
                %v480 = vld [vmem:[%s302 + $0x580] sm:$0xff]
                %481 = vst [vmem:[%s303 + $0x2c0] sm:$0xff] %v480
                %v482 = vld [vmem:[%s302 + $0x588] sm:$0xff]
                %483 = vst [vmem:[%s303 + $0x2c8] sm:$0xff] %v482
                %v484 = vld [vmem:[%s302 + $0x5a0] sm:$0xff]
                %485 = vst [vmem:[%s303 + $0x2d0] sm:$0xff] %v484
                %v486 = vld [vmem:[%s302 + $0x5a8] sm:$0xff]
                %487 = vst [vmem:[%s303 + $0x2d8] sm:$0xff] %v486
                %v488 = vld [vmem:[%s302 + $0x5c0] sm:$0xff]
                %489 = vst [vmem:[%s303 + $0x2e0] sm:$0xff] %v488
                %v490 = vld [vmem:[%s302 + $0x5c8] sm:$0xff]
                %491 = vst [vmem:[%s303 + $0x2e8] sm:$0xff] %v490
                %v492 = vld [vmem:[%s302 + $0x5e0] sm:$0xff]
                %493 = vst [vmem:[%s303 + $0x2f0] sm:$0xff] %v492
                %v494 = vld [vmem:[%s302 + $0x5e8] sm:$0xff]
                %495 = vst [vmem:[%s303 + $0x2f8] sm:$0xff] %v494
                %v496 = vld [vmem:[%s302 + $0x600] sm:$0xff]
                %497 = vst [vmem:[%s303 + $0x300] sm:$0xff] %v496
                %v498 = vld [vmem:[%s302 + $0x608] sm:$0xff]
                %499 = vst [vmem:[%s303 + $0x308] sm:$0xff] %v498
                %v500 = vld [vmem:[%s302 + $0x620] sm:$0xff]
                %501 = vst [vmem:[%s303 + $0x310] sm:$0xff] %v500
                %v502 = vld [vmem:[%s302 + $0x628] sm:$0xff]
                %503 = vst [vmem:[%s303 + $0x318] sm:$0xff] %v502
                %v504 = vld [vmem:[%s302 + $0x640] sm:$0xff]
                %505 = vst [vmem:[%s303 + $0x320] sm:$0xff] %v504
                %v506 = vld [vmem:[%s302 + $0x648] sm:$0xff]
                %507 = vst [vmem:[%s303 + $0x328] sm:$0xff] %v506
                %v508 = vld [vmem:[%s302 + $0x660] sm:$0xff]
                %509 = vst [vmem:[%s303 + $0x330] sm:$0xff] %v508
                %v510 = vld [vmem:[%s302 + $0x668] sm:$0xff]
                %511 = vst [vmem:[%s303 + $0x338] sm:$0xff] %v510
                %v512 = vld [vmem:[%s302 + $0x680] sm:$0xff]
                %513 = vst [vmem:[%s303 + $0x340] sm:$0xff] %v512
                %v514 = vld [vmem:[%s302 + $0x688] sm:$0xff]
                %515 = vst [vmem:[%s303 + $0x348] sm:$0xff] %v514
                %v516 = vld [vmem:[%s302 + $0x6a0] sm:$0xff]
                %517 = vst [vmem:[%s303 + $0x350] sm:$0xff] %v516
                %v518 = vld [vmem:[%s302 + $0x6a8] sm:$0xff]
                %519 = vst [vmem:[%s303 + $0x358] sm:$0xff] %v518
                %v520 = vld [vmem:[%s302 + $0x6c0] sm:$0xff]
                %521 = vst [vmem:[%s303 + $0x360] sm:$0xff] %v520
                %v522 = vld [vmem:[%s302 + $0x6c8] sm:$0xff]
                %523 = vst [vmem:[%s303 + $0x368] sm:$0xff] %v522
                %v524 = vld [vmem:[%s302 + $0x6e0] sm:$0xff]
                %525 = vst [vmem:[%s303 + $0x370] sm:$0xff] %v524
                %v526 = vld [vmem:[%s302 + $0x6e8] sm:$0xff]
                %527 = vst [vmem:[%s303 + $0x378] sm:$0xff] %v526
                %v528 = vld [vmem:[%s302 + $0x700] sm:$0xff]
                %529 = vst [vmem:[%s303 + $0x380] sm:$0xff] %v528
                %v530 = vld [vmem:[%s302 + $0x708] sm:$0xff]
                %531 = vst [vmem:[%s303 + $0x388] sm:$0xff] %v530
                %v532 = vld [vmem:[%s302 + $0x720] sm:$0xff]
                %533 = vst [vmem:[%s303 + $0x390] sm:$0xff] %v532
                %v534 = vld [vmem:[%s302 + $0x728] sm:$0xff]
                %535 = vst [vmem:[%s303 + $0x398] sm:$0xff] %v534
                %v536 = vld [vmem:[%s302 + $0x740] sm:$0xff]
                %537 = vst [vmem:[%s303 + $0x3a0] sm:$0xff] %v536
                %v538 = vld [vmem:[%s302 + $0x748] sm:$0xff]
                %539 = vst [vmem:[%s303 + $0x3a8] sm:$0xff] %v538
                %v540 = vld [vmem:[%s302 + $0x760] sm:$0xff]
                %541 = vst [vmem:[%s303 + $0x3b0] sm:$0xff] %v540
                %v542 = vld [vmem:[%s302 + $0x768] sm:$0xff]
                %543 = vst [vmem:[%s303 + $0x3b8] sm:$0xff] %v542
                %v544 = vld [vmem:[%s302 + $0x780] sm:$0xff]
                %545 = vst [vmem:[%s303 + $0x3c0] sm:$0xff] %v544
                %v546 = vld [vmem:[%s302 + $0x788] sm:$0xff]
                %547 = vst [vmem:[%s303 + $0x3c8] sm:$0xff] %v546
                %v548 = vld [vmem:[%s302 + $0x7a0] sm:$0xff]
                %549 = vst [vmem:[%s303 + $0x3d0] sm:$0xff] %v548
                %v550 = vld [vmem:[%s302 + $0x7a8] sm:$0xff]
                %551 = vst [vmem:[%s303 + $0x3d8] sm:$0xff] %v550
                %v552 = vld [vmem:[%s302 + $0x7c0] sm:$0xff]
                %553 = vst [vmem:[%s303 + $0x3e0] sm:$0xff] %v552
                %v554 = vld [vmem:[%s302 + $0x7c8] sm:$0xff]
                %555 = vst [vmem:[%s303 + $0x3e8] sm:$0xff] %v554
                %v556 = vld [vmem:[%s302 + $0x7e0] sm:$0xff]
                %557 = vst [vmem:[%s303 + $0x3f0] sm:$0xff] %v556
                %v558 = vld [vmem:[%s302 + $0x7e8] sm:$0xff]
                %559 = vst [vmem:[%s303 + $0x3f8] sm:$0xff] %v558
                %v560 = vld [vmem:[%s302 + $0x800] sm:$0xff]
                %561 = vst [vmem:[%s303 + $0x400] sm:$0xff] %v560
                %v562 = vld [vmem:[%s302 + $0x808] sm:$0xff]
                %563 = vst [vmem:[%s303 + $0x408] sm:$0xff] %v562
                %v564 = vld [vmem:[%s302 + $0x820] sm:$0xff]
                %565 = vst [vmem:[%s303 + $0x410] sm:$0xff] %v564
                %v566 = vld [vmem:[%s302 + $0x828] sm:$0xff]
                %567 = vst [vmem:[%s303 + $0x418] sm:$0xff] %v566
                %v568 = vld [vmem:[%s302 + $0x840] sm:$0xff]
                %569 = vst [vmem:[%s303 + $0x420] sm:$0xff] %v568
                %v570 = vld [vmem:[%s302 + $0x848] sm:$0xff]
                %571 = vst [vmem:[%s303 + $0x428] sm:$0xff] %v570
                %v572 = vld [vmem:[%s302 + $0x860] sm:$0xff]
                %573 = vst [vmem:[%s303 + $0x430] sm:$0xff] %v572
                %v574 = vld [vmem:[%s302 + $0x868] sm:$0xff]
                %575 = vst [vmem:[%s303 + $0x438] sm:$0xff] %v574
                %v576 = vld [vmem:[%s302 + $0x880] sm:$0xff]
                %577 = vst [vmem:[%s303 + $0x440] sm:$0xff] %v576
                %v578 = vld [vmem:[%s302 + $0x888] sm:$0xff]
                %579 = vst [vmem:[%s303 + $0x448] sm:$0xff] %v578
                %v580 = vld [vmem:[%s302 + $0x8a0] sm:$0xff]
                %581 = vst [vmem:[%s303 + $0x450] sm:$0xff] %v580
                %v582 = vld [vmem:[%s302 + $0x8a8] sm:$0xff]
                %583 = vst [vmem:[%s303 + $0x458] sm:$0xff] %v582
                %v584 = vld [vmem:[%s302 + $0x8c0] sm:$0xff]
                %585 = vst [vmem:[%s303 + $0x460] sm:$0xff] %v584
                %v586 = vld [vmem:[%s302 + $0x8c8] sm:$0xff]
                %587 = vst [vmem:[%s303 + $0x468] sm:$0xff] %v586
                %v588 = vld [vmem:[%s302 + $0x8e0] sm:$0xff]
                %589 = vst [vmem:[%s303 + $0x470] sm:$0xff] %v588
                %v590 = vld [vmem:[%s302 + $0x8e8] sm:$0xff]
                %591 = vst [vmem:[%s303 + $0x478] sm:$0xff] %v590
                %v592 = vld [vmem:[%s302 + $0x900] sm:$0xff]
                %593 = vst [vmem:[%s303 + $0x480] sm:$0xff] %v592
                %v594 = vld [vmem:[%s302 + $0x908] sm:$0xff]
                %595 = vst [vmem:[%s303 + $0x488] sm:$0xff] %v594
                %v596 = vld [vmem:[%s302 + $0x920] sm:$0xff]
                %597 = vst [vmem:[%s303 + $0x490] sm:$0xff] %v596
                %v598 = vld [vmem:[%s302 + $0x928] sm:$0xff]
                %599 = vst [vmem:[%s303 + $0x498] sm:$0xff] %v598
                %v600 = vld [vmem:[%s302 + $0x940] sm:$0xff]
                %601 = vst [vmem:[%s303 + $0x4a0] sm:$0xff] %v600
                %v602 = vld [vmem:[%s302 + $0x948] sm:$0xff]
                %603 = vst [vmem:[%s303 + $0x4a8] sm:$0xff] %v602
                %v604 = vld [vmem:[%s302 + $0x960] sm:$0xff]
                %605 = vst [vmem:[%s303 + $0x4b0] sm:$0xff] %v604
                %v606 = vld [vmem:[%s302 + $0x968] sm:$0xff]
                %607 = vst [vmem:[%s303 + $0x4b8] sm:$0xff] %v606
                %v608 = vld [vmem:[%s302 + $0x980] sm:$0xff]
                %609 = vst [vmem:[%s303 + $0x4c0] sm:$0xff] %v608
                %v610 = vld [vmem:[%s302 + $0x988] sm:$0xff]
                %611 = vst [vmem:[%s303 + $0x4c8] sm:$0xff] %v610
                %v612 = vld [vmem:[%s302 + $0x9a0] sm:$0xff]
                %613 = vst [vmem:[%s303 + $0x4d0] sm:$0xff] %v612
                %v614 = vld [vmem:[%s302 + $0x9a8] sm:$0xff]
                %615 = vst [vmem:[%s303 + $0x4d8] sm:$0xff] %v614
                %v616 = vld [vmem:[%s302 + $0x9c0] sm:$0xff]
                %617 = vst [vmem:[%s303 + $0x4e0] sm:$0xff] %v616
                %v618 = vld [vmem:[%s302 + $0x9c8] sm:$0xff]
                %619 = vst [vmem:[%s303 + $0x4e8] sm:$0xff] %v618
                %v620 = vld [vmem:[%s302 + $0x9e0] sm:$0xff]
                %621 = vst [vmem:[%s303 + $0x4f0] sm:$0xff] %v620
                %v622 = vld [vmem:[%s302 + $0x9e8] sm:$0xff]
                %623 = vst [vmem:[%s303 + $0x4f8] sm:$0xff] %v622
                %v624 = vld [vmem:[%s302 + $0xa00] sm:$0xff]
                %625 = vst [vmem:[%s303 + $0x500] sm:$0xff] %v624
                %v626 = vld [vmem:[%s302 + $0xa08] sm:$0xff]
                %627 = vst [vmem:[%s303 + $0x508] sm:$0xff] %v626
                %v628 = vld [vmem:[%s302 + $0xa20] sm:$0xff]
                %629 = vst [vmem:[%s303 + $0x510] sm:$0xff] %v628
                %v630 = vld [vmem:[%s302 + $0xa28] sm:$0xff]
                %631 = vst [vmem:[%s303 + $0x518] sm:$0xff] %v630
                %v632 = vld [vmem:[%s302 + $0xa40] sm:$0xff]
                %633 = vst [vmem:[%s303 + $0x520] sm:$0xff] %v632
                %v634 = vld [vmem:[%s302 + $0xa48] sm:$0xff]
                %635 = vst [vmem:[%s303 + $0x528] sm:$0xff] %v634
                %v636 = vld [vmem:[%s302 + $0xa60] sm:$0xff]
                %637 = vst [vmem:[%s303 + $0x530] sm:$0xff] %v636
                %v638 = vld [vmem:[%s302 + $0xa68] sm:$0xff]
                %639 = vst [vmem:[%s303 + $0x538] sm:$0xff] %v638
                %v640 = vld [vmem:[%s302 + $0xa80] sm:$0xff]
                %641 = vst [vmem:[%s303 + $0x540] sm:$0xff] %v640
                %v642 = vld [vmem:[%s302 + $0xa88] sm:$0xff]
                %643 = vst [vmem:[%s303 + $0x548] sm:$0xff] %v642
                %v644 = vld [vmem:[%s302 + $0xaa0] sm:$0xff]
                %645 = vst [vmem:[%s303 + $0x550] sm:$0xff] %v644
                %v646 = vld [vmem:[%s302 + $0xaa8] sm:$0xff]
                %647 = vst [vmem:[%s303 + $0x558] sm:$0xff] %v646
                %v648 = vld [vmem:[%s302 + $0xac0] sm:$0xff]
                %649 = vst [vmem:[%s303 + $0x560] sm:$0xff] %v648
                %v650 = vld [vmem:[%s302 + $0xac8] sm:$0xff]
                %651 = vst [vmem:[%s303 + $0x568] sm:$0xff] %v650
                %v652 = vld [vmem:[%s302 + $0xae0] sm:$0xff]
                %653 = vst [vmem:[%s303 + $0x570] sm:$0xff] %v652
                %v654 = vld [vmem:[%s302 + $0xae8] sm:$0xff]
                %655 = vst [vmem:[%s303 + $0x578] sm:$0xff] %v654
                %v656 = vld [vmem:[%s302 + $0xb00] sm:$0xff]
                %657 = vst [vmem:[%s303 + $0x580] sm:$0xff] %v656
                %v658 = vld [vmem:[%s302 + $0xb08] sm:$0xff]
                %659 = vst [vmem:[%s303 + $0x588] sm:$0xff] %v658
                %v660 = vld [vmem:[%s302 + $0xb20] sm:$0xff]
                %661 = vst [vmem:[%s303 + $0x590] sm:$0xff] %v660
                %v662 = vld [vmem:[%s302 + $0xb28] sm:$0xff]
                %663 = vst [vmem:[%s303 + $0x598] sm:$0xff] %v662
                %v664 = vld [vmem:[%s302 + $0xb40] sm:$0xff]
                %665 = vst [vmem:[%s303 + $0x5a0] sm:$0xff] %v664
                %v666 = vld [vmem:[%s302 + $0xb48] sm:$0xff]
                %667 = vst [vmem:[%s303 + $0x5a8] sm:$0xff] %v666
                %v668 = vld [vmem:[%s302 + $0xb60] sm:$0xff]
                %669 = vst [vmem:[%s303 + $0x5b0] sm:$0xff] %v668
                %v670 = vld [vmem:[%s302 + $0xb68] sm:$0xff]
                %671 = vst [vmem:[%s303 + $0x5b8] sm:$0xff] %v670
                %v672 = vld [vmem:[%s302 + $0xb80] sm:$0xff]
                %673 = vst [vmem:[%s303 + $0x5c0] sm:$0xff] %v672
                %v674 = vld [vmem:[%s302 + $0xb88] sm:$0xff]
                %675 = vst [vmem:[%s303 + $0x5c8] sm:$0xff] %v674
                %v676 = vld [vmem:[%s302 + $0xba0] sm:$0xff]
                %677 = vst [vmem:[%s303 + $0x5d0] sm:$0xff] %v676
                %v678 = vld [vmem:[%s302 + $0xba8] sm:$0xff]
                %679 = vst [vmem:[%s303 + $0x5d8] sm:$0xff] %v678
                %v680 = vld [vmem:[%s302 + $0xbc0] sm:$0xff]
                %681 = vst [vmem:[%s303 + $0x5e0] sm:$0xff] %v680
                %v682 = vld [vmem:[%s302 + $0xbc8] sm:$0xff]
                %683 = vst [vmem:[%s303 + $0x5e8] sm:$0xff] %v682
                %v684 = vld [vmem:[%s302 + $0xbe0] sm:$0xff]
                %685 = vst [vmem:[%s303 + $0x5f0] sm:$0xff] %v684
                %v686 = vld [vmem:[%s302 + $0xbe8] sm:$0xff]
                %687 = vst [vmem:[%s303 + $0x5f8] sm:$0xff] %v686
                %v688 = vld [vmem:[%s302 + $0xc00] sm:$0xff]
                %689 = vst [vmem:[%s303 + $0x600] sm:$0xff] %v688
                %v690 = vld [vmem:[%s302 + $0xc08] sm:$0xff]
                %691 = vst [vmem:[%s303 + $0x608] sm:$0xff] %v690
                %v692 = vld [vmem:[%s302 + $0xc20] sm:$0xff]
                %693 = vst [vmem:[%s303 + $0x610] sm:$0xff] %v692
                %v694 = vld [vmem:[%s302 + $0xc28] sm:$0xff]
                %695 = vst [vmem:[%s303 + $0x618] sm:$0xff] %v694
                %v696 = vld [vmem:[%s302 + $0xc40] sm:$0xff]
                %697 = vst [vmem:[%s303 + $0x620] sm:$0xff] %v696
                %v698 = vld [vmem:[%s302 + $0xc48] sm:$0xff]
                %699 = vst [vmem:[%s303 + $0x628] sm:$0xff] %v698
                %v700 = vld [vmem:[%s302 + $0xc60] sm:$0xff]
                %701 = vst [vmem:[%s303 + $0x630] sm:$0xff] %v700
                %v702 = vld [vmem:[%s302 + $0xc68] sm:$0xff]
                %703 = vst [vmem:[%s303 + $0x638] sm:$0xff] %v702
                %v704 = vld [vmem:[%s302 + $0xc80] sm:$0xff]
                %705 = vst [vmem:[%s303 + $0x640] sm:$0xff] %v704
                %v706 = vld [vmem:[%s302 + $0xc88] sm:$0xff]
                %707 = vst [vmem:[%s303 + $0x648] sm:$0xff] %v706
                %v708 = vld [vmem:[%s302 + $0xca0] sm:$0xff]
                %709 = vst [vmem:[%s303 + $0x650] sm:$0xff] %v708
                %v710 = vld [vmem:[%s302 + $0xca8] sm:$0xff]
                %711 = vst [vmem:[%s303 + $0x658] sm:$0xff] %v710
                %v712 = vld [vmem:[%s302 + $0xcc0] sm:$0xff]
                %713 = vst [vmem:[%s303 + $0x660] sm:$0xff] %v712
                %v714 = vld [vmem:[%s302 + $0xcc8] sm:$0xff]
                %715 = vst [vmem:[%s303 + $0x668] sm:$0xff] %v714
                %v716 = vld [vmem:[%s302 + $0xce0] sm:$0xff]
                %717 = vst [vmem:[%s303 + $0x670] sm:$0xff] %v716
                %v718 = vld [vmem:[%s302 + $0xce8] sm:$0xff]
                %719 = vst [vmem:[%s303 + $0x678] sm:$0xff] %v718
                %v720 = vld [vmem:[%s302 + $0xd00] sm:$0xff]
                %721 = vst [vmem:[%s303 + $0x680] sm:$0xff] %v720
                %v722 = vld [vmem:[%s302 + $0xd08] sm:$0xff]
                %723 = vst [vmem:[%s303 + $0x688] sm:$0xff] %v722
                %v724 = vld [vmem:[%s302 + $0xd20] sm:$0xff]
                %725 = vst [vmem:[%s303 + $0x690] sm:$0xff] %v724
                %v726 = vld [vmem:[%s302 + $0xd28] sm:$0xff]
                %727 = vst [vmem:[%s303 + $0x698] sm:$0xff] %v726
                %v728 = vld [vmem:[%s302 + $0xd40] sm:$0xff]
                %729 = vst [vmem:[%s303 + $0x6a0] sm:$0xff] %v728
                %v730 = vld [vmem:[%s302 + $0xd48] sm:$0xff]
                %731 = vst [vmem:[%s303 + $0x6a8] sm:$0xff] %v730
                %v732 = vld [vmem:[%s302 + $0xd60] sm:$0xff]
                %733 = vst [vmem:[%s303 + $0x6b0] sm:$0xff] %v732
                %v734 = vld [vmem:[%s302 + $0xd68] sm:$0xff]
                %735 = vst [vmem:[%s303 + $0x6b8] sm:$0xff] %v734
                %v736 = vld [vmem:[%s302 + $0xd80] sm:$0xff]
                %737 = vst [vmem:[%s303 + $0x6c0] sm:$0xff] %v736
                %v738 = vld [vmem:[%s302 + $0xd88] sm:$0xff]
                %739 = vst [vmem:[%s303 + $0x6c8] sm:$0xff] %v738
                %v740 = vld [vmem:[%s302 + $0xda0] sm:$0xff]
                %741 = vst [vmem:[%s303 + $0x6d0] sm:$0xff] %v740
                %v742 = vld [vmem:[%s302 + $0xda8] sm:$0xff]
                %743 = vst [vmem:[%s303 + $0x6d8] sm:$0xff] %v742
                %v744 = vld [vmem:[%s302 + $0xdc0] sm:$0xff]
                %745 = vst [vmem:[%s303 + $0x6e0] sm:$0xff] %v744
                %v746 = vld [vmem:[%s302 + $0xdc8] sm:$0xff]
                %747 = vst [vmem:[%s303 + $0x6e8] sm:$0xff] %v746
                %v748 = vld [vmem:[%s302 + $0xde0] sm:$0xff]
                %749 = vst [vmem:[%s303 + $0x6f0] sm:$0xff] %v748
                %v750 = vld [vmem:[%s302 + $0xde8] sm:$0xff]
                %751 = vst [vmem:[%s303 + $0x6f8] sm:$0xff] %v750
                %v752 = vld [vmem:[%s302 + $0xe00] sm:$0xff]
                %753 = vst [vmem:[%s303 + $0x700] sm:$0xff] %v752
                %v754 = vld [vmem:[%s302 + $0xe08] sm:$0xff]
                %755 = vst [vmem:[%s303 + $0x708] sm:$0xff] %v754
                %v756 = vld [vmem:[%s302 + $0xe20] sm:$0xff]
                %757 = vst [vmem:[%s303 + $0x710] sm:$0xff] %v756
                %v758 = vld [vmem:[%s302 + $0xe28] sm:$0xff]
                %759 = vst [vmem:[%s303 + $0x718] sm:$0xff] %v758
                %v760 = vld [vmem:[%s302 + $0xe40] sm:$0xff]
                %761 = vst [vmem:[%s303 + $0x720] sm:$0xff] %v760
                %v762 = vld [vmem:[%s302 + $0xe48] sm:$0xff]
                %763 = vst [vmem:[%s303 + $0x728] sm:$0xff] %v762
                %v764 = vld [vmem:[%s302 + $0xe60] sm:$0xff]
                %765 = vst [vmem:[%s303 + $0x730] sm:$0xff] %v764
                %v766 = vld [vmem:[%s302 + $0xe68] sm:$0xff]
                %767 = vst [vmem:[%s303 + $0x738] sm:$0xff] %v766
                %v768 = vld [vmem:[%s302 + $0xe80] sm:$0xff]
                %769 = vst [vmem:[%s303 + $0x740] sm:$0xff] %v768
                %v770 = vld [vmem:[%s302 + $0xe88] sm:$0xff]
                %771 = vst [vmem:[%s303 + $0x748] sm:$0xff] %v770
                %v772 = vld [vmem:[%s302 + $0xea0] sm:$0xff]
                %773 = vst [vmem:[%s303 + $0x750] sm:$0xff] %v772
                %v774 = vld [vmem:[%s302 + $0xea8] sm:$0xff]
                %775 = vst [vmem:[%s303 + $0x758] sm:$0xff] %v774
                %v776 = vld [vmem:[%s302 + $0xec0] sm:$0xff]
                %777 = vst [vmem:[%s303 + $0x760] sm:$0xff] %v776
                %v778 = vld [vmem:[%s302 + $0xec8] sm:$0xff]
                %779 = vst [vmem:[%s303 + $0x768] sm:$0xff] %v778
                %v780 = vld [vmem:[%s302 + $0xee0] sm:$0xff]
                %781 = vst [vmem:[%s303 + $0x770] sm:$0xff] %v780
                %v782 = vld [vmem:[%s302 + $0xee8] sm:$0xff]
                %783 = vst [vmem:[%s303 + $0x778] sm:$0xff] %v782
                %v784 = vld [vmem:[%s302 + $0xf00] sm:$0xff]
                %785 = vst [vmem:[%s303 + $0x780] sm:$0xff] %v784
                %v786 = vld [vmem:[%s302 + $0xf08] sm:$0xff]
                %787 = vst [vmem:[%s303 + $0x788] sm:$0xff] %v786
                %v788 = vld [vmem:[%s302 + $0xf20] sm:$0xff]
                %789 = vst [vmem:[%s303 + $0x790] sm:$0xff] %v788
                %v790 = vld [vmem:[%s302 + $0xf28] sm:$0xff]
                %791 = vst [vmem:[%s303 + $0x798] sm:$0xff] %v790
                %v792 = vld [vmem:[%s302 + $0xf40] sm:$0xff]
                %793 = vst [vmem:[%s303 + $0x7a0] sm:$0xff] %v792
                %v794 = vld [vmem:[%s302 + $0xf48] sm:$0xff]
                %795 = vst [vmem:[%s303 + $0x7a8] sm:$0xff] %v794
                %v796 = vld [vmem:[%s302 + $0xf60] sm:$0xff]
                %797 = vst [vmem:[%s303 + $0x7b0] sm:$0xff] %v796
                %v798 = vld [vmem:[%s302 + $0xf68] sm:$0xff]
                %799 = vst [vmem:[%s303 + $0x7b8] sm:$0xff] %v798
                %v800 = vld [vmem:[%s302 + $0xf80] sm:$0xff]
                %801 = vst [vmem:[%s303 + $0x7c0] sm:$0xff] %v800
                %v802 = vld [vmem:[%s302 + $0xf88] sm:$0xff]
                %803 = vst [vmem:[%s303 + $0x7c8] sm:$0xff] %v802
                %v804 = vld [vmem:[%s302 + $0xfa0] sm:$0xff]
                %805 = vst [vmem:[%s303 + $0x7d0] sm:$0xff] %v804
                %v806 = vld [vmem:[%s302 + $0xfa8] sm:$0xff]
                %807 = vst [vmem:[%s303 + $0x7d8] sm:$0xff] %v806
                %v808 = vld [vmem:[%s302 + $0xfc0] sm:$0xff]
                %809 = vst [vmem:[%s303 + $0x7e0] sm:$0xff] %v808
                %v810 = vld [vmem:[%s302 + $0xfc8] sm:$0xff]
                %811 = vst [vmem:[%s303 + $0x7e8] sm:$0xff] %v810
                %v812 = vld [vmem:[%s302 + $0xfe0] sm:$0xff]
                %813 = vst [vmem:[%s303 + $0x7f0] sm:$0xff] %v812
                %v814 = vld [vmem:[%s302 + $0xfe8] sm:$0xff]
                %815 = vst [vmem:[%s303 + $0x7f8] sm:$0xff] %v814
                %v816 = vld [vmem:[%s302 + $0x1000] sm:$0xff]
                %817 = vst [vmem:[%s303 + $0x800] sm:$0xff] %v816
                %v818 = vld [vmem:[%s302 + $0x1008] sm:$0xff]
                %819 = vst [vmem:[%s303 + $0x808] sm:$0xff] %v818
                %v820 = vld [vmem:[%s302 + $0x1020] sm:$0xff]
                %821 = vst [vmem:[%s303 + $0x810] sm:$0xff] %v820
                %v822 = vld [vmem:[%s302 + $0x1028] sm:$0xff]
                %823 = vst [vmem:[%s303 + $0x818] sm:$0xff] %v822
                %v824 = vld [vmem:[%s302 + $0x1040] sm:$0xff]
                %825 = vst [vmem:[%s303 + $0x820] sm:$0xff] %v824
                %v826 = vld [vmem:[%s302 + $0x1048] sm:$0xff]
                %827 = vst [vmem:[%s303 + $0x828] sm:$0xff] %v826
                %v828 = vld [vmem:[%s302 + $0x1060] sm:$0xff]
                %829 = vst [vmem:[%s303 + $0x830] sm:$0xff] %v828
                %v830 = vld [vmem:[%s302 + $0x1068] sm:$0xff]
                %831 = vst [vmem:[%s303 + $0x838] sm:$0xff] %v830
                %v832 = vld [vmem:[%s302 + $0x1080] sm:$0xff]
                %833 = vst [vmem:[%s303 + $0x840] sm:$0xff] %v832
                %v834 = vld [vmem:[%s302 + $0x1088] sm:$0xff]
                %835 = vst [vmem:[%s303 + $0x848] sm:$0xff] %v834
                %v836 = vld [vmem:[%s302 + $0x10a0] sm:$0xff]
                %837 = vst [vmem:[%s303 + $0x850] sm:$0xff] %v836
                %v838 = vld [vmem:[%s302 + $0x10a8] sm:$0xff]
                %839 = vst [vmem:[%s303 + $0x858] sm:$0xff] %v838
                %v840 = vld [vmem:[%s302 + $0x10c0] sm:$0xff]
                %841 = vst [vmem:[%s303 + $0x860] sm:$0xff] %v840
                %v842 = vld [vmem:[%s302 + $0x10c8] sm:$0xff]
                %843 = vst [vmem:[%s303 + $0x868] sm:$0xff] %v842
                %v844 = vld [vmem:[%s302 + $0x10e0] sm:$0xff]
                %845 = vst [vmem:[%s303 + $0x870] sm:$0xff] %v844
                %v846 = vld [vmem:[%s302 + $0x10e8] sm:$0xff]
                %847 = vst [vmem:[%s303 + $0x878] sm:$0xff] %v846
                %v848 = vld [vmem:[%s302 + $0x1100] sm:$0xff]
                %849 = vst [vmem:[%s303 + $0x880] sm:$0xff] %v848
                %v850 = vld [vmem:[%s302 + $0x1108] sm:$0xff]
                %851 = vst [vmem:[%s303 + $0x888] sm:$0xff] %v850
                %v852 = vld [vmem:[%s302 + $0x1120] sm:$0xff]
                %853 = vst [vmem:[%s303 + $0x890] sm:$0xff] %v852
                %v854 = vld [vmem:[%s302 + $0x1128] sm:$0xff]
                %855 = vst [vmem:[%s303 + $0x898] sm:$0xff] %v854
                %v856 = vld [vmem:[%s302 + $0x1140] sm:$0xff]
                %857 = vst [vmem:[%s303 + $0x8a0] sm:$0xff] %v856
                %v858 = vld [vmem:[%s302 + $0x1148] sm:$0xff]
                %859 = vst [vmem:[%s303 + $0x8a8] sm:$0xff] %v858
                %v860 = vld [vmem:[%s302 + $0x1160] sm:$0xff]
                %861 = vst [vmem:[%s303 + $0x8b0] sm:$0xff] %v860
                %v862 = vld [vmem:[%s302 + $0x1168] sm:$0xff]
                %863 = vst [vmem:[%s303 + $0x8b8] sm:$0xff] %v862
                %v864 = vld [vmem:[%s302 + $0x1180] sm:$0xff]
                %865 = vst [vmem:[%s303 + $0x8c0] sm:$0xff] %v864
                %v866 = vld [vmem:[%s302 + $0x1188] sm:$0xff]
                %867 = vst [vmem:[%s303 + $0x8c8] sm:$0xff] %v866
                %v868 = vld [vmem:[%s302 + $0x11a0] sm:$0xff]
                %869 = vst [vmem:[%s303 + $0x8d0] sm:$0xff] %v868
                %v870 = vld [vmem:[%s302 + $0x11a8] sm:$0xff]
                %871 = vst [vmem:[%s303 + $0x8d8] sm:$0xff] %v870
                %v872 = vld [vmem:[%s302 + $0x11c0] sm:$0xff]
                %873 = vst [vmem:[%s303 + $0x8e0] sm:$0xff] %v872
                %v874 = vld [vmem:[%s302 + $0x11c8] sm:$0xff]
                %875 = vst [vmem:[%s303 + $0x8e8] sm:$0xff] %v874
                %v876 = vld [vmem:[%s302 + $0x11e0] sm:$0xff]
                %877 = vst [vmem:[%s303 + $0x8f0] sm:$0xff] %v876
                %v878 = vld [vmem:[%s302 + $0x11e8] sm:$0xff]
                %879 = vst [vmem:[%s303 + $0x8f8] sm:$0xff] %v878
                %v880 = vld [vmem:[%s302 + $0x1200] sm:$0xff]
                %881 = vst [vmem:[%s303 + $0x900] sm:$0xff] %v880
                %v882 = vld [vmem:[%s302 + $0x1208] sm:$0xff]
                %883 = vst [vmem:[%s303 + $0x908] sm:$0xff] %v882
                %v884 = vld [vmem:[%s302 + $0x1220] sm:$0xff]
                %885 = vst [vmem:[%s303 + $0x910] sm:$0xff] %v884
                %v886 = vld [vmem:[%s302 + $0x1228] sm:$0xff]
                %887 = vst [vmem:[%s303 + $0x918] sm:$0xff] %v886
                %v888 = vld [vmem:[%s302 + $0x1240] sm:$0xff]
                %889 = vst [vmem:[%s303 + $0x920] sm:$0xff] %v888
                %v890 = vld [vmem:[%s302 + $0x1248] sm:$0xff]
                %891 = vst [vmem:[%s303 + $0x928] sm:$0xff] %v890
                %v892 = vld [vmem:[%s302 + $0x1260] sm:$0xff]
                %893 = vst [vmem:[%s303 + $0x930] sm:$0xff] %v892
                %v894 = vld [vmem:[%s302 + $0x1268] sm:$0xff]
                %895 = vst [vmem:[%s303 + $0x938] sm:$0xff] %v894
                %v896 = vld [vmem:[%s302 + $0x1280] sm:$0xff]
                %897 = vst [vmem:[%s303 + $0x940] sm:$0xff] %v896
                %v898 = vld [vmem:[%s302 + $0x1288] sm:$0xff]
                %899 = vst [vmem:[%s303 + $0x948] sm:$0xff] %v898
                %v900 = vld [vmem:[%s302 + $0x12a0] sm:$0xff]
                %901 = vst [vmem:[%s303 + $0x950] sm:$0xff] %v900
                %v902 = vld [vmem:[%s302 + $0x12a8] sm:$0xff]
                %903 = vst [vmem:[%s303 + $0x958] sm:$0xff] %v902
                %v904 = vld [vmem:[%s302 + $0x12c0] sm:$0xff]
                %905 = vst [vmem:[%s303 + $0x960] sm:$0xff] %v904
                %v906 = vld [vmem:[%s302 + $0x12c8] sm:$0xff]
                %907 = vst [vmem:[%s303 + $0x968] sm:$0xff] %v906
                %v908 = vld [vmem:[%s302 + $0x12e0] sm:$0xff]
                %909 = vst [vmem:[%s303 + $0x970] sm:$0xff] %v908
                %v910 = vld [vmem:[%s302 + $0x12e8] sm:$0xff]
                %911 = vst [vmem:[%s303 + $0x978] sm:$0xff] %v910
                %v912 = vld [vmem:[%s302 + $0x1300] sm:$0xff]
                %913 = vst [vmem:[%s303 + $0x980] sm:$0xff] %v912
                %v914 = vld [vmem:[%s302 + $0x1308] sm:$0xff]
                %915 = vst [vmem:[%s303 + $0x988] sm:$0xff] %v914
                %v916 = vld [vmem:[%s302 + $0x1320] sm:$0xff]
                %917 = vst [vmem:[%s303 + $0x990] sm:$0xff] %v916
                %v918 = vld [vmem:[%s302 + $0x1328] sm:$0xff]
                %919 = vst [vmem:[%s303 + $0x998] sm:$0xff] %v918
                %v920 = vld [vmem:[%s302 + $0x1340] sm:$0xff]
                %921 = vst [vmem:[%s303 + $0x9a0] sm:$0xff] %v920
                %v922 = vld [vmem:[%s302 + $0x1348] sm:$0xff]
                %923 = vst [vmem:[%s303 + $0x9a8] sm:$0xff] %v922
                %v924 = vld [vmem:[%s302 + $0x1360] sm:$0xff]
                %925 = vst [vmem:[%s303 + $0x9b0] sm:$0xff] %v924
                %v926 = vld [vmem:[%s302 + $0x1368] sm:$0xff]
                %927 = vst [vmem:[%s303 + $0x9b8] sm:$0xff] %v926
                %v928 = vld [vmem:[%s302 + $0x1380] sm:$0xff]
                %929 = vst [vmem:[%s303 + $0x9c0] sm:$0xff] %v928
                %v930 = vld [vmem:[%s302 + $0x1388] sm:$0xff]
                %931 = vst [vmem:[%s303 + $0x9c8] sm:$0xff] %v930
                %v932 = vld [vmem:[%s302 + $0x13a0] sm:$0xff]
                %933 = vst [vmem:[%s303 + $0x9d0] sm:$0xff] %v932
                %v934 = vld [vmem:[%s302 + $0x13a8] sm:$0xff]
                %935 = vst [vmem:[%s303 + $0x9d8] sm:$0xff] %v934
                %v936 = vld [vmem:[%s302 + $0x13c0] sm:$0xff]
                %937 = vst [vmem:[%s303 + $0x9e0] sm:$0xff] %v936
                %v938 = vld [vmem:[%s302 + $0x13c8] sm:$0xff]
                %939 = vst [vmem:[%s303 + $0x9e8] sm:$0xff] %v938
                %v940 = vld [vmem:[%s302 + $0x13e0] sm:$0xff]
                %941 = vst [vmem:[%s303 + $0x9f0] sm:$0xff] %v940
                %v942 = vld [vmem:[%s302 + $0x13e8] sm:$0xff]
                %943 = vst [vmem:[%s303 + $0x9f8] sm:$0xff] %v942
                %v944 = vld [vmem:[%s302 + $0x1400] sm:$0xff]
                %945 = vst [vmem:[%s303 + $0xa00] sm:$0xff] %v944
                %v946 = vld [vmem:[%s302 + $0x1408] sm:$0xff]
                %947 = vst [vmem:[%s303 + $0xa08] sm:$0xff] %v946
                %v948 = vld [vmem:[%s302 + $0x1420] sm:$0xff]
                %949 = vst [vmem:[%s303 + $0xa10] sm:$0xff] %v948
                %v950 = vld [vmem:[%s302 + $0x1428] sm:$0xff]
                %951 = vst [vmem:[%s303 + $0xa18] sm:$0xff] %v950
                %v952 = vld [vmem:[%s302 + $0x1440] sm:$0xff]
                %953 = vst [vmem:[%s303 + $0xa20] sm:$0xff] %v952
                %v954 = vld [vmem:[%s302 + $0x1448] sm:$0xff]
                %955 = vst [vmem:[%s303 + $0xa28] sm:$0xff] %v954
                %v956 = vld [vmem:[%s302 + $0x1460] sm:$0xff]
                %957 = vst [vmem:[%s303 + $0xa30] sm:$0xff] %v956
                %v958 = vld [vmem:[%s302 + $0x1468] sm:$0xff]
                %959 = vst [vmem:[%s303 + $0xa38] sm:$0xff] %v958
                %v960 = vld [vmem:[%s302 + $0x1480] sm:$0xff]
                %961 = vst [vmem:[%s303 + $0xa40] sm:$0xff] %v960
                %v962 = vld [vmem:[%s302 + $0x1488] sm:$0xff]
                %963 = vst [vmem:[%s303 + $0xa48] sm:$0xff] %v962
                %v964 = vld [vmem:[%s302 + $0x14a0] sm:$0xff]
                %965 = vst [vmem:[%s303 + $0xa50] sm:$0xff] %v964
                %v966 = vld [vmem:[%s302 + $0x14a8] sm:$0xff]
                %967 = vst [vmem:[%s303 + $0xa58] sm:$0xff] %v966
                %v968 = vld [vmem:[%s302 + $0x14c0] sm:$0xff]
                %969 = vst [vmem:[%s303 + $0xa60] sm:$0xff] %v968
                %v970 = vld [vmem:[%s302 + $0x14c8] sm:$0xff]
                %971 = vst [vmem:[%s303 + $0xa68] sm:$0xff] %v970
                %v972 = vld [vmem:[%s302 + $0x14e0] sm:$0xff]
                %973 = vst [vmem:[%s303 + $0xa70] sm:$0xff] %v972
                %v974 = vld [vmem:[%s302 + $0x14e8] sm:$0xff]
                %975 = vst [vmem:[%s303 + $0xa78] sm:$0xff] %v974
                %v976 = vld [vmem:[%s302 + $0x1500] sm:$0xff]
                %977 = vst [vmem:[%s303 + $0xa80] sm:$0xff] %v976
                %v978 = vld [vmem:[%s302 + $0x1508] sm:$0xff]
                %979 = vst [vmem:[%s303 + $0xa88] sm:$0xff] %v978
                %v980 = vld [vmem:[%s302 + $0x1520] sm:$0xff]
                %981 = vst [vmem:[%s303 + $0xa90] sm:$0xff] %v980
                %v982 = vld [vmem:[%s302 + $0x1528] sm:$0xff]
                %983 = vst [vmem:[%s303 + $0xa98] sm:$0xff] %v982
                %v984 = vld [vmem:[%s302 + $0x1540] sm:$0xff]
                %985 = vst [vmem:[%s303 + $0xaa0] sm:$0xff] %v984
                %v986 = vld [vmem:[%s302 + $0x1548] sm:$0xff]
                %987 = vst [vmem:[%s303 + $0xaa8] sm:$0xff] %v986
                %v988 = vld [vmem:[%s302 + $0x1560] sm:$0xff]
                %989 = vst [vmem:[%s303 + $0xab0] sm:$0xff] %v988
                %v990 = vld [vmem:[%s302 + $0x1568] sm:$0xff]
                %991 = vst [vmem:[%s303 + $0xab8] sm:$0xff] %v990
                %v992 = vld [vmem:[%s302 + $0x1580] sm:$0xff]
                %993 = vst [vmem:[%s303 + $0xac0] sm:$0xff] %v992
                %v994 = vld [vmem:[%s302 + $0x1588] sm:$0xff]
                %995 = vst [vmem:[%s303 + $0xac8] sm:$0xff] %v994
                %v996 = vld [vmem:[%s302 + $0x15a0] sm:$0xff]
                %997 = vst [vmem:[%s303 + $0xad0] sm:$0xff] %v996
                %v998 = vld [vmem:[%s302 + $0x15a8] sm:$0xff]
                %999 = vst [vmem:[%s303 + $0xad8] sm:$0xff] %v998
                %v1000 = vld [vmem:[%s302 + $0x15c0] sm:$0xff]
                %1001 = vst [vmem:[%s303 + $0xae0] sm:$0xff] %v1000
                %v1002 = vld [vmem:[%s302 + $0x15c8] sm:$0xff]
                %1003 = vst [vmem:[%s303 + $0xae8] sm:$0xff] %v1002
                %v1004 = vld [vmem:[%s302 + $0x15e0] sm:$0xff]
                %1005 = vst [vmem:[%s303 + $0xaf0] sm:$0xff] %v1004
                %v1006 = vld [vmem:[%s302 + $0x15e8] sm:$0xff]
                %1007 = vst [vmem:[%s303 + $0xaf8] sm:$0xff] %v1006
                %v1008 = vld [vmem:[%s302 + $0x1600] sm:$0xff]
                %1009 = vst [vmem:[%s303 + $0xb00] sm:$0xff] %v1008
                %v1010 = vld [vmem:[%s302 + $0x1608] sm:$0xff]
                %1011 = vst [vmem:[%s303 + $0xb08] sm:$0xff] %v1010
                %v1012 = vld [vmem:[%s302 + $0x1620] sm:$0xff]
                %1013 = vst [vmem:[%s303 + $0xb10] sm:$0xff] %v1012
                %v1014 = vld [vmem:[%s302 + $0x1628] sm:$0xff]
                %1015 = vst [vmem:[%s303 + $0xb18] sm:$0xff] %v1014
                %v1016 = vld [vmem:[%s302 + $0x1640] sm:$0xff]
                %1017 = vst [vmem:[%s303 + $0xb20] sm:$0xff] %v1016
                %v1018 = vld [vmem:[%s302 + $0x1648] sm:$0xff]
                %1019 = vst [vmem:[%s303 + $0xb28] sm:$0xff] %v1018
                %v1020 = vld [vmem:[%s302 + $0x1660] sm:$0xff]
                %1021 = vst [vmem:[%s303 + $0xb30] sm:$0xff] %v1020
                %v1022 = vld [vmem:[%s302 + $0x1668] sm:$0xff]
                %1023 = vst [vmem:[%s303 + $0xb38] sm:$0xff] %v1022
                %v1024 = vld [vmem:[%s302 + $0x1680] sm:$0xff]
                %1025 = vst [vmem:[%s303 + $0xb40] sm:$0xff] %v1024
                %v1026 = vld [vmem:[%s302 + $0x1688] sm:$0xff]
                %1027 = vst [vmem:[%s303 + $0xb48] sm:$0xff] %v1026
                %v1028 = vld [vmem:[%s302 + $0x16a0] sm:$0xff]
                %1029 = vst [vmem:[%s303 + $0xb50] sm:$0xff] %v1028
                %v1030 = vld [vmem:[%s302 + $0x16a8] sm:$0xff]
                %1031 = vst [vmem:[%s303 + $0xb58] sm:$0xff] %v1030
                %v1032 = vld [vmem:[%s302 + $0x16c0] sm:$0xff]
                %1033 = vst [vmem:[%s303 + $0xb60] sm:$0xff] %v1032
                %v1034 = vld [vmem:[%s302 + $0x16c8] sm:$0xff]
                %1035 = vst [vmem:[%s303 + $0xb68] sm:$0xff] %v1034
                %v1036 = vld [vmem:[%s302 + $0x16e0] sm:$0xff]
                %1037 = vst [vmem:[%s303 + $0xb70] sm:$0xff] %v1036
                %v1038 = vld [vmem:[%s302 + $0x16e8] sm:$0xff]
                %1039 = vst [vmem:[%s303 + $0xb78] sm:$0xff] %v1038
                %v1040 = vld [vmem:[%s302 + $0x1700] sm:$0xff]
                %1041 = vst [vmem:[%s303 + $0xb80] sm:$0xff] %v1040
                %v1042 = vld [vmem:[%s302 + $0x1708] sm:$0xff]
                %1043 = vst [vmem:[%s303 + $0xb88] sm:$0xff] %v1042
                %v1044 = vld [vmem:[%s302 + $0x1720] sm:$0xff]
                %1045 = vst [vmem:[%s303 + $0xb90] sm:$0xff] %v1044
                %v1046 = vld [vmem:[%s302 + $0x1728] sm:$0xff]
                %1047 = vst [vmem:[%s303 + $0xb98] sm:$0xff] %v1046
                %v1048 = vld [vmem:[%s302 + $0x1740] sm:$0xff]
                %1049 = vst [vmem:[%s303 + $0xba0] sm:$0xff] %v1048
                %v1050 = vld [vmem:[%s302 + $0x1748] sm:$0xff]
                %1051 = vst [vmem:[%s303 + $0xba8] sm:$0xff] %v1050
                %v1052 = vld [vmem:[%s302 + $0x1760] sm:$0xff]
                %1053 = vst [vmem:[%s303 + $0xbb0] sm:$0xff] %v1052
                %v1054 = vld [vmem:[%s302 + $0x1768] sm:$0xff]
                %1055 = vst [vmem:[%s303 + $0xbb8] sm:$0xff] %v1054
                %v1056 = vld [vmem:[%s302 + $0x1780] sm:$0xff]
                %1057 = vst [vmem:[%s303 + $0xbc0] sm:$0xff] %v1056
                %v1058 = vld [vmem:[%s302 + $0x1788] sm:$0xff]
                %1059 = vst [vmem:[%s303 + $0xbc8] sm:$0xff] %v1058
                %v1060 = vld [vmem:[%s302 + $0x17a0] sm:$0xff]
                %1061 = vst [vmem:[%s303 + $0xbd0] sm:$0xff] %v1060
                %v1062 = vld [vmem:[%s302 + $0x17a8] sm:$0xff]
                %1063 = vst [vmem:[%s303 + $0xbd8] sm:$0xff] %v1062
                %v1064 = vld [vmem:[%s302 + $0x17c0] sm:$0xff]
                %1065 = vst [vmem:[%s303 + $0xbe0] sm:$0xff] %v1064
                %v1066 = vld [vmem:[%s302 + $0x17c8] sm:$0xff]
                %1067 = vst [vmem:[%s303 + $0xbe8] sm:$0xff] %v1066
                %v1068 = vld [vmem:[%s302 + $0x17e0] sm:$0xff]
                %1069 = vst [vmem:[%s303 + $0xbf0] sm:$0xff] %v1068
                %v1070 = vld [vmem:[%s302 + $0x17e8] sm:$0xff]
                %1071 = vst [vmem:[%s303 + $0xbf8] sm:$0xff] %v1070
              $region57: #{net_forward.1} parent=51 // loop_footer
                %s301 = sadd.s32 1, %s297
              $region58: #{net_forward.1} parent=51 // loop_footer_branch
                %296 = sbr.rel target = $region54
              $region59: #{net_forward.1} parent=51 // loop_exit
                _
            $region52: #{net_forward.1} parent=47 // pred_fallthru
              _
            // Predicated region
            $region60: #{net_forward.1} parent=47 // pred_check
              _
            $region61: #{net_forward.1} parent=47 // pred_check_branch
              %1073 = sbr.rel target = $region63
            $region62: #{net_forward.1} parent=47 // pred_region
              _
            $region63: #{net_forward.1} parent=47 // pred_fallthru
              _
          $region48: #{net_forward.1} parent=43 // pred_fallthru
            _
          %1074 = vnop
        $region44: #{net_forward.1} parent=39 // pred_fallthru
          _
        // Predicated region
        $region64: #{net_forward.1} parent=39 // pred_check
          %p1075 = pneg %p124
        $region65: #{net_forward.1} parent=39 // pred_check_branch
          %1077 = sbr.rel (%p1075) target = $region67
        $region66: #{net_forward.1} parent=39 // pred_region
          %s1078 = smul.u32 4, %s15
          %p1079 = scmp.lt.s32.totalorder %s1078, 7
          %s1080 = scalar_select %p1079, %s1078, 7
          %s1081 = scalar_lea.vmem %s4, %s1080
          %s1082 = smul.u32 4, %s15
        $region67: #{net_forward.1} parent=39 // pred_fallthru
          _
        // Predicated region
        $region68: #{net_forward.1} parent=39 // pred_check
          %p1083 = pneg %p150
        $region69: #{net_forward.1} parent=39 // pred_check_branch
          %1085 = sbr.rel (%p1083) target = $region71
        $region70: #{net_forward.1} parent=39 // pred_region
          %s1086 = smul.u32 64, %s15
          %p1087 = scmp.lt.s32.totalorder %s1086, 127
          %s1088 = scalar_select %p1087, %s1086, 127
          %s1089 = smul.addr %s1088, 2
          %s1090 = smul.addr %s1089, 4
          %s1091 = scalar_lea.vmem %s5, %s1090
          %s1092 = smul.u32 64, %s15
        $region71: #{net_forward.1} parent=39 // pred_fallthru
          _
      $region40: #{net_forward.1} parent=5 // pred_fallthru
        _
      %p1093 = scmp.le.s32.totalorder 1, %s15
      %p1094 = scmp.lt.s32.totalorder %s15, 3
      %p1095 = pnand %p1093, %p1094
      %p1096 = pneg %p1095
      // Predicated region
      $region72: #{net_forward.1} parent=5 // pred_check
        _
      $region73: #{net_forward.1} parent=5 // pred_check_branch
        %1098 = sbr.rel (%p1095) target = $region75
      $region74: #{net_forward.1} parent=5 // pred_region
        %s1099 = ssub.s32 %s15, 1
        %s1100 = sand.u32 %s91, 1
        %s1101 = sand.u32 %s91, 1
        %s1102 = smul.addr %s1101, 3072
        %s1103 = scalar_lea.vmem [#allocation3], %s1102
        // Predicated region
        $region76: #{net_forward.1} parent=74 // pred_check
          %p1104 = pneg %p104
        $region77: #{net_forward.1} parent=74 // pred_check_branch
          %1106 = sbr.rel (%p1104) target = $region79
        $region78: #{net_forward.1} parent=74 // pred_region
          _
        $region79: #{net_forward.1} parent=74 // pred_fallthru
          _
        %p1107 = pneg %p36
        %p1108 = pneg %p33
        %p1109 = pneg %p57
        %p1110 = pneg %p54
        %p1111 = pneg %p78
        %p1112 = pneg %p75
        %s1113 = sand.u32 %s91, 1
        %s1114 = sand.u32 %s91, 1
        %s1115 = smul.addr %s1114, 3072
        %s1116 = scalar_lea.vmem [#allocation3], %s1115
        %p1117 = pneg %p104
        %p1118 = pneg %p101
        %s1119 = smul.u32 4, %s20
        %p1120 = scmp.lt.s32.totalorder %s1119, 7
        %s1121 = scalar_select %p1120, %s1119, 7
        %s1122 = scalar_lea.vmem %s4, %s1121
        %p1123 = pneg %p130
        %p1124 = pneg %p127
        %s1125 = smul.u32 64, %s20
        %p1126 = scmp.lt.s32.totalorder %s1125, 127
        %s1127 = scalar_select %p1126, %s1125, 127
        %s1128 = smul.addr %s1127, 2
        %s1129 = smul.addr %s1128, 4
        %s1130 = scalar_lea.vmem %s5, %s1129
        %p1131 = pneg %p156
        %p1132 = pneg %p153
        %p1133 = pneg %p177
        %p1134 = pneg %p174
        %p1135 = pneg %p198
        %p1136 = pneg %p195
        %p1137 = pneg %p219
        %p1138 = pneg %p216
        %p1139 = pneg %p245
        %p1140 = pneg %p242
        %p1141 = scmp.lt.s32.totalorder %s20, 1
        %s1142 = scalar_select %p1141, %s20, 1
        %s1143 = smul.addr %s1142, 2
        %s1144 = scalar_lea.vmem %s9, %s1143
        %s1145 = smul.u32 4, %s20
        %s1146 = smul.u32 4, %s20
        %p1147 = scmp.lt.s32.totalorder %s1146, 7
        %s1148 = scalar_select %p1147, %s1146, 7
        %s1149 = scalar_lea.vmem %s4, %s1148
        %s1150 = smul.u32 4, %s20
        %s1151 = smul.u32 64, %s20
        %p1152 = scmp.lt.s32.totalorder %s1151, 127
        %s1153 = scalar_select %p1152, %s1151, 127
        %s1154 = smul.addr %s1153, 2
        %s1155 = smul.addr %s1154, 4
        %s1156 = scalar_lea.vmem %s5, %s1155
        %s1157 = smul.u32 64, %s20
        %p1158 = scmp.lt.s32.totalorder %s20, 1
        %s1159 = scalar_select %p1158, %s20, 1
        %s1160 = smul.addr %s1159, 2
        %s1161 = scalar_lea.vmem %s9, %s1160
        %v1163 = vld [vmem:[%s1] sm:$0xff]
        %v1164 = vld [vmem:[%s0] sm:$0xff]
        %v1165 = vld [vmem:[%s0 + $0x8] sm:$0xff]
        %v1166 = vld [vmem:[%s0 + $0x10] sm:$0xff]
        %v1167 = vld [vmem:[%s0 + $0x18] sm:$0xff]
        %v1168 = vld [vmem:[%s0 + $0x20] sm:$0xff]
        %v1169 = vld [vmem:[%s0 + $0x28] sm:$0xff]
        %v1170 = vld [vmem:[%s0 + $0x30] sm:$0xff]
        %v1171 = vld [vmem:[%s0 + $0x38] sm:$0xff]
        %v1172 = vld [vmem:[%s0 + $0x40] sm:$0xff]
        %v1173 = vld [vmem:[%s0 + $0x48] sm:$0xff]
        %v1174 = vld [vmem:[%s0 + $0x50] sm:$0xff]
        %v1175 = vld [vmem:[%s0 + $0x58] sm:$0xff]
        %v1176 = vld [vmem:[%s0 + $0x60] sm:$0xff]
        %v1177 = vld [vmem:[%s0 + $0x68] sm:$0xff]
        %v1178 = vld [vmem:[%s0 + $0x70] sm:$0xff]
        %v1179 = vld [vmem:[%s0 + $0x78] sm:$0xff]
        %v1180 = vld [vmem:[%s0 + $0x80] sm:$0xff]
        %v1181 = vld [vmem:[%s0 + $0x88] sm:$0xff]
        %v1182 = vld [vmem:[%s0 + $0x90] sm:$0xff]
        %v1183 = vld [vmem:[%s0 + $0x98] sm:$0xff]
        %v1184 = vld [vmem:[%s0 + $0xa0] sm:$0xff]
        %v1185 = vld [vmem:[%s0 + $0xa8] sm:$0xff]
        %v1186 = vld [vmem:[%s0 + $0xb0] sm:$0xff]
        %v1187 = vld [vmem:[%s0 + $0xb8] sm:$0xff]
        %v1188 = vld [vmem:[%s0 + $0xc0] sm:$0xff]
        %v1189 = vld [vmem:[%s0 + $0xc8] sm:$0xff]
        %v1190 = vld [vmem:[%s0 + $0xd0] sm:$0xff]
        %v1191 = vld [vmem:[%s0 + $0xd8] sm:$0xff]
        %v1192 = vld [vmem:[%s0 + $0xe0] sm:$0x7f]
        %v1193 = vld [vmem:[%s0 + $0xe8] sm:$0x7f]
        %v1194 = vld [vmem:[%s0 + $0xf0] sm:$0x7f]
        %v1195 = vld [vmem:[%s0 + $0xf8] sm:$0x7f]
        %v1196 = vld [vmem:[%s2] sm:$0xff]
        %1198 = vset.pattern.permute.xlu0 0
        %1199 = vperm.xlu0 %1198, %v1196
        %v1200 = vpop.permute.xlu0 %1199
        %vm1202 = vcmask 515072
        %v1204 = vsel %vm1202, %v1163, 0
        %vm1206 = vcmask 1046528
        %v1208 = vsel %vm1206, %v1192, 0
        %v1211 = vsel %vm1206, %v1193, 0
        %v1214 = vsel %vm1206, %v1194, 0
        %v1217 = vsel %vm1206, %v1195, 0
        %1219 = vmatprep.subr.mxu0 %v1165
        %1220 = vmatpush1.msra.mxu0 %v1164
        %1221 = vmatprep.subr.mxu0 %v1169
        %1222 = vmatpush1.msra.mxu0 %v1168
        %1223 = vmatprep.subr.mxu0 %v1173
        %1224 = vmatpush1.msra.mxu0 %v1172
        %1225 = vmatprep.subr.mxu0 %v1177
        %1226 = vmatpush1.msra.mxu0 %v1176
        %1227 = vmatprep.subr.mxu0 %v1181
        %1228 = vmatpush1.msra.mxu0 %v1180
        %1229 = vmatprep.subr.mxu0 %v1185
        %1230 = vmatpush1.msra.mxu0 %v1184
        %1231 = vmatprep.subr.mxu0 %v1189
        %1232 = vmatpush1.msra.mxu0 %v1188
        %1233 = vmatprep.subr.mxu0 %v1211
        %1234 = vmatpush1.msra.mxu0 %v1208
        %1235 = vmatprep.subr.mxu0 0.0
        %1236 = vmatpush1.msra.mxu0 0.0
        %1237 = vmatprep.subr.mxu0 0.0
        %1238 = vmatpush1.msra.mxu0 0.0
        %1239 = vmatprep.subr.mxu0 0.0
        %1240 = vmatpush1.msra.mxu0 0.0
        %1241 = vmatprep.subr.mxu0 0.0
        %1242 = vmatpush1.msra.mxu0 0.0
        %1243 = vmatprep.subr.mxu0 0.0
        %1244 = vmatpush1.msra.mxu0 0.0
        %1245 = vmatprep.subr.mxu0 0.0
        %1246 = vmatpush1.msra.mxu0 0.0
        %1247 = vmatprep.subr.mxu0 0.0
        %1248 = vmatpush1.msra.mxu0 0.0
        %1249 = vmatprep.subr.mxu0 0.0
        %1250 = vmatpush1.msra.mxu0 0.0
        %1251 = vmatprep.subr.mxu0 0.0
        %1252 = vmatpush1.msra.mxu0 0.0
        %1253 = vmatprep.subr.mxu0 0.0
        %1254 = vmatpush1.msra.mxu0 0.0
        %1255 = vmatprep.subr.mxu0 0.0
        %1256 = vmatpush1.msra.mxu0 0.0
        %1257 = vmatprep.subr.mxu0 0.0
        %1258 = vmatpush1.msra.mxu0 0.0
        %1259 = vmatprep.subr.mxu0 0.0
        %1260 = vmatpush1.msra.mxu0 0.0
        %1261 = vmatprep.subr.mxu0 0.0
        %1262 = vmatpush1.msra.mxu0 0.0
        %1263 = vmatprep.subr.mxu0 0.0
        %1264 = vmatpush1.msra.mxu0 0.0
        %1265 = vmatprep.subr.mxu0 0.0
        %1266 = vmatpush1.msra.mxu0 0.0
        %1267 = vmatprep.subr.mxu0 0.0
        %1268 = vmatpush1.msra.mxu0 0.0
        %1269 = vmatprep.subr.mxu0 0.0
        %1270 = vmatpush1.msra.mxu0 0.0
        %1271 = vmatprep.subr.mxu0 0.0
        %1272 = vmatpush1.msra.mxu0 0.0
        %1273 = vmatprep.subr.mxu0 0.0
        %1274 = vmatpush1.msra.mxu0 0.0
        %1275 = vmatprep.subr.mxu0 0.0
        %1276 = vmatpush1.msra.mxu0 0.0
        %1277 = vmatprep.subr.mxu0 0.0
        %1278 = vmatpush1.msra.mxu0 0.0
        %1279 = vmatprep.subr.mxu0 0.0
        %1280 = vmatpush1.msra.mxu0 0.0
        %1281 = vmatprep.subr.mxu0 0.0
        %1282 = vmatpush1.msra.mxu0 0.0
        %1283 = vmatprep.mubr.f32.mxu0 0.0
        %1284 = vmatmul.mubr.f32.gmra.mrb[0].mxu0 %v1204
        %v1285 = vpop.f32.mrb[0].mxu0
        %v1286 = vadd.f32 %v1200, %v1285
        %v1287 = vpop.f32.mrb[0].mxu0
        %v1288 = vadd.f32 %v1200, %v1287
        %1289 = vdwg.mxu0
        %1290 = vmatprep.subr.mxu0 %v1167
        %1291 = vmatpush1.msra.mxu0 %v1166
        %1292 = vmatprep.subr.mxu0 %v1171
        %1293 = vmatpush1.msra.mxu0 %v1170
        %1294 = vmatprep.subr.mxu0 %v1175
        %1295 = vmatpush1.msra.mxu0 %v1174
        %1296 = vmatprep.subr.mxu0 %v1179
        %1297 = vmatpush1.msra.mxu0 %v1178
        %1298 = vmatprep.subr.mxu0 %v1183
        %1299 = vmatpush1.msra.mxu0 %v1182
        %1300 = vmatprep.subr.mxu0 %v1187
        %1301 = vmatpush1.msra.mxu0 %v1186
        %1302 = vmatprep.subr.mxu0 %v1191
        %1303 = vmatpush1.msra.mxu0 %v1190
        %1304 = vmatprep.subr.mxu0 %v1217
        %1305 = vmatpush1.msra.mxu0 %v1214
        %1306 = vmatprep.subr.mxu0 0.0
        %1307 = vmatpush1.msra.mxu0 0.0
        %1308 = vmatprep.subr.mxu0 0.0
        %1309 = vmatpush1.msra.mxu0 0.0
        %1310 = vmatprep.subr.mxu0 0.0
        %1311 = vmatpush1.msra.mxu0 0.0
        %1312 = vmatprep.subr.mxu0 0.0
        %1313 = vmatpush1.msra.mxu0 0.0
        %1314 = vmatprep.subr.mxu0 0.0
        %1315 = vmatpush1.msra.mxu0 0.0
        %1316 = vmatprep.subr.mxu0 0.0
        %1317 = vmatpush1.msra.mxu0 0.0
        %1318 = vmatprep.subr.mxu0 0.0
        %1319 = vmatpush1.msra.mxu0 0.0
        %1320 = vmatprep.subr.mxu0 0.0
        %1321 = vmatpush1.msra.mxu0 0.0
        %1322 = vmatprep.subr.mxu0 0.0
        %1323 = vmatpush1.msra.mxu0 0.0
        %1324 = vmatprep.subr.mxu0 0.0
        %1325 = vmatpush1.msra.mxu0 0.0
        %1326 = vmatprep.subr.mxu0 0.0
        %1327 = vmatpush1.msra.mxu0 0.0
        %1328 = vmatprep.subr.mxu0 0.0
        %1329 = vmatpush1.msra.mxu0 0.0
        %1330 = vmatprep.subr.mxu0 0.0
        %1331 = vmatpush1.msra.mxu0 0.0
        %1332 = vmatprep.subr.mxu0 0.0
        %1333 = vmatpush1.msra.mxu0 0.0
        %1334 = vmatprep.subr.mxu0 0.0
        %1335 = vmatpush1.msra.mxu0 0.0
        %1336 = vmatprep.subr.mxu0 0.0
        %1337 = vmatpush1.msra.mxu0 0.0
        %1338 = vmatprep.subr.mxu0 0.0
        %1339 = vmatpush1.msra.mxu0 0.0
        %1340 = vmatprep.subr.mxu0 0.0
        %1341 = vmatpush1.msra.mxu0 0.0
        %1342 = vmatprep.subr.mxu0 0.0
        %1343 = vmatpush1.msra.mxu0 0.0
        %1344 = vmatprep.subr.mxu0 0.0
        %1345 = vmatpush1.msra.mxu0 0.0
        %1346 = vmatprep.subr.mxu0 0.0
        %1347 = vmatpush1.msra.mxu0 0.0
        %1348 = vmatprep.subr.mxu0 0.0
        %1349 = vmatpush1.msra.mxu0 0.0
        %1350 = vmatprep.subr.mxu0 0.0
        %1351 = vmatpush1.msra.mxu0 0.0
        %1352 = vmatprep.subr.mxu0 0.0
        %1353 = vmatpush1.msra.mxu0 0.0
        %1354 = vmatprep.mubr.f32.mxu0 0.0
        %1355 = vmatmul.mubr.f32.gmra.mrb[0].mxu0 %v1204
        %v1356 = vpop.f32.mrb[0].mxu0
        %v1357 = vadd.f32 %v1200, %v1356
        %v1358 = vpop.f32.mrb[0].mxu0
        %v1359 = vadd.f32 %v1200, %v1358
        %1360 = vdwg.mxu0
        %v1363 = vcombine.low %v1286, %v1288
        %v1365 = vunpack.c.l.s4 1966171168
        %v1366 = vunpack.c.0.s8 %v1365
        %v1367 = vlaneseq
        %v1368 = vshrl.u32 %v1367, 7
        %v1369 = vsub.s32 %v1366, %v1368
        %v1370 = vrot.slane %v1363, %v1369
        %v1372 = vunpack.c.l.s4 1966171168
        %v1373 = vunpack.c.0.s8 %v1372
        %v1374 = vlaneseq
        %v1375 = vshrl.u32 %v1374, 7
        %v1376 = vsub.s32 %v1373, %v1375
        %v1377 = vrot.slane %v1370, %v1376
        %v1379 = vlaneseq
        %vm1380 = vcmp.ge.s32.totalorder %v1379, 0
        %vm1381 = vcmp.lt.s32.totalorder %v1379, 256
        %vm1382 = vmand %vm1380, %vm1381
        %1383 = vst.msk [vmem:[#allocation2] ss:$2 sm:$0x3] %vm1382, %v1377
        %v1384 = vcombine.high %v1370, %v1370
        %v1386 = vunpack.c.l.s4 1966171168
        %v1387 = vunpack.c.0.s8 %v1386
        %v1388 = vlaneseq
        %v1389 = vshrl.u32 %v1388, 7
        %v1390 = vsub.s32 %v1387, %v1389
        %v1391 = vrot.slane %v1384, %v1390
        %s1393 = scalar_lea.vmem [#allocation2], 4
        %1394 = vst.msk [vmem:[%s1393] ss:$2 sm:$0x3] %vm1382, %v1391
        %v1395 = vcombine.high %v1377, %v1377
        %s1397 = scalar_lea.vmem [#allocation2], 8
        %1398 = vst.msk [vmem:[%s1397] ss:$2 sm:$0x3] %vm1382, %v1395
        %v1399 = vcombine.high %v1391, %v1391
        %s1401 = scalar_lea.vmem [#allocation2], 12
        %1402 = vst.msk [vmem:[%s1401] ss:$2 sm:$0x3] %vm1382, %v1399
        %v1403 = vcombine.high %v1286, %v1288
        %v1405 = vunpack.c.l.s4 1966171168
        %v1406 = vunpack.c.0.s8 %v1405
        %v1407 = vlaneseq
        %v1408 = vshrl.u32 %v1407, 7
        %v1409 = vsub.s32 %v1406, %v1408
        %v1410 = vrot.slane %v1403, %v1409
        %v1412 = vunpack.c.l.s4 1966171168
        %v1413 = vunpack.c.0.s8 %v1412
        %v1414 = vlaneseq
        %v1415 = vshrl.u32 %v1414, 7
        %v1416 = vsub.s32 %v1413, %v1415
        %v1417 = vrot.slane %v1410, %v1416
        %s1419 = scalar_lea.vmem [#allocation2], 16
        %1420 = vst.msk [vmem:[%s1419] ss:$2 sm:$0x3] %vm1382, %v1417
        %v1421 = vcombine.high %v1410, %v1410
        %v1423 = vunpack.c.l.s4 1966171168
        %v1424 = vunpack.c.0.s8 %v1423
        %v1425 = vlaneseq
        %v1426 = vshrl.u32 %v1425, 7
        %v1427 = vsub.s32 %v1424, %v1426
        %v1428 = vrot.slane %v1421, %v1427
        %s1430 = scalar_lea.vmem [#allocation2], 20
        %1431 = vst.msk [vmem:[%s1430] ss:$2 sm:$0x3] %vm1382, %v1428
        %v1434 = vcombine.low %v1357, %v1359
        %v1436 = vunpack.c.l.s4 1966171168
        %v1437 = vunpack.c.0.s8 %v1436
        %v1438 = vlaneseq
        %v1439 = vshrl.u32 %v1438, 7
        %v1440 = vsub.s32 %v1437, %v1439
        %v1441 = vrot.slane %v1434, %v1440
        %v1443 = vunpack.c.l.s4 1966171168
        %v1444 = vunpack.c.0.s8 %v1443
        %v1445 = vlaneseq
        %v1446 = vshrl.u32 %v1445, 7
        %v1447 = vsub.s32 %v1444, %v1446
        %v1448 = vrot.slane %v1441, %v1447
        %s1450 = scalar_lea.vmem [#allocation2], 1
        %1451 = vst.msk [vmem:[%s1450] ss:$2 sm:$0x3] %vm1382, %v1448
        %v1452 = vcombine.high %v1441, %v1441
        %v1454 = vunpack.c.l.s4 1966171168
        %v1455 = vunpack.c.0.s8 %v1454
        %v1456 = vlaneseq
        %v1457 = vshrl.u32 %v1456, 7
        %v1458 = vsub.s32 %v1455, %v1457
        %v1459 = vrot.slane %v1452, %v1458
        %s1461 = scalar_lea.vmem [#allocation2], 5
        %1462 = vst.msk [vmem:[%s1461] ss:$2 sm:$0x3] %vm1382, %v1459
        %v1463 = vcombine.high %v1448, %v1448
        %s1465 = scalar_lea.vmem [#allocation2], 9
        %1466 = vst.msk [vmem:[%s1465] ss:$2 sm:$0x3] %vm1382, %v1463
        %v1467 = vcombine.high %v1459, %v1459
        %s1469 = scalar_lea.vmem [#allocation2], 13
        %1470 = vst.msk [vmem:[%s1469] ss:$2 sm:$0x3] %vm1382, %v1467
        %v1471 = vcombine.high %v1357, %v1359
        %v1473 = vunpack.c.l.s4 1966171168
        %v1474 = vunpack.c.0.s8 %v1473
        %v1475 = vlaneseq
        %v1476 = vshrl.u32 %v1475, 7
        %v1477 = vsub.s32 %v1474, %v1476
        %v1478 = vrot.slane %v1471, %v1477
        %v1480 = vunpack.c.l.s4 1966171168
        %v1481 = vunpack.c.0.s8 %v1480
        %v1482 = vlaneseq
        %v1483 = vshrl.u32 %v1482, 7
        %v1484 = vsub.s32 %v1481, %v1483
        %v1485 = vrot.slane %v1478, %v1484
        %s1487 = scalar_lea.vmem [#allocation2], 17
        %1488 = vst.msk [vmem:[%s1487] ss:$2 sm:$0x3] %vm1382, %v1485
        %v1489 = vcombine.high %v1478, %v1478
        %v1491 = vunpack.c.l.s4 1966171168
        %v1492 = vunpack.c.0.s8 %v1491
        %v1493 = vlaneseq
        %v1494 = vshrl.u32 %v1493, 7
        %v1495 = vsub.s32 %v1492, %v1494
        %v1496 = vrot.slane %v1489, %v1495
        %s1498 = scalar_lea.vmem [#allocation2], 21
        %1499 = vst.msk [vmem:[%s1498] ss:$2 sm:$0x3] %vm1382, %v1496
        %v1500 = vld [vmem:[#allocation2] sm:$0xff]
        %v1501 = vld [vmem:[#allocation2 + $0x8] sm:$0xff]
        %v1502 = vld [vmem:[#allocation2 + $0x10] sm:$0xff]
        %v1506 = vcombine.high %v1500, %v1500
        %v1508 = vunpack.c.l.s4 1983009808
        %v1509 = vunpack.c.0.s8 %v1508
        %v1510 = vlaneseq
        %v1511 = vshrl.u32 %v1510, 7
        %v1512 = vsub.s32 %v1509, %v1511
        %v1513 = vrot.slane %v1500, %v1512
        %v1515 = vunpack.c.l.s4 1983009808
        %v1516 = vunpack.c.0.s8 %v1515
        %v1517 = vlaneseq
        %v1518 = vshrl.u32 %v1517, 7
        %v1519 = vsub.s32 %v1516, %v1518
        %v1520 = vrot.slane %v1506, %v1519
        %v1521 = vcombine.high %v1513, %v1513
        %v1522 = vcombine.high %v1520, %v1520
        %v1523 = vcombine.high %v1501, %v1501
        %v1525 = vunpack.c.l.s4 1983009808
        %v1526 = vunpack.c.0.s8 %v1525
        %v1527 = vlaneseq
        %v1528 = vshrl.u32 %v1527, 7
        %v1529 = vsub.s32 %v1526, %v1528
        %v1530 = vrot.slane %v1501, %v1529
        %v1532 = vunpack.c.l.s4 1983009808
        %v1533 = vunpack.c.0.s8 %v1532
        %v1534 = vlaneseq
        %v1535 = vshrl.u32 %v1534, 7
        %v1536 = vsub.s32 %v1533, %v1535
        %v1537 = vrot.slane %v1523, %v1536
        %v1538 = vcombine.high %v1530, %v1530
        %v1539 = vcombine.high %v1537, %v1537
        %v1540 = vcombine.high %v1502, %v1502
        %v1542 = vunpack.c.l.s4 1983009808
        %v1543 = vunpack.c.0.s8 %v1542
        %v1544 = vlaneseq
        %v1545 = vshrl.u32 %v1544, 7
        %v1546 = vsub.s32 %v1543, %v1545
        %v1547 = vrot.slane %v1502, %v1546
        %v1549 = vunpack.c.l.s4 1983009808
        %v1550 = vunpack.c.0.s8 %v1549
        %v1551 = vlaneseq
        %v1552 = vshrl.u32 %v1551, 7
        %v1553 = vsub.s32 %v1550, %v1552
        %v1554 = vrot.slane %v1540, %v1553
        %v1555 = vcombine.high %v1547, %v1547
        %v1556 = vcombine.high %v1554, %v1554
        %v1569 = vpack.c.bf16 %v1513, %v1513
        %v1570 = vpack.c.bf16 %v1521, %v1521
        %v1571 = vpack.c.bf16 %v1520, %v1520
        %v1572 = vpack.c.bf16 %v1522, %v1522
        %v1573 = vpack.c.bf16 %v1530, %v1530
        %v1574 = vpack.c.bf16 %v1538, %v1538
        %v1575 = vpack.c.bf16 %v1537, %v1537
        %v1576 = vpack.c.bf16 %v1539, %v1539
        %v1577 = vpack.c.bf16 %v1547, %v1547
        %v1578 = vpack.c.bf16 %v1555, %v1555
        %v1579 = vpack.c.bf16 %v1554, %v1554
        %v1580 = vpack.c.bf16 %v1556, %v1556
        %v1581 = vld [vmem:[%s1103] sm:$0xff]
        %v1582 = vld [vmem:[%s1103 + $0x8] sm:$0xff]
        %v1583 = vld [vmem:[%s1103 + $0x10] sm:$0xff]
        %v1584 = vld [vmem:[%s1103 + $0x18] sm:$0xff]
        %v1585 = vld [vmem:[%s1103 + $0x20] sm:$0xff]
        %v1586 = vld [vmem:[%s1103 + $0x28] sm:$0xff]
        %v1587 = vld [vmem:[%s1103 + $0x30] sm:$0xff]
        %v1588 = vld [vmem:[%s1103 + $0x38] sm:$0xff]
        %v1589 = vld [vmem:[%s1103 + $0x40] sm:$0xff]
        %v1590 = vld [vmem:[%s1103 + $0x48] sm:$0xff]
        %v1591 = vld [vmem:[%s1103 + $0x50] sm:$0xff]
        %v1592 = vld [vmem:[%s1103 + $0x58] sm:$0xff]
        %v1593 = vld [vmem:[%s1103 + $0x60] sm:$0xff]
        %v1594 = vld [vmem:[%s1103 + $0x68] sm:$0xff]
        %v1595 = vld [vmem:[%s1103 + $0x70] sm:$0xff]
        %v1596 = vld [vmem:[%s1103 + $0x78] sm:$0xff]
        %v1597 = vld [vmem:[%s1103 + $0x80] sm:$0xff]
        %v1598 = vld [vmem:[%s1103 + $0x88] sm:$0xff]
        %v1599 = vld [vmem:[%s1103 + $0x90] sm:$0xff]
        %v1600 = vld [vmem:[%s1103 + $0x98] sm:$0xff]
        %v1601 = vld [vmem:[%s1103 + $0xa0] sm:$0xff]
        %v1602 = vld [vmem:[%s1103 + $0xa8] sm:$0xff]
        %v1603 = vld [vmem:[%s1103 + $0xb0] sm:$0xff]
        %v1604 = vld [vmem:[%s1103 + $0xb8] sm:$0xff]
        %v1605 = vld [vmem:[%s1103 + $0xc0] sm:$0xff]
        %v1606 = vld [vmem:[%s1103 + $0xc8] sm:$0xff]
        %v1607 = vld [vmem:[%s1103 + $0xd0] sm:$0xff]
        %v1608 = vld [vmem:[%s1103 + $0xd8] sm:$0xff]
        %v1609 = vld [vmem:[%s1103 + $0xe0] sm:$0xff]
        %v1610 = vld [vmem:[%s1103 + $0xe8] sm:$0xff]
        %v1611 = vld [vmem:[%s1103 + $0xf0] sm:$0xff]
        %v1612 = vld [vmem:[%s1103 + $0xf8] sm:$0xff]
        %v1613 = vld [vmem:[%s1103 + $0x100] sm:$0xff]
        %v1614 = vld [vmem:[%s1103 + $0x108] sm:$0xff]
        %v1615 = vld [vmem:[%s1103 + $0x110] sm:$0xff]
        %v1616 = vld [vmem:[%s1103 + $0x118] sm:$0xff]
        %v1617 = vld [vmem:[%s1103 + $0x120] sm:$0xff]
        %v1618 = vld [vmem:[%s1103 + $0x128] sm:$0xff]
        %v1619 = vld [vmem:[%s1103 + $0x130] sm:$0xff]
        %v1620 = vld [vmem:[%s1103 + $0x138] sm:$0xff]
        %v1621 = vld [vmem:[%s1103 + $0x140] sm:$0xff]
        %v1622 = vld [vmem:[%s1103 + $0x148] sm:$0xff]
        %v1623 = vld [vmem:[%s1103 + $0x150] sm:$0xff]
        %v1624 = vld [vmem:[%s1103 + $0x158] sm:$0xff]
        %v1625 = vld [vmem:[%s1103 + $0x160] sm:$0xff]
        %v1626 = vld [vmem:[%s1103 + $0x168] sm:$0xff]
        %v1627 = vld [vmem:[%s1103 + $0x170] sm:$0xff]
        %v1628 = vld [vmem:[%s1103 + $0x178] sm:$0xff]
        %v1629 = vld [vmem:[%s1103 + $0x180] sm:$0xff]
        %v1630 = vld [vmem:[%s1103 + $0x188] sm:$0xff]
        %v1631 = vld [vmem:[%s1103 + $0x190] sm:$0xff]
        %v1632 = vld [vmem:[%s1103 + $0x198] sm:$0xff]
        %v1633 = vld [vmem:[%s1103 + $0x1a0] sm:$0xff]
        %v1634 = vld [vmem:[%s1103 + $0x1a8] sm:$0xff]
        %v1635 = vld [vmem:[%s1103 + $0x1b0] sm:$0xff]
        %v1636 = vld [vmem:[%s1103 + $0x1b8] sm:$0xff]
        %v1637 = vld [vmem:[%s1103 + $0x1c0] sm:$0xff]
        %v1638 = vld [vmem:[%s1103 + $0x1c8] sm:$0xff]
        %v1639 = vld [vmem:[%s1103 + $0x1d0] sm:$0xff]
        %v1640 = vld [vmem:[%s1103 + $0x1d8] sm:$0xff]
        %v1641 = vld [vmem:[%s1103 + $0x1e0] sm:$0xff]
        %v1642 = vld [vmem:[%s1103 + $0x1e8] sm:$0xff]
        %v1643 = vld [vmem:[%s1103 + $0x1f0] sm:$0xff]
        %v1644 = vld [vmem:[%s1103 + $0x1f8] sm:$0xff]
        %v1645 = vld [vmem:[%s1103 + $0x200] sm:$0xff]
        %v1646 = vld [vmem:[%s1103 + $0x208] sm:$0xff]
        %v1647 = vld [vmem:[%s1103 + $0x210] sm:$0xff]
        %v1648 = vld [vmem:[%s1103 + $0x218] sm:$0xff]
        %v1649 = vld [vmem:[%s1103 + $0x220] sm:$0xff]
        %v1650 = vld [vmem:[%s1103 + $0x228] sm:$0xff]
        %v1651 = vld [vmem:[%s1103 + $0x230] sm:$0xff]
        %v1652 = vld [vmem:[%s1103 + $0x238] sm:$0xff]
        %v1653 = vld [vmem:[%s1103 + $0x240] sm:$0xff]
        %v1654 = vld [vmem:[%s1103 + $0x248] sm:$0xff]
        %v1655 = vld [vmem:[%s1103 + $0x250] sm:$0xff]
        %v1656 = vld [vmem:[%s1103 + $0x258] sm:$0xff]
        %v1657 = vld [vmem:[%s1103 + $0x260] sm:$0xff]
        %v1658 = vld [vmem:[%s1103 + $0x268] sm:$0xff]
        %v1659 = vld [vmem:[%s1103 + $0x270] sm:$0xff]
        %v1660 = vld [vmem:[%s1103 + $0x278] sm:$0xff]
        %v1661 = vld [vmem:[%s1103 + $0x280] sm:$0xff]
        %v1662 = vld [vmem:[%s1103 + $0x288] sm:$0xff]
        %v1663 = vld [vmem:[%s1103 + $0x290] sm:$0xff]
        %v1664 = vld [vmem:[%s1103 + $0x298] sm:$0xff]
        %v1665 = vld [vmem:[%s1103 + $0x2a0] sm:$0xff]
        %v1666 = vld [vmem:[%s1103 + $0x2a8] sm:$0xff]
        %v1667 = vld [vmem:[%s1103 + $0x2b0] sm:$0xff]
        %v1668 = vld [vmem:[%s1103 + $0x2b8] sm:$0xff]
        %v1669 = vld [vmem:[%s1103 + $0x2c0] sm:$0xff]
        %v1670 = vld [vmem:[%s1103 + $0x2c8] sm:$0xff]
        %v1671 = vld [vmem:[%s1103 + $0x2d0] sm:$0xff]
        %v1672 = vld [vmem:[%s1103 + $0x2d8] sm:$0xff]
        %v1673 = vld [vmem:[%s1103 + $0x2e0] sm:$0xff]
        %v1674 = vld [vmem:[%s1103 + $0x2e8] sm:$0xff]
        %v1675 = vld [vmem:[%s1103 + $0x2f0] sm:$0xff]
        %v1676 = vld [vmem:[%s1103 + $0x2f8] sm:$0xff]
        %v1677 = vld [vmem:[%s1103 + $0x300] sm:$0xff]
        %v1678 = vld [vmem:[%s1103 + $0x308] sm:$0xff]
        %v1679 = vld [vmem:[%s1103 + $0x310] sm:$0xff]
        %v1680 = vld [vmem:[%s1103 + $0x318] sm:$0xff]
        %v1681 = vld [vmem:[%s1103 + $0x320] sm:$0xff]
        %v1682 = vld [vmem:[%s1103 + $0x328] sm:$0xff]
        %v1683 = vld [vmem:[%s1103 + $0x330] sm:$0xff]
        %v1684 = vld [vmem:[%s1103 + $0x338] sm:$0xff]
        %v1685 = vld [vmem:[%s1103 + $0x340] sm:$0xff]
        %v1686 = vld [vmem:[%s1103 + $0x348] sm:$0xff]
        %v1687 = vld [vmem:[%s1103 + $0x350] sm:$0xff]
        %v1688 = vld [vmem:[%s1103 + $0x358] sm:$0xff]
        %v1689 = vld [vmem:[%s1103 + $0x360] sm:$0xff]
        %v1690 = vld [vmem:[%s1103 + $0x368] sm:$0xff]
        %v1691 = vld [vmem:[%s1103 + $0x370] sm:$0xff]
        %v1692 = vld [vmem:[%s1103 + $0x378] sm:$0xff]
        %v1693 = vld [vmem:[%s1103 + $0x380] sm:$0xff]
        %v1694 = vld [vmem:[%s1103 + $0x388] sm:$0xff]
        %v1695 = vld [vmem:[%s1103 + $0x390] sm:$0xff]
        %v1696 = vld [vmem:[%s1103 + $0x398] sm:$0xff]
        %v1697 = vld [vmem:[%s1103 + $0x3a0] sm:$0xff]
        %v1698 = vld [vmem:[%s1103 + $0x3a8] sm:$0xff]
        %v1699 = vld [vmem:[%s1103 + $0x3b0] sm:$0xff]
        %v1700 = vld [vmem:[%s1103 + $0x3b8] sm:$0xff]
        %v1701 = vld [vmem:[%s1103 + $0x3c0] sm:$0xff]
        %v1702 = vld [vmem:[%s1103 + $0x3c8] sm:$0xff]
        %v1703 = vld [vmem:[%s1103 + $0x3d0] sm:$0xff]
        %v1704 = vld [vmem:[%s1103 + $0x3d8] sm:$0xff]
        %v1705 = vld [vmem:[%s1103 + $0x3e0] sm:$0xff]
        %v1706 = vld [vmem:[%s1103 + $0x3e8] sm:$0xff]
        %v1707 = vld [vmem:[%s1103 + $0x3f0] sm:$0xff]
        %v1708 = vld [vmem:[%s1103 + $0x3f8] sm:$0xff]
        %v1709 = vld [vmem:[%s1103 + $0x400] sm:$0xff]
        %v1710 = vld [vmem:[%s1103 + $0x408] sm:$0xff]
        %v1711 = vld [vmem:[%s1103 + $0x410] sm:$0xff]
        %v1712 = vld [vmem:[%s1103 + $0x418] sm:$0xff]
        %v1713 = vld [vmem:[%s1103 + $0x420] sm:$0xff]
        %v1714 = vld [vmem:[%s1103 + $0x428] sm:$0xff]
        %v1715 = vld [vmem:[%s1103 + $0x430] sm:$0xff]
        %v1716 = vld [vmem:[%s1103 + $0x438] sm:$0xff]
        %v1717 = vld [vmem:[%s1103 + $0x440] sm:$0xff]
        %v1718 = vld [vmem:[%s1103 + $0x448] sm:$0xff]
        %v1719 = vld [vmem:[%s1103 + $0x450] sm:$0xff]
        %v1720 = vld [vmem:[%s1103 + $0x458] sm:$0xff]
        %v1721 = vld [vmem:[%s1103 + $0x460] sm:$0xff]
        %v1722 = vld [vmem:[%s1103 + $0x468] sm:$0xff]
        %v1723 = vld [vmem:[%s1103 + $0x470] sm:$0xff]
        %v1724 = vld [vmem:[%s1103 + $0x478] sm:$0xff]
        %v1725 = vld [vmem:[%s1103 + $0x480] sm:$0xff]
        %v1726 = vld [vmem:[%s1103 + $0x488] sm:$0xff]
        %v1727 = vld [vmem:[%s1103 + $0x490] sm:$0xff]
        %v1728 = vld [vmem:[%s1103 + $0x498] sm:$0xff]
        %v1729 = vld [vmem:[%s1103 + $0x4a0] sm:$0xff]
        %v1730 = vld [vmem:[%s1103 + $0x4a8] sm:$0xff]
        %v1731 = vld [vmem:[%s1103 + $0x4b0] sm:$0xff]
        %v1732 = vld [vmem:[%s1103 + $0x4b8] sm:$0xff]
        %v1733 = vld [vmem:[%s1103 + $0x4c0] sm:$0xff]
        %v1734 = vld [vmem:[%s1103 + $0x4c8] sm:$0xff]
        %v1735 = vld [vmem:[%s1103 + $0x4d0] sm:$0xff]
        %v1736 = vld [vmem:[%s1103 + $0x4d8] sm:$0xff]
        %v1737 = vld [vmem:[%s1103 + $0x4e0] sm:$0xff]
        %v1738 = vld [vmem:[%s1103 + $0x4e8] sm:$0xff]
        %v1739 = vld [vmem:[%s1103 + $0x4f0] sm:$0xff]
        %v1740 = vld [vmem:[%s1103 + $0x4f8] sm:$0xff]
        %v1741 = vld [vmem:[%s1103 + $0x500] sm:$0xff]
        %v1742 = vld [vmem:[%s1103 + $0x508] sm:$0xff]
        %v1743 = vld [vmem:[%s1103 + $0x510] sm:$0xff]
        %v1744 = vld [vmem:[%s1103 + $0x518] sm:$0xff]
        %v1745 = vld [vmem:[%s1103 + $0x520] sm:$0xff]
        %v1746 = vld [vmem:[%s1103 + $0x528] sm:$0xff]
        %v1747 = vld [vmem:[%s1103 + $0x530] sm:$0xff]
        %v1748 = vld [vmem:[%s1103 + $0x538] sm:$0xff]
        %v1749 = vld [vmem:[%s1103 + $0x540] sm:$0xff]
        %v1750 = vld [vmem:[%s1103 + $0x548] sm:$0xff]
        %v1751 = vld [vmem:[%s1103 + $0x550] sm:$0xff]
        %v1752 = vld [vmem:[%s1103 + $0x558] sm:$0xff]
        %v1753 = vld [vmem:[%s1103 + $0x560] sm:$0xff]
        %v1754 = vld [vmem:[%s1103 + $0x568] sm:$0xff]
        %v1755 = vld [vmem:[%s1103 + $0x570] sm:$0xff]
        %v1756 = vld [vmem:[%s1103 + $0x578] sm:$0xff]
        %v1757 = vld [vmem:[%s1103 + $0x580] sm:$0xff]
        %v1758 = vld [vmem:[%s1103 + $0x588] sm:$0xff]
        %v1759 = vld [vmem:[%s1103 + $0x590] sm:$0xff]
        %v1760 = vld [vmem:[%s1103 + $0x598] sm:$0xff]
        %v1761 = vld [vmem:[%s1103 + $0x5a0] sm:$0xff]
        %v1762 = vld [vmem:[%s1103 + $0x5a8] sm:$0xff]
        %v1763 = vld [vmem:[%s1103 + $0x5b0] sm:$0xff]
        %v1764 = vld [vmem:[%s1103 + $0x5b8] sm:$0xff]
        %v1765 = vld [vmem:[%s1103 + $0x5c0] sm:$0xff]
        %v1766 = vld [vmem:[%s1103 + $0x5c8] sm:$0xff]
        %v1767 = vld [vmem:[%s1103 + $0x5d0] sm:$0xff]
        %v1768 = vld [vmem:[%s1103 + $0x5d8] sm:$0xff]
        %v1769 = vld [vmem:[%s1103 + $0x5e0] sm:$0xff]
        %v1770 = vld [vmem:[%s1103 + $0x5e8] sm:$0xff]
        %v1771 = vld [vmem:[%s1103 + $0x5f0] sm:$0xff]
        %v1772 = vld [vmem:[%s1103 + $0x5f8] sm:$0xff]
        %v1773 = vld [vmem:[%s1103 + $0x600] sm:$0xff]
        %v1774 = vld [vmem:[%s1103 + $0x608] sm:$0xff]
        %v1775 = vld [vmem:[%s1103 + $0x610] sm:$0xff]
        %v1776 = vld [vmem:[%s1103 + $0x618] sm:$0xff]
        %v1777 = vld [vmem:[%s1103 + $0x620] sm:$0xff]
        %v1778 = vld [vmem:[%s1103 + $0x628] sm:$0xff]
        %v1779 = vld [vmem:[%s1103 + $0x630] sm:$0xff]
        %v1780 = vld [vmem:[%s1103 + $0x638] sm:$0xff]
        %v1781 = vld [vmem:[%s1103 + $0x640] sm:$0xff]
        %v1782 = vld [vmem:[%s1103 + $0x648] sm:$0xff]
        %v1783 = vld [vmem:[%s1103 + $0x650] sm:$0xff]
        %v1784 = vld [vmem:[%s1103 + $0x658] sm:$0xff]
        %v1785 = vld [vmem:[%s1103 + $0x660] sm:$0xff]
        %v1786 = vld [vmem:[%s1103 + $0x668] sm:$0xff]
        %v1787 = vld [vmem:[%s1103 + $0x670] sm:$0xff]
        %v1788 = vld [vmem:[%s1103 + $0x678] sm:$0xff]
        %v1789 = vld [vmem:[%s1103 + $0x680] sm:$0xff]
        %v1790 = vld [vmem:[%s1103 + $0x688] sm:$0xff]
        %v1791 = vld [vmem:[%s1103 + $0x690] sm:$0xff]
        %v1792 = vld [vmem:[%s1103 + $0x698] sm:$0xff]
        %v1793 = vld [vmem:[%s1103 + $0x6a0] sm:$0xff]
        %v1794 = vld [vmem:[%s1103 + $0x6a8] sm:$0xff]
        %v1795 = vld [vmem:[%s1103 + $0x6b0] sm:$0xff]
        %v1796 = vld [vmem:[%s1103 + $0x6b8] sm:$0xff]
        %v1797 = vld [vmem:[%s1103 + $0x6c0] sm:$0xff]
        %v1798 = vld [vmem:[%s1103 + $0x6c8] sm:$0xff]
        %v1799 = vld [vmem:[%s1103 + $0x6d0] sm:$0xff]
        %v1800 = vld [vmem:[%s1103 + $0x6d8] sm:$0xff]
        %v1801 = vld [vmem:[%s1103 + $0x6e0] sm:$0xff]
        %v1802 = vld [vmem:[%s1103 + $0x6e8] sm:$0xff]
        %v1803 = vld [vmem:[%s1103 + $0x6f0] sm:$0xff]
        %v1804 = vld [vmem:[%s1103 + $0x6f8] sm:$0xff]
        %v1805 = vld [vmem:[%s1103 + $0x700] sm:$0xff]
        %v1806 = vld [vmem:[%s1103 + $0x708] sm:$0xff]
        %v1807 = vld [vmem:[%s1103 + $0x710] sm:$0xff]
        %v1808 = vld [vmem:[%s1103 + $0x718] sm:$0xff]
        %v1809 = vld [vmem:[%s1103 + $0x720] sm:$0xff]
        %v1810 = vld [vmem:[%s1103 + $0x728] sm:$0xff]
        %v1811 = vld [vmem:[%s1103 + $0x730] sm:$0xff]
        %v1812 = vld [vmem:[%s1103 + $0x738] sm:$0xff]
        %v1813 = vld [vmem:[%s1103 + $0x740] sm:$0xff]
        %v1814 = vld [vmem:[%s1103 + $0x748] sm:$0xff]
        %v1815 = vld [vmem:[%s1103 + $0x750] sm:$0xff]
        %v1816 = vld [vmem:[%s1103 + $0x758] sm:$0xff]
        %v1817 = vld [vmem:[%s1103 + $0x760] sm:$0xff]
        %v1818 = vld [vmem:[%s1103 + $0x768] sm:$0xff]
        %v1819 = vld [vmem:[%s1103 + $0x770] sm:$0xff]
        %v1820 = vld [vmem:[%s1103 + $0x778] sm:$0xff]
        %v1821 = vld [vmem:[%s1103 + $0x780] sm:$0xff]
        %v1822 = vld [vmem:[%s1103 + $0x788] sm:$0xff]
        %v1823 = vld [vmem:[%s1103 + $0x790] sm:$0xff]
        %v1824 = vld [vmem:[%s1103 + $0x798] sm:$0xff]
        %v1825 = vld [vmem:[%s1103 + $0x7a0] sm:$0xff]
        %v1826 = vld [vmem:[%s1103 + $0x7a8] sm:$0xff]
        %v1827 = vld [vmem:[%s1103 + $0x7b0] sm:$0xff]
        %v1828 = vld [vmem:[%s1103 + $0x7b8] sm:$0xff]
        %v1829 = vld [vmem:[%s1103 + $0x7c0] sm:$0xff]
        %v1830 = vld [vmem:[%s1103 + $0x7c8] sm:$0xff]
        %v1831 = vld [vmem:[%s1103 + $0x7d0] sm:$0xff]
        %v1832 = vld [vmem:[%s1103 + $0x7d8] sm:$0xff]
        %v1833 = vld [vmem:[%s1103 + $0x7e0] sm:$0xff]
        %v1834 = vld [vmem:[%s1103 + $0x7e8] sm:$0xff]
        %v1835 = vld [vmem:[%s1103 + $0x7f0] sm:$0xff]
        %v1836 = vld [vmem:[%s1103 + $0x7f8] sm:$0xff]
        %v1837 = vld [vmem:[%s1103 + $0x800] sm:$0xff]
        %v1838 = vld [vmem:[%s1103 + $0x808] sm:$0xff]
        %v1839 = vld [vmem:[%s1103 + $0x810] sm:$0xff]
        %v1840 = vld [vmem:[%s1103 + $0x818] sm:$0xff]
        %v1841 = vld [vmem:[%s1103 + $0x820] sm:$0xff]
        %v1842 = vld [vmem:[%s1103 + $0x828] sm:$0xff]
        %v1843 = vld [vmem:[%s1103 + $0x830] sm:$0xff]
        %v1844 = vld [vmem:[%s1103 + $0x838] sm:$0xff]
        %v1845 = vld [vmem:[%s1103 + $0x840] sm:$0xff]
        %v1846 = vld [vmem:[%s1103 + $0x848] sm:$0xff]
        %v1847 = vld [vmem:[%s1103 + $0x850] sm:$0xff]
        %v1848 = vld [vmem:[%s1103 + $0x858] sm:$0xff]
        %v1849 = vld [vmem:[%s1103 + $0x860] sm:$0xff]
        %v1850 = vld [vmem:[%s1103 + $0x868] sm:$0xff]
        %v1851 = vld [vmem:[%s1103 + $0x870] sm:$0xff]
        %v1852 = vld [vmem:[%s1103 + $0x878] sm:$0xff]
        %v1853 = vld [vmem:[%s1103 + $0x880] sm:$0xff]
        %v1854 = vld [vmem:[%s1103 + $0x888] sm:$0xff]
        %v1855 = vld [vmem:[%s1103 + $0x890] sm:$0xff]
        %v1856 = vld [vmem:[%s1103 + $0x898] sm:$0xff]
        %v1857 = vld [vmem:[%s1103 + $0x8a0] sm:$0xff]
        %v1858 = vld [vmem:[%s1103 + $0x8a8] sm:$0xff]
        %v1859 = vld [vmem:[%s1103 + $0x8b0] sm:$0xff]
        %v1860 = vld [vmem:[%s1103 + $0x8b8] sm:$0xff]
        %v1861 = vld [vmem:[%s1103 + $0x8c0] sm:$0xff]
        %v1862 = vld [vmem:[%s1103 + $0x8c8] sm:$0xff]
        %v1863 = vld [vmem:[%s1103 + $0x8d0] sm:$0xff]
        %v1864 = vld [vmem:[%s1103 + $0x8d8] sm:$0xff]
        %v1865 = vld [vmem:[%s1103 + $0x8e0] sm:$0xff]
        %v1866 = vld [vmem:[%s1103 + $0x8e8] sm:$0xff]
        %v1867 = vld [vmem:[%s1103 + $0x8f0] sm:$0xff]
        %v1868 = vld [vmem:[%s1103 + $0x8f8] sm:$0xff]
        %v1869 = vld [vmem:[%s1103 + $0x900] sm:$0xff]
        %v1870 = vld [vmem:[%s1103 + $0x908] sm:$0xff]
        %v1871 = vld [vmem:[%s1103 + $0x910] sm:$0xff]
        %v1872 = vld [vmem:[%s1103 + $0x918] sm:$0xff]
        %v1873 = vld [vmem:[%s1103 + $0x920] sm:$0xff]
        %v1874 = vld [vmem:[%s1103 + $0x928] sm:$0xff]
        %v1875 = vld [vmem:[%s1103 + $0x930] sm:$0xff]
        %v1876 = vld [vmem:[%s1103 + $0x938] sm:$0xff]
        %v1877 = vld [vmem:[%s1103 + $0x940] sm:$0xff]
        %v1878 = vld [vmem:[%s1103 + $0x948] sm:$0xff]
        %v1879 = vld [vmem:[%s1103 + $0x950] sm:$0xff]
        %v1880 = vld [vmem:[%s1103 + $0x958] sm:$0xff]
        %v1881 = vld [vmem:[%s1103 + $0x960] sm:$0xff]
        %v1882 = vld [vmem:[%s1103 + $0x968] sm:$0xff]
        %v1883 = vld [vmem:[%s1103 + $0x970] sm:$0xff]
        %v1884 = vld [vmem:[%s1103 + $0x978] sm:$0xff]
        %v1885 = vld [vmem:[%s1103 + $0x980] sm:$0xff]
        %v1886 = vld [vmem:[%s1103 + $0x988] sm:$0xff]
        %v1887 = vld [vmem:[%s1103 + $0x990] sm:$0xff]
        %v1888 = vld [vmem:[%s1103 + $0x998] sm:$0xff]
        %v1889 = vld [vmem:[%s1103 + $0x9a0] sm:$0xff]
        %v1890 = vld [vmem:[%s1103 + $0x9a8] sm:$0xff]
        %v1891 = vld [vmem:[%s1103 + $0x9b0] sm:$0xff]
        %v1892 = vld [vmem:[%s1103 + $0x9b8] sm:$0xff]
        %v1893 = vld [vmem:[%s1103 + $0x9c0] sm:$0xff]
        %v1894 = vld [vmem:[%s1103 + $0x9c8] sm:$0xff]
        %v1895 = vld [vmem:[%s1103 + $0x9d0] sm:$0xff]
        %v1896 = vld [vmem:[%s1103 + $0x9d8] sm:$0xff]
        %v1897 = vld [vmem:[%s1103 + $0x9e0] sm:$0xff]
        %v1898 = vld [vmem:[%s1103 + $0x9e8] sm:$0xff]
        %v1899 = vld [vmem:[%s1103 + $0x9f0] sm:$0xff]
        %v1900 = vld [vmem:[%s1103 + $0x9f8] sm:$0xff]
        %v1901 = vld [vmem:[%s1103 + $0xa00] sm:$0xff]
        %v1902 = vld [vmem:[%s1103 + $0xa08] sm:$0xff]
        %v1903 = vld [vmem:[%s1103 + $0xa10] sm:$0xff]
        %v1904 = vld [vmem:[%s1103 + $0xa18] sm:$0xff]
        %v1905 = vld [vmem:[%s1103 + $0xa20] sm:$0xff]
        %v1906 = vld [vmem:[%s1103 + $0xa28] sm:$0xff]
        %v1907 = vld [vmem:[%s1103 + $0xa30] sm:$0xff]
        %v1908 = vld [vmem:[%s1103 + $0xa38] sm:$0xff]
        %v1909 = vld [vmem:[%s1103 + $0xa40] sm:$0xff]
        %v1910 = vld [vmem:[%s1103 + $0xa48] sm:$0xff]
        %v1911 = vld [vmem:[%s1103 + $0xa50] sm:$0xff]
        %v1912 = vld [vmem:[%s1103 + $0xa58] sm:$0xff]
        %v1913 = vld [vmem:[%s1103 + $0xa60] sm:$0xff]
        %v1914 = vld [vmem:[%s1103 + $0xa68] sm:$0xff]
        %v1915 = vld [vmem:[%s1103 + $0xa70] sm:$0xff]
        %v1916 = vld [vmem:[%s1103 + $0xa78] sm:$0xff]
        %v1917 = vld [vmem:[%s1103 + $0xa80] sm:$0xff]
        %v1918 = vld [vmem:[%s1103 + $0xa88] sm:$0xff]
        %v1919 = vld [vmem:[%s1103 + $0xa90] sm:$0xff]
        %v1920 = vld [vmem:[%s1103 + $0xa98] sm:$0xff]
        %v1921 = vld [vmem:[%s1103 + $0xaa0] sm:$0xff]
        %v1922 = vld [vmem:[%s1103 + $0xaa8] sm:$0xff]
        %v1923 = vld [vmem:[%s1103 + $0xab0] sm:$0xff]
        %v1924 = vld [vmem:[%s1103 + $0xab8] sm:$0xff]
        %v1925 = vld [vmem:[%s1103 + $0xac0] sm:$0xff]
        %v1926 = vld [vmem:[%s1103 + $0xac8] sm:$0xff]
        %v1927 = vld [vmem:[%s1103 + $0xad0] sm:$0xff]
        %v1928 = vld [vmem:[%s1103 + $0xad8] sm:$0xff]
        %v1929 = vld [vmem:[%s1103 + $0xae0] sm:$0xff]
        %v1930 = vld [vmem:[%s1103 + $0xae8] sm:$0xff]
        %v1931 = vld [vmem:[%s1103 + $0xaf0] sm:$0xff]
        %v1932 = vld [vmem:[%s1103 + $0xaf8] sm:$0xff]
        %v1933 = vld [vmem:[%s1103 + $0xb00] sm:$0xff]
        %v1934 = vld [vmem:[%s1103 + $0xb08] sm:$0xff]
        %v1935 = vld [vmem:[%s1103 + $0xb10] sm:$0xff]
        %v1936 = vld [vmem:[%s1103 + $0xb18] sm:$0xff]
        %v1937 = vld [vmem:[%s1103 + $0xb20] sm:$0xff]
        %v1938 = vld [vmem:[%s1103 + $0xb28] sm:$0xff]
        %v1939 = vld [vmem:[%s1103 + $0xb30] sm:$0xff]
        %v1940 = vld [vmem:[%s1103 + $0xb38] sm:$0xff]
        %v1941 = vld [vmem:[%s1103 + $0xb40] sm:$0xff]
        %v1942 = vld [vmem:[%s1103 + $0xb48] sm:$0xff]
        %v1943 = vld [vmem:[%s1103 + $0xb50] sm:$0xff]
        %v1944 = vld [vmem:[%s1103 + $0xb58] sm:$0xff]
        %v1945 = vld [vmem:[%s1103 + $0xb60] sm:$0xff]
        %v1946 = vld [vmem:[%s1103 + $0xb68] sm:$0xff]
        %v1947 = vld [vmem:[%s1103 + $0xb70] sm:$0xff]
        %v1948 = vld [vmem:[%s1103 + $0xb78] sm:$0xff]
        %v1949 = vld [vmem:[%s1103 + $0xb80] sm:$0xff]
        %v1950 = vld [vmem:[%s1103 + $0xb88] sm:$0xff]
        %v1951 = vld [vmem:[%s1103 + $0xb90] sm:$0xff]
        %v1952 = vld [vmem:[%s1103 + $0xb98] sm:$0xff]
        %v1953 = vld [vmem:[%s1103 + $0xba0] sm:$0xff]
        %v1954 = vld [vmem:[%s1103 + $0xba8] sm:$0xff]
        %v1955 = vld [vmem:[%s1103 + $0xbb0] sm:$0xff]
        %v1956 = vld [vmem:[%s1103 + $0xbb8] sm:$0xff]
        %v1957 = vld [vmem:[%s1103 + $0xbc0] sm:$0xff]
        %v1958 = vld [vmem:[%s1103 + $0xbc8] sm:$0xff]
        %v1959 = vld [vmem:[%s1103 + $0xbd0] sm:$0xff]
        %v1960 = vld [vmem:[%s1103 + $0xbd8] sm:$0xff]
        %v1961 = vld [vmem:[%s1103 + $0xbe0] sm:$0xff]
        %v1962 = vld [vmem:[%s1103 + $0xbe8] sm:$0xff]
        %v1963 = vld [vmem:[%s1103 + $0xbf0] sm:$0xff]
        %v1964 = vld [vmem:[%s1103 + $0xbf8] sm:$0xff]
        %v1965 = vld [vmem:[%s1149] sm:$0xf]
        %v1967 = vlaneseq
        %v1968 = vshrl.u32 %v1967, 7
        %v1969 = vsub.s32 0, %v1968
        %v1970 = vrot.slane %v1965, %v1969
        %v1971 = vlaneseq
        %v1972 = vshrl.u32 %v1971, 7
        %v1973 = vsub.s32 1, %v1972
        %v1974 = vrot.slane %v1965, %v1973
        %v1975 = vlaneseq
        %v1976 = vshrl.u32 %v1975, 7
        %v1977 = vsub.s32 2, %v1976
        %v1978 = vrot.slane %v1965, %v1977
        %v1979 = vlaneseq
        %v1980 = vshrl.u32 %v1979, 7
        %v1981 = vsub.s32 3, %v1980
        %v1982 = vrot.slane %v1965, %v1981
        %v2371 = vunpack.c.l.b16 %v1581
        %v2372 = vunpack.c.h.b16 %v1581
        %v2373 = vunpack.c.l.b16 %v1582
        %v2374 = vunpack.c.h.b16 %v1582
        %v2375 = vunpack.c.l.b16 %v1583
        %v2376 = vunpack.c.h.b16 %v1583
        %v2377 = vunpack.c.l.b16 %v1584
        %v2378 = vunpack.c.h.b16 %v1584
        %v2379 = vunpack.c.l.b16 %v1585
        %v2380 = vunpack.c.h.b16 %v1585
        %v2381 = vunpack.c.l.b16 %v1586
        %v2382 = vunpack.c.h.b16 %v1586
        %v2383 = vunpack.c.l.b16 %v1587
        %v2384 = vunpack.c.h.b16 %v1587
        %v2385 = vunpack.c.l.b16 %v1588
        %v2386 = vunpack.c.h.b16 %v1588
        %v2387 = vunpack.c.l.b16 %v1589
        %v2388 = vunpack.c.h.b16 %v1589
        %v2389 = vunpack.c.l.b16 %v1590
        %v2390 = vunpack.c.h.b16 %v1590
        %v2391 = vunpack.c.l.b16 %v1591
        %v2392 = vunpack.c.h.b16 %v1591
        %v2393 = vunpack.c.l.b16 %v1592
        %v2394 = vunpack.c.h.b16 %v1592
        %v2395 = vunpack.c.l.b16 %v1593
        %v2396 = vunpack.c.h.b16 %v1593
        %v2397 = vunpack.c.l.b16 %v1594
        %v2398 = vunpack.c.h.b16 %v1594
        %v2399 = vunpack.c.l.b16 %v1595
        %v2400 = vunpack.c.h.b16 %v1595
        %v2401 = vunpack.c.l.b16 %v1596
        %v2402 = vunpack.c.h.b16 %v1596
        %v2403 = vunpack.c.l.b16 %v1597
        %v2404 = vunpack.c.h.b16 %v1597
        %v2405 = vunpack.c.l.b16 %v1598
        %v2406 = vunpack.c.h.b16 %v1598
        %v2407 = vunpack.c.l.b16 %v1599
        %v2408 = vunpack.c.h.b16 %v1599
        %v2409 = vunpack.c.l.b16 %v1600
        %v2410 = vunpack.c.h.b16 %v1600
        %v2411 = vunpack.c.l.b16 %v1601
        %v2412 = vunpack.c.h.b16 %v1601
        %v2413 = vunpack.c.l.b16 %v1602
        %v2414 = vunpack.c.h.b16 %v1602
        %v2415 = vunpack.c.l.b16 %v1603
        %v2416 = vunpack.c.h.b16 %v1603
        %v2417 = vunpack.c.l.b16 %v1604
        %v2418 = vunpack.c.h.b16 %v1604
        %v2419 = vunpack.c.l.b16 %v1605
        %v2420 = vunpack.c.h.b16 %v1605
        %v2421 = vunpack.c.l.b16 %v1606
        %v2422 = vunpack.c.h.b16 %v1606
        %v2423 = vunpack.c.l.b16 %v1607
        %v2424 = vunpack.c.h.b16 %v1607
        %v2425 = vunpack.c.l.b16 %v1608
        %v2426 = vunpack.c.h.b16 %v1608
        %v2427 = vunpack.c.l.b16 %v1609
        %v2428 = vunpack.c.h.b16 %v1609
        %v2429 = vunpack.c.l.b16 %v1610
        %v2430 = vunpack.c.h.b16 %v1610
        %v2431 = vunpack.c.l.b16 %v1611
        %v2432 = vunpack.c.h.b16 %v1611
        %v2433 = vunpack.c.l.b16 %v1612
        %v2434 = vunpack.c.h.b16 %v1612
        %v2435 = vunpack.c.l.b16 %v1613
        %v2436 = vunpack.c.h.b16 %v1613
        %v2437 = vunpack.c.l.b16 %v1614
        %v2438 = vunpack.c.h.b16 %v1614
        %v2439 = vunpack.c.l.b16 %v1615
        %v2440 = vunpack.c.h.b16 %v1615
        %v2441 = vunpack.c.l.b16 %v1616
        %v2442 = vunpack.c.h.b16 %v1616
        %v2443 = vunpack.c.l.b16 %v1617
        %v2444 = vunpack.c.h.b16 %v1617
        %v2445 = vunpack.c.l.b16 %v1618
        %v2446 = vunpack.c.h.b16 %v1618
        %v2447 = vunpack.c.l.b16 %v1619
        %v2448 = vunpack.c.h.b16 %v1619
        %v2449 = vunpack.c.l.b16 %v1620
        %v2450 = vunpack.c.h.b16 %v1620
        %v2451 = vunpack.c.l.b16 %v1621
        %v2452 = vunpack.c.h.b16 %v1621
        %v2453 = vunpack.c.l.b16 %v1622
        %v2454 = vunpack.c.h.b16 %v1622
        %v2455 = vunpack.c.l.b16 %v1623
        %v2456 = vunpack.c.h.b16 %v1623
        %v2457 = vunpack.c.l.b16 %v1624
        %v2458 = vunpack.c.h.b16 %v1624
        %v2459 = vunpack.c.l.b16 %v1625
        %v2460 = vunpack.c.h.b16 %v1625
        %v2461 = vunpack.c.l.b16 %v1626
        %v2462 = vunpack.c.h.b16 %v1626
        %v2463 = vunpack.c.l.b16 %v1627
        %v2464 = vunpack.c.h.b16 %v1627
        %v2465 = vunpack.c.l.b16 %v1628
        %v2466 = vunpack.c.h.b16 %v1628
        %v2467 = vunpack.c.l.b16 %v1629
        %v2468 = vunpack.c.h.b16 %v1629
        %v2469 = vunpack.c.l.b16 %v1630
        %v2470 = vunpack.c.h.b16 %v1630
        %v2471 = vunpack.c.l.b16 %v1631
        %v2472 = vunpack.c.h.b16 %v1631
        %v2473 = vunpack.c.l.b16 %v1632
        %v2474 = vunpack.c.h.b16 %v1632
        %v2475 = vunpack.c.l.b16 %v1633
        %v2476 = vunpack.c.h.b16 %v1633
        %v2477 = vunpack.c.l.b16 %v1634
        %v2478 = vunpack.c.h.b16 %v1634
        %v2479 = vunpack.c.l.b16 %v1635
        %v2480 = vunpack.c.h.b16 %v1635
        %v2481 = vunpack.c.l.b16 %v1636
        %v2482 = vunpack.c.h.b16 %v1636
        %v2483 = vunpack.c.l.b16 %v1637
        %v2484 = vunpack.c.h.b16 %v1637
        %v2485 = vunpack.c.l.b16 %v1638
        %v2486 = vunpack.c.h.b16 %v1638
        %v2487 = vunpack.c.l.b16 %v1639
        %v2488 = vunpack.c.h.b16 %v1639
        %v2489 = vunpack.c.l.b16 %v1640
        %v2490 = vunpack.c.h.b16 %v1640
        %v2491 = vunpack.c.l.b16 %v1641
        %v2492 = vunpack.c.h.b16 %v1641
        %v2493 = vunpack.c.l.b16 %v1642
        %v2494 = vunpack.c.h.b16 %v1642
        %v2495 = vunpack.c.l.b16 %v1643
        %v2496 = vunpack.c.h.b16 %v1643
        %v2497 = vunpack.c.l.b16 %v1644
        %v2498 = vunpack.c.h.b16 %v1644
        %v2499 = vunpack.c.l.b16 %v1645
        %v2500 = vunpack.c.h.b16 %v1645
        %v2501 = vunpack.c.l.b16 %v1646
        %v2502 = vunpack.c.h.b16 %v1646
        %v2503 = vunpack.c.l.b16 %v1647
        %v2504 = vunpack.c.h.b16 %v1647
        %v2505 = vunpack.c.l.b16 %v1648
        %v2506 = vunpack.c.h.b16 %v1648
        %v2507 = vunpack.c.l.b16 %v1649
        %v2508 = vunpack.c.h.b16 %v1649
        %v2509 = vunpack.c.l.b16 %v1650
        %v2510 = vunpack.c.h.b16 %v1650
        %v2511 = vunpack.c.l.b16 %v1651
        %v2512 = vunpack.c.h.b16 %v1651
        %v2513 = vunpack.c.l.b16 %v1652
        %v2514 = vunpack.c.h.b16 %v1652
        %v2515 = vunpack.c.l.b16 %v1653
        %v2516 = vunpack.c.h.b16 %v1653
        %v2517 = vunpack.c.l.b16 %v1654
        %v2518 = vunpack.c.h.b16 %v1654
        %v2519 = vunpack.c.l.b16 %v1655
        %v2520 = vunpack.c.h.b16 %v1655
        %v2521 = vunpack.c.l.b16 %v1656
        %v2522 = vunpack.c.h.b16 %v1656
        %v2523 = vunpack.c.l.b16 %v1657
        %v2524 = vunpack.c.h.b16 %v1657
        %v2525 = vunpack.c.l.b16 %v1658
        %v2526 = vunpack.c.h.b16 %v1658
        %v2527 = vunpack.c.l.b16 %v1659
        %v2528 = vunpack.c.h.b16 %v1659
        %v2529 = vunpack.c.l.b16 %v1660
        %v2530 = vunpack.c.h.b16 %v1660
        %v2531 = vunpack.c.l.b16 %v1661
        %v2532 = vunpack.c.h.b16 %v1661
        %v2533 = vunpack.c.l.b16 %v1662
        %v2534 = vunpack.c.h.b16 %v1662
        %v2535 = vunpack.c.l.b16 %v1663
        %v2536 = vunpack.c.h.b16 %v1663
        %v2537 = vunpack.c.l.b16 %v1664
        %v2538 = vunpack.c.h.b16 %v1664
        %v2539 = vunpack.c.l.b16 %v1665
        %v2540 = vunpack.c.h.b16 %v1665
        %v2541 = vunpack.c.l.b16 %v1666
        %v2542 = vunpack.c.h.b16 %v1666
        %v2543 = vunpack.c.l.b16 %v1667
        %v2544 = vunpack.c.h.b16 %v1667
        %v2545 = vunpack.c.l.b16 %v1668
        %v2546 = vunpack.c.h.b16 %v1668
        %v2547 = vunpack.c.l.b16 %v1669
        %v2548 = vunpack.c.h.b16 %v1669
        %v2549 = vunpack.c.l.b16 %v1670
        %v2550 = vunpack.c.h.b16 %v1670
        %v2551 = vunpack.c.l.b16 %v1671
        %v2552 = vunpack.c.h.b16 %v1671
        %v2553 = vunpack.c.l.b16 %v1672
        %v2554 = vunpack.c.h.b16 %v1672
        %v2555 = vunpack.c.l.b16 %v1673
        %v2556 = vunpack.c.h.b16 %v1673
        %v2557 = vunpack.c.l.b16 %v1674
        %v2558 = vunpack.c.h.b16 %v1674
        %v2559 = vunpack.c.l.b16 %v1675
        %v2560 = vunpack.c.h.b16 %v1675
        %v2561 = vunpack.c.l.b16 %v1676
        %v2562 = vunpack.c.h.b16 %v1676
        %v2563 = vunpack.c.l.b16 %v1677
        %v2564 = vunpack.c.h.b16 %v1677
        %v2565 = vunpack.c.l.b16 %v1678
        %v2566 = vunpack.c.h.b16 %v1678
        %v2567 = vunpack.c.l.b16 %v1679
        %v2568 = vunpack.c.h.b16 %v1679
        %v2569 = vunpack.c.l.b16 %v1680
        %v2570 = vunpack.c.h.b16 %v1680
        %v2571 = vunpack.c.l.b16 %v1681
        %v2572 = vunpack.c.h.b16 %v1681
        %v2573 = vunpack.c.l.b16 %v1682
        %v2574 = vunpack.c.h.b16 %v1682
        %v2575 = vunpack.c.l.b16 %v1683
        %v2576 = vunpack.c.h.b16 %v1683
        %v2577 = vunpack.c.l.b16 %v1684
        %v2578 = vunpack.c.h.b16 %v1684
        %v2579 = vunpack.c.l.b16 %v1685
        %v2580 = vunpack.c.h.b16 %v1685
        %v2581 = vunpack.c.l.b16 %v1686
        %v2582 = vunpack.c.h.b16 %v1686
        %v2583 = vunpack.c.l.b16 %v1687
        %v2584 = vunpack.c.h.b16 %v1687
        %v2585 = vunpack.c.l.b16 %v1688
        %v2586 = vunpack.c.h.b16 %v1688
        %v2587 = vunpack.c.l.b16 %v1689
        %v2588 = vunpack.c.h.b16 %v1689
        %v2589 = vunpack.c.l.b16 %v1690
        %v2590 = vunpack.c.h.b16 %v1690
        %v2591 = vunpack.c.l.b16 %v1691
        %v2592 = vunpack.c.h.b16 %v1691
        %v2593 = vunpack.c.l.b16 %v1692
        %v2594 = vunpack.c.h.b16 %v1692
        %v2595 = vunpack.c.l.b16 %v1693
        %v2596 = vunpack.c.h.b16 %v1693
        %v2597 = vunpack.c.l.b16 %v1694
        %v2598 = vunpack.c.h.b16 %v1694
        %v2599 = vunpack.c.l.b16 %v1695
        %v2600 = vunpack.c.h.b16 %v1695
        %v2601 = vunpack.c.l.b16 %v1696
        %v2602 = vunpack.c.h.b16 %v1696
        %v2603 = vunpack.c.l.b16 %v1697
        %v2604 = vunpack.c.h.b16 %v1697
        %v2605 = vunpack.c.l.b16 %v1698
        %v2606 = vunpack.c.h.b16 %v1698
        %v2607 = vunpack.c.l.b16 %v1699
        %v2608 = vunpack.c.h.b16 %v1699
        %v2609 = vunpack.c.l.b16 %v1700
        %v2610 = vunpack.c.h.b16 %v1700
        %v2611 = vunpack.c.l.b16 %v1701
        %v2612 = vunpack.c.h.b16 %v1701
        %v2613 = vunpack.c.l.b16 %v1702
        %v2614 = vunpack.c.h.b16 %v1702
        %v2615 = vunpack.c.l.b16 %v1703
        %v2616 = vunpack.c.h.b16 %v1703
        %v2617 = vunpack.c.l.b16 %v1704
        %v2618 = vunpack.c.h.b16 %v1704
        %v2619 = vunpack.c.l.b16 %v1705
        %v2620 = vunpack.c.h.b16 %v1705
        %v2621 = vunpack.c.l.b16 %v1706
        %v2622 = vunpack.c.h.b16 %v1706
        %v2623 = vunpack.c.l.b16 %v1707
        %v2624 = vunpack.c.h.b16 %v1707
        %v2625 = vunpack.c.l.b16 %v1708
        %v2626 = vunpack.c.h.b16 %v1708
        %v2627 = vunpack.c.l.b16 %v1709
        %v2628 = vunpack.c.h.b16 %v1709
        %v2629 = vunpack.c.l.b16 %v1710
        %v2630 = vunpack.c.h.b16 %v1710
        %v2631 = vunpack.c.l.b16 %v1711
        %v2632 = vunpack.c.h.b16 %v1711
        %v2633 = vunpack.c.l.b16 %v1712
        %v2634 = vunpack.c.h.b16 %v1712
        %v2635 = vunpack.c.l.b16 %v1713
        %v2636 = vunpack.c.h.b16 %v1713
        %v2637 = vunpack.c.l.b16 %v1714
        %v2638 = vunpack.c.h.b16 %v1714
        %v2639 = vunpack.c.l.b16 %v1715
        %v2640 = vunpack.c.h.b16 %v1715
        %v2641 = vunpack.c.l.b16 %v1716
        %v2642 = vunpack.c.h.b16 %v1716
        %v2643 = vunpack.c.l.b16 %v1717
        %v2644 = vunpack.c.h.b16 %v1717
        %v2645 = vunpack.c.l.b16 %v1718
        %v2646 = vunpack.c.h.b16 %v1718
        %v2647 = vunpack.c.l.b16 %v1719
        %v2648 = vunpack.c.h.b16 %v1719
        %v2649 = vunpack.c.l.b16 %v1720
        %v2650 = vunpack.c.h.b16 %v1720
        %v2651 = vunpack.c.l.b16 %v1721
        %v2652 = vunpack.c.h.b16 %v1721
        %v2653 = vunpack.c.l.b16 %v1722
        %v2654 = vunpack.c.h.b16 %v1722
        %v2655 = vunpack.c.l.b16 %v1723
        %v2656 = vunpack.c.h.b16 %v1723
        %v2657 = vunpack.c.l.b16 %v1724
        %v2658 = vunpack.c.h.b16 %v1724
        %v2659 = vunpack.c.l.b16 %v1725
        %v2660 = vunpack.c.h.b16 %v1725
        %v2661 = vunpack.c.l.b16 %v1726
        %v2662 = vunpack.c.h.b16 %v1726
        %v2663 = vunpack.c.l.b16 %v1727
        %v2664 = vunpack.c.h.b16 %v1727
        %v2665 = vunpack.c.l.b16 %v1728
        %v2666 = vunpack.c.h.b16 %v1728
        %v2667 = vunpack.c.l.b16 %v1729
        %v2668 = vunpack.c.h.b16 %v1729
        %v2669 = vunpack.c.l.b16 %v1730
        %v2670 = vunpack.c.h.b16 %v1730
        %v2671 = vunpack.c.l.b16 %v1731
        %v2672 = vunpack.c.h.b16 %v1731
        %v2673 = vunpack.c.l.b16 %v1732
        %v2674 = vunpack.c.h.b16 %v1732
        %v2675 = vunpack.c.l.b16 %v1733
        %v2676 = vunpack.c.h.b16 %v1733
        %v2677 = vunpack.c.l.b16 %v1734
        %v2678 = vunpack.c.h.b16 %v1734
        %v2679 = vunpack.c.l.b16 %v1735
        %v2680 = vunpack.c.h.b16 %v1735
        %v2681 = vunpack.c.l.b16 %v1736
        %v2682 = vunpack.c.h.b16 %v1736
        %v2683 = vunpack.c.l.b16 %v1737
        %v2684 = vunpack.c.h.b16 %v1737
        %v2685 = vunpack.c.l.b16 %v1738
        %v2686 = vunpack.c.h.b16 %v1738
        %v2687 = vunpack.c.l.b16 %v1739
        %v2688 = vunpack.c.h.b16 %v1739
        %v2689 = vunpack.c.l.b16 %v1740
        %v2690 = vunpack.c.h.b16 %v1740
        %v2691 = vunpack.c.l.b16 %v1741
        %v2692 = vunpack.c.h.b16 %v1741
        %v2693 = vunpack.c.l.b16 %v1742
        %v2694 = vunpack.c.h.b16 %v1742
        %v2695 = vunpack.c.l.b16 %v1743
        %v2696 = vunpack.c.h.b16 %v1743
        %v2697 = vunpack.c.l.b16 %v1744
        %v2698 = vunpack.c.h.b16 %v1744
        %v2699 = vunpack.c.l.b16 %v1745
        %v2700 = vunpack.c.h.b16 %v1745
        %v2701 = vunpack.c.l.b16 %v1746
        %v2702 = vunpack.c.h.b16 %v1746
        %v2703 = vunpack.c.l.b16 %v1747
        %v2704 = vunpack.c.h.b16 %v1747
        %v2705 = vunpack.c.l.b16 %v1748
        %v2706 = vunpack.c.h.b16 %v1748
        %v2707 = vunpack.c.l.b16 %v1749
        %v2708 = vunpack.c.h.b16 %v1749
        %v2709 = vunpack.c.l.b16 %v1750
        %v2710 = vunpack.c.h.b16 %v1750
        %v2711 = vunpack.c.l.b16 %v1751
        %v2712 = vunpack.c.h.b16 %v1751
        %v2713 = vunpack.c.l.b16 %v1752
        %v2714 = vunpack.c.h.b16 %v1752
        %v2715 = vunpack.c.l.b16 %v1753
        %v2716 = vunpack.c.h.b16 %v1753
        %v2717 = vunpack.c.l.b16 %v1754
        %v2718 = vunpack.c.h.b16 %v1754
        %v2719 = vunpack.c.l.b16 %v1755
        %v2720 = vunpack.c.h.b16 %v1755
        %v2721 = vunpack.c.l.b16 %v1756
        %v2722 = vunpack.c.h.b16 %v1756
        %v2723 = vunpack.c.l.b16 %v1757
        %v2724 = vunpack.c.h.b16 %v1757
        %v2725 = vunpack.c.l.b16 %v1758
        %v2726 = vunpack.c.h.b16 %v1758
        %v2727 = vunpack.c.l.b16 %v1759
        %v2728 = vunpack.c.h.b16 %v1759
        %v2729 = vunpack.c.l.b16 %v1760
        %v2730 = vunpack.c.h.b16 %v1760
        %v2731 = vunpack.c.l.b16 %v1761
        %v2732 = vunpack.c.h.b16 %v1761
        %v2733 = vunpack.c.l.b16 %v1762
        %v2734 = vunpack.c.h.b16 %v1762
        %v2735 = vunpack.c.l.b16 %v1763
        %v2736 = vunpack.c.h.b16 %v1763
        %v2737 = vunpack.c.l.b16 %v1764
        %v2738 = vunpack.c.h.b16 %v1764
        %v2739 = vunpack.c.l.b16 %v1765
        %v2740 = vunpack.c.h.b16 %v1765
        %v2741 = vunpack.c.l.b16 %v1766
        %v2742 = vunpack.c.h.b16 %v1766
        %v2743 = vunpack.c.l.b16 %v1767
        %v2744 = vunpack.c.h.b16 %v1767
        %v2745 = vunpack.c.l.b16 %v1768
        %v2746 = vunpack.c.h.b16 %v1768
        %v2747 = vunpack.c.l.b16 %v1769
        %v2748 = vunpack.c.h.b16 %v1769
        %v2749 = vunpack.c.l.b16 %v1770
        %v2750 = vunpack.c.h.b16 %v1770
        %v2751 = vunpack.c.l.b16 %v1771
        %v2752 = vunpack.c.h.b16 %v1771
        %v2753 = vunpack.c.l.b16 %v1772
        %v2754 = vunpack.c.h.b16 %v1772
        %v2755 = vunpack.c.l.b16 %v1773
        %v2756 = vunpack.c.h.b16 %v1773
        %v2757 = vunpack.c.l.b16 %v1774
        %v2758 = vunpack.c.h.b16 %v1774
        %v2759 = vunpack.c.l.b16 %v1775
        %v2760 = vunpack.c.h.b16 %v1775
        %v2761 = vunpack.c.l.b16 %v1776
        %v2762 = vunpack.c.h.b16 %v1776
        %v2763 = vunpack.c.l.b16 %v1777
        %v2764 = vunpack.c.h.b16 %v1777
        %v2765 = vunpack.c.l.b16 %v1778
        %v2766 = vunpack.c.h.b16 %v1778
        %v2767 = vunpack.c.l.b16 %v1779
        %v2768 = vunpack.c.h.b16 %v1779
        %v2769 = vunpack.c.l.b16 %v1780
        %v2770 = vunpack.c.h.b16 %v1780
        %v2771 = vunpack.c.l.b16 %v1781
        %v2772 = vunpack.c.h.b16 %v1781
        %v2773 = vunpack.c.l.b16 %v1782
        %v2774 = vunpack.c.h.b16 %v1782
        %v2775 = vunpack.c.l.b16 %v1783
        %v2776 = vunpack.c.h.b16 %v1783
        %v2777 = vunpack.c.l.b16 %v1784
        %v2778 = vunpack.c.h.b16 %v1784
        %v2779 = vunpack.c.l.b16 %v1785
        %v2780 = vunpack.c.h.b16 %v1785
        %v2781 = vunpack.c.l.b16 %v1786
        %v2782 = vunpack.c.h.b16 %v1786
        %v2783 = vunpack.c.l.b16 %v1787
        %v2784 = vunpack.c.h.b16 %v1787
        %v2785 = vunpack.c.l.b16 %v1788
        %v2786 = vunpack.c.h.b16 %v1788
        %v2787 = vunpack.c.l.b16 %v1789
        %v2788 = vunpack.c.h.b16 %v1789
        %v2789 = vunpack.c.l.b16 %v1790
        %v2790 = vunpack.c.h.b16 %v1790
        %v2791 = vunpack.c.l.b16 %v1791
        %v2792 = vunpack.c.h.b16 %v1791
        %v2793 = vunpack.c.l.b16 %v1792
        %v2794 = vunpack.c.h.b16 %v1792
        %v2795 = vunpack.c.l.b16 %v1793
        %v2796 = vunpack.c.h.b16 %v1793
        %v2797 = vunpack.c.l.b16 %v1794
        %v2798 = vunpack.c.h.b16 %v1794
        %v2799 = vunpack.c.l.b16 %v1795
        %v2800 = vunpack.c.h.b16 %v1795
        %v2801 = vunpack.c.l.b16 %v1796
        %v2802 = vunpack.c.h.b16 %v1796
        %v2803 = vunpack.c.l.b16 %v1797
        %v2804 = vunpack.c.h.b16 %v1797
        %v2805 = vunpack.c.l.b16 %v1798
        %v2806 = vunpack.c.h.b16 %v1798
        %v2807 = vunpack.c.l.b16 %v1799
        %v2808 = vunpack.c.h.b16 %v1799
        %v2809 = vunpack.c.l.b16 %v1800
        %v2810 = vunpack.c.h.b16 %v1800
        %v2811 = vunpack.c.l.b16 %v1801
        %v2812 = vunpack.c.h.b16 %v1801
        %v2813 = vunpack.c.l.b16 %v1802
        %v2814 = vunpack.c.h.b16 %v1802
        %v2815 = vunpack.c.l.b16 %v1803
        %v2816 = vunpack.c.h.b16 %v1803
        %v2817 = vunpack.c.l.b16 %v1804
        %v2818 = vunpack.c.h.b16 %v1804
        %v2819 = vunpack.c.l.b16 %v1805
        %v2820 = vunpack.c.h.b16 %v1805
        %v2821 = vunpack.c.l.b16 %v1806
        %v2822 = vunpack.c.h.b16 %v1806
        %v2823 = vunpack.c.l.b16 %v1807
        %v2824 = vunpack.c.h.b16 %v1807
        %v2825 = vunpack.c.l.b16 %v1808
        %v2826 = vunpack.c.h.b16 %v1808
        %v2827 = vunpack.c.l.b16 %v1809
        %v2828 = vunpack.c.h.b16 %v1809
        %v2829 = vunpack.c.l.b16 %v1810
        %v2830 = vunpack.c.h.b16 %v1810
        %v2831 = vunpack.c.l.b16 %v1811
        %v2832 = vunpack.c.h.b16 %v1811
        %v2833 = vunpack.c.l.b16 %v1812
        %v2834 = vunpack.c.h.b16 %v1812
        %v2835 = vunpack.c.l.b16 %v1813
        %v2836 = vunpack.c.h.b16 %v1813
        %v2837 = vunpack.c.l.b16 %v1814
        %v2838 = vunpack.c.h.b16 %v1814
        %v2839 = vunpack.c.l.b16 %v1815
        %v2840 = vunpack.c.h.b16 %v1815
        %v2841 = vunpack.c.l.b16 %v1816
        %v2842 = vunpack.c.h.b16 %v1816
        %v2843 = vunpack.c.l.b16 %v1817
        %v2844 = vunpack.c.h.b16 %v1817
        %v2845 = vunpack.c.l.b16 %v1818
        %v2846 = vunpack.c.h.b16 %v1818
        %v2847 = vunpack.c.l.b16 %v1819
        %v2848 = vunpack.c.h.b16 %v1819
        %v2849 = vunpack.c.l.b16 %v1820
        %v2850 = vunpack.c.h.b16 %v1820
        %v2851 = vunpack.c.l.b16 %v1821
        %v2852 = vunpack.c.h.b16 %v1821
        %v2853 = vunpack.c.l.b16 %v1822
        %v2854 = vunpack.c.h.b16 %v1822
        %v2855 = vunpack.c.l.b16 %v1823
        %v2856 = vunpack.c.h.b16 %v1823
        %v2857 = vunpack.c.l.b16 %v1824
        %v2858 = vunpack.c.h.b16 %v1824
        %v2859 = vunpack.c.l.b16 %v1825
        %v2860 = vunpack.c.h.b16 %v1825
        %v2861 = vunpack.c.l.b16 %v1826
        %v2862 = vunpack.c.h.b16 %v1826
        %v2863 = vunpack.c.l.b16 %v1827
        %v2864 = vunpack.c.h.b16 %v1827
        %v2865 = vunpack.c.l.b16 %v1828
        %v2866 = vunpack.c.h.b16 %v1828
        %v2867 = vunpack.c.l.b16 %v1829
        %v2868 = vunpack.c.h.b16 %v1829
        %v2869 = vunpack.c.l.b16 %v1830
        %v2870 = vunpack.c.h.b16 %v1830
        %v2871 = vunpack.c.l.b16 %v1831
        %v2872 = vunpack.c.h.b16 %v1831
        %v2873 = vunpack.c.l.b16 %v1832
        %v2874 = vunpack.c.h.b16 %v1832
        %v2875 = vunpack.c.l.b16 %v1833
        %v2876 = vunpack.c.h.b16 %v1833
        %v2877 = vunpack.c.l.b16 %v1834
        %v2878 = vunpack.c.h.b16 %v1834
        %v2879 = vunpack.c.l.b16 %v1835
        %v2880 = vunpack.c.h.b16 %v1835
        %v2881 = vunpack.c.l.b16 %v1836
        %v2882 = vunpack.c.h.b16 %v1836
        %v2883 = vunpack.c.l.b16 %v1837
        %v2884 = vunpack.c.h.b16 %v1837
        %v2885 = vunpack.c.l.b16 %v1838
        %v2886 = vunpack.c.h.b16 %v1838
        %v2887 = vunpack.c.l.b16 %v1839
        %v2888 = vunpack.c.h.b16 %v1839
        %v2889 = vunpack.c.l.b16 %v1840
        %v2890 = vunpack.c.h.b16 %v1840
        %v2891 = vunpack.c.l.b16 %v1841
        %v2892 = vunpack.c.h.b16 %v1841
        %v2893 = vunpack.c.l.b16 %v1842
        %v2894 = vunpack.c.h.b16 %v1842
        %v2895 = vunpack.c.l.b16 %v1843
        %v2896 = vunpack.c.h.b16 %v1843
        %v2897 = vunpack.c.l.b16 %v1844
        %v2898 = vunpack.c.h.b16 %v1844
        %v2899 = vunpack.c.l.b16 %v1845
        %v2900 = vunpack.c.h.b16 %v1845
        %v2901 = vunpack.c.l.b16 %v1846
        %v2902 = vunpack.c.h.b16 %v1846
        %v2903 = vunpack.c.l.b16 %v1847
        %v2904 = vunpack.c.h.b16 %v1847
        %v2905 = vunpack.c.l.b16 %v1848
        %v2906 = vunpack.c.h.b16 %v1848
        %v2907 = vunpack.c.l.b16 %v1849
        %v2908 = vunpack.c.h.b16 %v1849
        %v2909 = vunpack.c.l.b16 %v1850
        %v2910 = vunpack.c.h.b16 %v1850
        %v2911 = vunpack.c.l.b16 %v1851
        %v2912 = vunpack.c.h.b16 %v1851
        %v2913 = vunpack.c.l.b16 %v1852
        %v2914 = vunpack.c.h.b16 %v1852
        %v2915 = vunpack.c.l.b16 %v1853
        %v2916 = vunpack.c.h.b16 %v1853
        %v2917 = vunpack.c.l.b16 %v1854
        %v2918 = vunpack.c.h.b16 %v1854
        %v2919 = vunpack.c.l.b16 %v1855
        %v2920 = vunpack.c.h.b16 %v1855
        %v2921 = vunpack.c.l.b16 %v1856
        %v2922 = vunpack.c.h.b16 %v1856
        %v2923 = vunpack.c.l.b16 %v1857
        %v2924 = vunpack.c.h.b16 %v1857
        %v2925 = vunpack.c.l.b16 %v1858
        %v2926 = vunpack.c.h.b16 %v1858
        %v2927 = vunpack.c.l.b16 %v1859
        %v2928 = vunpack.c.h.b16 %v1859
        %v2929 = vunpack.c.l.b16 %v1860
        %v2930 = vunpack.c.h.b16 %v1860
        %v2931 = vunpack.c.l.b16 %v1861
        %v2932 = vunpack.c.h.b16 %v1861
        %v2933 = vunpack.c.l.b16 %v1862
        %v2934 = vunpack.c.h.b16 %v1862
        %v2935 = vunpack.c.l.b16 %v1863
        %v2936 = vunpack.c.h.b16 %v1863
        %v2937 = vunpack.c.l.b16 %v1864
        %v2938 = vunpack.c.h.b16 %v1864
        %v2939 = vunpack.c.l.b16 %v1865
        %v2940 = vunpack.c.h.b16 %v1865
        %v2941 = vunpack.c.l.b16 %v1866
        %v2942 = vunpack.c.h.b16 %v1866
        %v2943 = vunpack.c.l.b16 %v1867
        %v2944 = vunpack.c.h.b16 %v1867
        %v2945 = vunpack.c.l.b16 %v1868
        %v2946 = vunpack.c.h.b16 %v1868
        %v2947 = vunpack.c.l.b16 %v1869
        %v2948 = vunpack.c.h.b16 %v1869
        %v2949 = vunpack.c.l.b16 %v1870
        %v2950 = vunpack.c.h.b16 %v1870
        %v2951 = vunpack.c.l.b16 %v1871
        %v2952 = vunpack.c.h.b16 %v1871
        %v2953 = vunpack.c.l.b16 %v1872
        %v2954 = vunpack.c.h.b16 %v1872
        %v2955 = vunpack.c.l.b16 %v1873
        %v2956 = vunpack.c.h.b16 %v1873
        %v2957 = vunpack.c.l.b16 %v1874
        %v2958 = vunpack.c.h.b16 %v1874
        %v2959 = vunpack.c.l.b16 %v1875
        %v2960 = vunpack.c.h.b16 %v1875
        %v2961 = vunpack.c.l.b16 %v1876
        %v2962 = vunpack.c.h.b16 %v1876
        %v2963 = vunpack.c.l.b16 %v1877
        %v2964 = vunpack.c.h.b16 %v1877
        %v2965 = vunpack.c.l.b16 %v1878
        %v2966 = vunpack.c.h.b16 %v1878
        %v2967 = vunpack.c.l.b16 %v1879
        %v2968 = vunpack.c.h.b16 %v1879
        %v2969 = vunpack.c.l.b16 %v1880
        %v2970 = vunpack.c.h.b16 %v1880
        %v2971 = vunpack.c.l.b16 %v1881
        %v2972 = vunpack.c.h.b16 %v1881
        %v2973 = vunpack.c.l.b16 %v1882
        %v2974 = vunpack.c.h.b16 %v1882
        %v2975 = vunpack.c.l.b16 %v1883
        %v2976 = vunpack.c.h.b16 %v1883
        %v2977 = vunpack.c.l.b16 %v1884
        %v2978 = vunpack.c.h.b16 %v1884
        %v2979 = vunpack.c.l.b16 %v1885
        %v2980 = vunpack.c.h.b16 %v1885
        %v2981 = vunpack.c.l.b16 %v1886
        %v2982 = vunpack.c.h.b16 %v1886
        %v2983 = vunpack.c.l.b16 %v1887
        %v2984 = vunpack.c.h.b16 %v1887
        %v2985 = vunpack.c.l.b16 %v1888
        %v2986 = vunpack.c.h.b16 %v1888
        %v2987 = vunpack.c.l.b16 %v1889
        %v2988 = vunpack.c.h.b16 %v1889
        %v2989 = vunpack.c.l.b16 %v1890
        %v2990 = vunpack.c.h.b16 %v1890
        %v2991 = vunpack.c.l.b16 %v1891
        %v2992 = vunpack.c.h.b16 %v1891
        %v2993 = vunpack.c.l.b16 %v1892
        %v2994 = vunpack.c.h.b16 %v1892
        %v2995 = vunpack.c.l.b16 %v1893
        %v2996 = vunpack.c.h.b16 %v1893
        %v2997 = vunpack.c.l.b16 %v1894
        %v2998 = vunpack.c.h.b16 %v1894
        %v2999 = vunpack.c.l.b16 %v1895
        %v3000 = vunpack.c.h.b16 %v1895
        %v3001 = vunpack.c.l.b16 %v1896
        %v3002 = vunpack.c.h.b16 %v1896
        %v3003 = vunpack.c.l.b16 %v1897
        %v3004 = vunpack.c.h.b16 %v1897
        %v3005 = vunpack.c.l.b16 %v1898
        %v3006 = vunpack.c.h.b16 %v1898
        %v3007 = vunpack.c.l.b16 %v1899
        %v3008 = vunpack.c.h.b16 %v1899
        %v3009 = vunpack.c.l.b16 %v1900
        %v3010 = vunpack.c.h.b16 %v1900
        %v3011 = vunpack.c.l.b16 %v1901
        %v3012 = vunpack.c.h.b16 %v1901
        %v3013 = vunpack.c.l.b16 %v1902
        %v3014 = vunpack.c.h.b16 %v1902
        %v3015 = vunpack.c.l.b16 %v1903
        %v3016 = vunpack.c.h.b16 %v1903
        %v3017 = vunpack.c.l.b16 %v1904
        %v3018 = vunpack.c.h.b16 %v1904
        %v3019 = vunpack.c.l.b16 %v1905
        %v3020 = vunpack.c.h.b16 %v1905
        %v3021 = vunpack.c.l.b16 %v1906
        %v3022 = vunpack.c.h.b16 %v1906
        %v3023 = vunpack.c.l.b16 %v1907
        %v3024 = vunpack.c.h.b16 %v1907
        %v3025 = vunpack.c.l.b16 %v1908
        %v3026 = vunpack.c.h.b16 %v1908
        %v3027 = vunpack.c.l.b16 %v1909
        %v3028 = vunpack.c.h.b16 %v1909
        %v3029 = vunpack.c.l.b16 %v1910
        %v3030 = vunpack.c.h.b16 %v1910
        %v3031 = vunpack.c.l.b16 %v1911
        %v3032 = vunpack.c.h.b16 %v1911
        %v3033 = vunpack.c.l.b16 %v1912
        %v3034 = vunpack.c.h.b16 %v1912
        %v3035 = vunpack.c.l.b16 %v1913
        %v3036 = vunpack.c.h.b16 %v1913
        %v3037 = vunpack.c.l.b16 %v1914
        %v3038 = vunpack.c.h.b16 %v1914
        %v3039 = vunpack.c.l.b16 %v1915
        %v3040 = vunpack.c.h.b16 %v1915
        %v3041 = vunpack.c.l.b16 %v1916
        %v3042 = vunpack.c.h.b16 %v1916
        %v3043 = vunpack.c.l.b16 %v1917
        %v3044 = vunpack.c.h.b16 %v1917
        %v3045 = vunpack.c.l.b16 %v1918
        %v3046 = vunpack.c.h.b16 %v1918
        %v3047 = vunpack.c.l.b16 %v1919
        %v3048 = vunpack.c.h.b16 %v1919
        %v3049 = vunpack.c.l.b16 %v1920
        %v3050 = vunpack.c.h.b16 %v1920
        %v3051 = vunpack.c.l.b16 %v1921
        %v3052 = vunpack.c.h.b16 %v1921
        %v3053 = vunpack.c.l.b16 %v1922
        %v3054 = vunpack.c.h.b16 %v1922
        %v3055 = vunpack.c.l.b16 %v1923
        %v3056 = vunpack.c.h.b16 %v1923
        %v3057 = vunpack.c.l.b16 %v1924
        %v3058 = vunpack.c.h.b16 %v1924
        %v3059 = vunpack.c.l.b16 %v1925
        %v3060 = vunpack.c.h.b16 %v1925
        %v3061 = vunpack.c.l.b16 %v1926
        %v3062 = vunpack.c.h.b16 %v1926
        %v3063 = vunpack.c.l.b16 %v1927
        %v3064 = vunpack.c.h.b16 %v1927
        %v3065 = vunpack.c.l.b16 %v1928
        %v3066 = vunpack.c.h.b16 %v1928
        %v3067 = vunpack.c.l.b16 %v1929
        %v3068 = vunpack.c.h.b16 %v1929
        %v3069 = vunpack.c.l.b16 %v1930
        %v3070 = vunpack.c.h.b16 %v1930
        %v3071 = vunpack.c.l.b16 %v1931
        %v3072 = vunpack.c.h.b16 %v1931
        %v3073 = vunpack.c.l.b16 %v1932
        %v3074 = vunpack.c.h.b16 %v1932
        %v3075 = vunpack.c.l.b16 %v1933
        %v3076 = vunpack.c.h.b16 %v1933
        %v3077 = vunpack.c.l.b16 %v1934
        %v3078 = vunpack.c.h.b16 %v1934
        %v3079 = vunpack.c.l.b16 %v1935
        %v3080 = vunpack.c.h.b16 %v1935
        %v3081 = vunpack.c.l.b16 %v1936
        %v3082 = vunpack.c.h.b16 %v1936
        %v3083 = vunpack.c.l.b16 %v1937
        %v3084 = vunpack.c.h.b16 %v1937
        %v3085 = vunpack.c.l.b16 %v1938
        %v3086 = vunpack.c.h.b16 %v1938
        %v3087 = vunpack.c.l.b16 %v1939
        %v3088 = vunpack.c.h.b16 %v1939
        %v3089 = vunpack.c.l.b16 %v1940
        %v3090 = vunpack.c.h.b16 %v1940
        %v3091 = vunpack.c.l.b16 %v1941
        %v3092 = vunpack.c.h.b16 %v1941
        %v3093 = vunpack.c.l.b16 %v1942
        %v3094 = vunpack.c.h.b16 %v1942
        %v3095 = vunpack.c.l.b16 %v1943
        %v3096 = vunpack.c.h.b16 %v1943
        %v3097 = vunpack.c.l.b16 %v1944
        %v3098 = vunpack.c.h.b16 %v1944
        %v3099 = vunpack.c.l.b16 %v1945
        %v3100 = vunpack.c.h.b16 %v1945
        %v3101 = vunpack.c.l.b16 %v1946
        %v3102 = vunpack.c.h.b16 %v1946
        %v3103 = vunpack.c.l.b16 %v1947
        %v3104 = vunpack.c.h.b16 %v1947
        %v3105 = vunpack.c.l.b16 %v1948
        %v3106 = vunpack.c.h.b16 %v1948
        %v3107 = vunpack.c.l.b16 %v1949
        %v3108 = vunpack.c.h.b16 %v1949
        %v3109 = vunpack.c.l.b16 %v1950
        %v3110 = vunpack.c.h.b16 %v1950
        %v3111 = vunpack.c.l.b16 %v1951
        %v3112 = vunpack.c.h.b16 %v1951
        %v3113 = vunpack.c.l.b16 %v1952
        %v3114 = vunpack.c.h.b16 %v1952
        %v3115 = vunpack.c.l.b16 %v1953
        %v3116 = vunpack.c.h.b16 %v1953
        %v3117 = vunpack.c.l.b16 %v1954
        %v3118 = vunpack.c.h.b16 %v1954
        %v3119 = vunpack.c.l.b16 %v1955
        %v3120 = vunpack.c.h.b16 %v1955
        %v3121 = vunpack.c.l.b16 %v1956
        %v3122 = vunpack.c.h.b16 %v1956
        %v3123 = vunpack.c.l.b16 %v1957
        %v3124 = vunpack.c.h.b16 %v1957
        %v3125 = vunpack.c.l.b16 %v1958
        %v3126 = vunpack.c.h.b16 %v1958
        %v3127 = vunpack.c.l.b16 %v1959
        %v3128 = vunpack.c.h.b16 %v1959
        %v3129 = vunpack.c.l.b16 %v1960
        %v3130 = vunpack.c.h.b16 %v1960
        %v3131 = vunpack.c.l.b16 %v1961
        %v3132 = vunpack.c.h.b16 %v1961
        %v3133 = vunpack.c.l.b16 %v1962
        %v3134 = vunpack.c.h.b16 %v1962
        %v3135 = vunpack.c.l.b16 %v1963
        %v3136 = vunpack.c.h.b16 %v1963
        %v3137 = vunpack.c.l.b16 %v1964
        %v3138 = vunpack.c.h.b16 %v1964
        %v3139 = vpack.c.b16 %v2375, %v2371
        %v3140 = vpack.c.b16 %v2376, %v2372
        %v3141 = vpack.c.b16 %v2377, %v2373
        %v3142 = vpack.c.b16 %v2378, %v2374
        %v3143 = vpack.c.b16 %v2383, %v2379
        %v3144 = vpack.c.b16 %v2384, %v2380
        %v3145 = vpack.c.b16 %v2385, %v2381
        %v3146 = vpack.c.b16 %v2386, %v2382
        %v3147 = vpack.c.b16 %v2391, %v2387
        %v3148 = vpack.c.b16 %v2392, %v2388
        %v3149 = vpack.c.b16 %v2393, %v2389
        %v3150 = vpack.c.b16 %v2394, %v2390
        %v3151 = vpack.c.b16 %v2399, %v2395
        %v3152 = vpack.c.b16 %v2400, %v2396
        %v3153 = vpack.c.b16 %v2401, %v2397
        %v3154 = vpack.c.b16 %v2402, %v2398
        %v3155 = vpack.c.b16 %v2407, %v2403
        %v3156 = vpack.c.b16 %v2408, %v2404
        %v3157 = vpack.c.b16 %v2409, %v2405
        %v3158 = vpack.c.b16 %v2410, %v2406
        %v3159 = vpack.c.b16 %v2415, %v2411
        %v3160 = vpack.c.b16 %v2416, %v2412
        %v3161 = vpack.c.b16 %v2417, %v2413
        %v3162 = vpack.c.b16 %v2418, %v2414
        %v3163 = vpack.c.b16 %v2423, %v2419
        %v3164 = vpack.c.b16 %v2424, %v2420
        %v3165 = vpack.c.b16 %v2425, %v2421
        %v3166 = vpack.c.b16 %v2426, %v2422
        %v3167 = vpack.c.b16 %v2431, %v2427
        %v3168 = vpack.c.b16 %v2432, %v2428
        %v3169 = vpack.c.b16 %v2433, %v2429
        %v3170 = vpack.c.b16 %v2434, %v2430
        %v3171 = vpack.c.b16 %v2439, %v2435
        %v3172 = vpack.c.b16 %v2440, %v2436
        %v3173 = vpack.c.b16 %v2441, %v2437
        %v3174 = vpack.c.b16 %v2442, %v2438
        %v3175 = vpack.c.b16 %v2447, %v2443
        %v3176 = vpack.c.b16 %v2448, %v2444
        %v3177 = vpack.c.b16 %v2449, %v2445
        %v3178 = vpack.c.b16 %v2450, %v2446
        %v3179 = vpack.c.b16 %v2455, %v2451
        %v3180 = vpack.c.b16 %v2456, %v2452
        %v3181 = vpack.c.b16 %v2457, %v2453
        %v3182 = vpack.c.b16 %v2458, %v2454
        %v3183 = vpack.c.b16 %v2463, %v2459
        %v3184 = vpack.c.b16 %v2464, %v2460
        %v3185 = vpack.c.b16 %v2465, %v2461
        %v3186 = vpack.c.b16 %v2466, %v2462
        %v3187 = vpack.c.b16 %v2471, %v2467
        %v3188 = vpack.c.b16 %v2472, %v2468
        %v3189 = vpack.c.b16 %v2473, %v2469
        %v3190 = vpack.c.b16 %v2474, %v2470
        %v3191 = vpack.c.b16 %v2479, %v2475
        %v3192 = vpack.c.b16 %v2480, %v2476
        %v3193 = vpack.c.b16 %v2481, %v2477
        %v3194 = vpack.c.b16 %v2482, %v2478
        %v3195 = vpack.c.b16 %v2487, %v2483
        %v3196 = vpack.c.b16 %v2488, %v2484
        %v3197 = vpack.c.b16 %v2489, %v2485
        %v3198 = vpack.c.b16 %v2490, %v2486
        %v3199 = vpack.c.b16 %v2495, %v2491
        %v3200 = vpack.c.b16 %v2496, %v2492
        %v3201 = vpack.c.b16 %v2497, %v2493
        %v3202 = vpack.c.b16 %v2498, %v2494
        %v3203 = vpack.c.b16 %v2503, %v2499
        %v3204 = vpack.c.b16 %v2504, %v2500
        %v3205 = vpack.c.b16 %v2505, %v2501
        %v3206 = vpack.c.b16 %v2506, %v2502
        %v3207 = vpack.c.b16 %v2511, %v2507
        %v3208 = vpack.c.b16 %v2512, %v2508
        %v3209 = vpack.c.b16 %v2513, %v2509
        %v3210 = vpack.c.b16 %v2514, %v2510
        %v3211 = vpack.c.b16 %v2519, %v2515
        %v3212 = vpack.c.b16 %v2520, %v2516
        %v3213 = vpack.c.b16 %v2521, %v2517
        %v3214 = vpack.c.b16 %v2522, %v2518
        %v3215 = vpack.c.b16 %v2527, %v2523
        %v3216 = vpack.c.b16 %v2528, %v2524
        %v3217 = vpack.c.b16 %v2529, %v2525
        %v3218 = vpack.c.b16 %v2530, %v2526
        %v3219 = vpack.c.b16 %v2535, %v2531
        %v3220 = vpack.c.b16 %v2536, %v2532
        %v3221 = vpack.c.b16 %v2537, %v2533
        %v3222 = vpack.c.b16 %v2538, %v2534
        %v3223 = vpack.c.b16 %v2543, %v2539
        %v3224 = vpack.c.b16 %v2544, %v2540
        %v3225 = vpack.c.b16 %v2545, %v2541
        %v3226 = vpack.c.b16 %v2546, %v2542
        %v3227 = vpack.c.b16 %v2551, %v2547
        %v3228 = vpack.c.b16 %v2552, %v2548
        %v3229 = vpack.c.b16 %v2553, %v2549
        %v3230 = vpack.c.b16 %v2554, %v2550
        %v3231 = vpack.c.b16 %v2559, %v2555
        %v3232 = vpack.c.b16 %v2560, %v2556
        %v3233 = vpack.c.b16 %v2561, %v2557
        %v3234 = vpack.c.b16 %v2562, %v2558
        %v3235 = vpack.c.b16 %v2567, %v2563
        %v3236 = vpack.c.b16 %v2568, %v2564
        %v3237 = vpack.c.b16 %v2569, %v2565
        %v3238 = vpack.c.b16 %v2570, %v2566
        %v3239 = vpack.c.b16 %v2575, %v2571
        %v3240 = vpack.c.b16 %v2576, %v2572
        %v3241 = vpack.c.b16 %v2577, %v2573
        %v3242 = vpack.c.b16 %v2578, %v2574
        %v3243 = vpack.c.b16 %v2583, %v2579
        %v3244 = vpack.c.b16 %v2584, %v2580
        %v3245 = vpack.c.b16 %v2585, %v2581
        %v3246 = vpack.c.b16 %v2586, %v2582
        %v3247 = vpack.c.b16 %v2591, %v2587
        %v3248 = vpack.c.b16 %v2592, %v2588
        %v3249 = vpack.c.b16 %v2593, %v2589
        %v3250 = vpack.c.b16 %v2594, %v2590
        %v3251 = vpack.c.b16 %v2599, %v2595
        %v3252 = vpack.c.b16 %v2600, %v2596
        %v3253 = vpack.c.b16 %v2601, %v2597
        %v3254 = vpack.c.b16 %v2602, %v2598
        %v3255 = vpack.c.b16 %v2607, %v2603
        %v3256 = vpack.c.b16 %v2608, %v2604
        %v3257 = vpack.c.b16 %v2609, %v2605
        %v3258 = vpack.c.b16 %v2610, %v2606
        %v3259 = vpack.c.b16 %v2615, %v2611
        %v3260 = vpack.c.b16 %v2616, %v2612
        %v3261 = vpack.c.b16 %v2617, %v2613
        %v3262 = vpack.c.b16 %v2618, %v2614
        %v3263 = vpack.c.b16 %v2623, %v2619
        %v3264 = vpack.c.b16 %v2624, %v2620
        %v3265 = vpack.c.b16 %v2625, %v2621
        %v3266 = vpack.c.b16 %v2626, %v2622
        %v3267 = vpack.c.b16 %v2631, %v2627
        %v3268 = vpack.c.b16 %v2632, %v2628
        %v3269 = vpack.c.b16 %v2633, %v2629
        %v3270 = vpack.c.b16 %v2634, %v2630
        %v3271 = vpack.c.b16 %v2639, %v2635
        %v3272 = vpack.c.b16 %v2640, %v2636
        %v3273 = vpack.c.b16 %v2641, %v2637
        %v3274 = vpack.c.b16 %v2642, %v2638
        %v3275 = vpack.c.b16 %v2647, %v2643
        %v3276 = vpack.c.b16 %v2648, %v2644
        %v3277 = vpack.c.b16 %v2649, %v2645
        %v3278 = vpack.c.b16 %v2650, %v2646
        %v3279 = vpack.c.b16 %v2655, %v2651
        %v3280 = vpack.c.b16 %v2656, %v2652
        %v3281 = vpack.c.b16 %v2657, %v2653
        %v3282 = vpack.c.b16 %v2658, %v2654
        %v3283 = vpack.c.b16 %v2663, %v2659
        %v3284 = vpack.c.b16 %v2664, %v2660
        %v3285 = vpack.c.b16 %v2665, %v2661
        %v3286 = vpack.c.b16 %v2666, %v2662
        %v3287 = vpack.c.b16 %v2671, %v2667
        %v3288 = vpack.c.b16 %v2672, %v2668
        %v3289 = vpack.c.b16 %v2673, %v2669
        %v3290 = vpack.c.b16 %v2674, %v2670
        %v3291 = vpack.c.b16 %v2679, %v2675
        %v3292 = vpack.c.b16 %v2680, %v2676
        %v3293 = vpack.c.b16 %v2681, %v2677
        %v3294 = vpack.c.b16 %v2682, %v2678
        %v3295 = vpack.c.b16 %v2687, %v2683
        %v3296 = vpack.c.b16 %v2688, %v2684
        %v3297 = vpack.c.b16 %v2689, %v2685
        %v3298 = vpack.c.b16 %v2690, %v2686
        %v3299 = vpack.c.b16 %v2695, %v2691
        %v3300 = vpack.c.b16 %v2696, %v2692
        %v3301 = vpack.c.b16 %v2697, %v2693
        %v3302 = vpack.c.b16 %v2698, %v2694
        %v3303 = vpack.c.b16 %v2703, %v2699
        %v3304 = vpack.c.b16 %v2704, %v2700
        %v3305 = vpack.c.b16 %v2705, %v2701
        %v3306 = vpack.c.b16 %v2706, %v2702
        %v3307 = vpack.c.b16 %v2711, %v2707
        %v3308 = vpack.c.b16 %v2712, %v2708
        %v3309 = vpack.c.b16 %v2713, %v2709
        %v3310 = vpack.c.b16 %v2714, %v2710
        %v3311 = vpack.c.b16 %v2719, %v2715
        %v3312 = vpack.c.b16 %v2720, %v2716
        %v3313 = vpack.c.b16 %v2721, %v2717
        %v3314 = vpack.c.b16 %v2722, %v2718
        %v3315 = vpack.c.b16 %v2727, %v2723
        %v3316 = vpack.c.b16 %v2728, %v2724
        %v3317 = vpack.c.b16 %v2729, %v2725
        %v3318 = vpack.c.b16 %v2730, %v2726
        %v3319 = vpack.c.b16 %v2735, %v2731
        %v3320 = vpack.c.b16 %v2736, %v2732
        %v3321 = vpack.c.b16 %v2737, %v2733
        %v3322 = vpack.c.b16 %v2738, %v2734
        %v3323 = vpack.c.b16 %v2743, %v2739
        %v3324 = vpack.c.b16 %v2744, %v2740
        %v3325 = vpack.c.b16 %v2745, %v2741
        %v3326 = vpack.c.b16 %v2746, %v2742
        %v3327 = vpack.c.b16 %v2751, %v2747
        %v3328 = vpack.c.b16 %v2752, %v2748
        %v3329 = vpack.c.b16 %v2753, %v2749
        %v3330 = vpack.c.b16 %v2754, %v2750
        %v3331 = vpack.c.b16 %v2759, %v2755
        %v3332 = vpack.c.b16 %v2760, %v2756
        %v3333 = vpack.c.b16 %v2761, %v2757
        %v3334 = vpack.c.b16 %v2762, %v2758
        %v3335 = vpack.c.b16 %v2767, %v2763
        %v3336 = vpack.c.b16 %v2768, %v2764
        %v3337 = vpack.c.b16 %v2769, %v2765
        %v3338 = vpack.c.b16 %v2770, %v2766
        %v3339 = vpack.c.b16 %v2775, %v2771
        %v3340 = vpack.c.b16 %v2776, %v2772
        %v3341 = vpack.c.b16 %v2777, %v2773
        %v3342 = vpack.c.b16 %v2778, %v2774
        %v3343 = vpack.c.b16 %v2783, %v2779
        %v3344 = vpack.c.b16 %v2784, %v2780
        %v3345 = vpack.c.b16 %v2785, %v2781
        %v3346 = vpack.c.b16 %v2786, %v2782
        %v3347 = vpack.c.b16 %v2791, %v2787
        %v3348 = vpack.c.b16 %v2792, %v2788
        %v3349 = vpack.c.b16 %v2793, %v2789
        %v3350 = vpack.c.b16 %v2794, %v2790
        %v3351 = vpack.c.b16 %v2799, %v2795
        %v3352 = vpack.c.b16 %v2800, %v2796
        %v3353 = vpack.c.b16 %v2801, %v2797
        %v3354 = vpack.c.b16 %v2802, %v2798
        %v3355 = vpack.c.b16 %v2807, %v2803
        %v3356 = vpack.c.b16 %v2808, %v2804
        %v3357 = vpack.c.b16 %v2809, %v2805
        %v3358 = vpack.c.b16 %v2810, %v2806
        %v3359 = vpack.c.b16 %v2815, %v2811
        %v3360 = vpack.c.b16 %v2816, %v2812
        %v3361 = vpack.c.b16 %v2817, %v2813
        %v3362 = vpack.c.b16 %v2818, %v2814
        %v3363 = vpack.c.b16 %v2823, %v2819
        %v3364 = vpack.c.b16 %v2824, %v2820
        %v3365 = vpack.c.b16 %v2825, %v2821
        %v3366 = vpack.c.b16 %v2826, %v2822
        %v3367 = vpack.c.b16 %v2831, %v2827
        %v3368 = vpack.c.b16 %v2832, %v2828
        %v3369 = vpack.c.b16 %v2833, %v2829
        %v3370 = vpack.c.b16 %v2834, %v2830
        %v3371 = vpack.c.b16 %v2839, %v2835
        %v3372 = vpack.c.b16 %v2840, %v2836
        %v3373 = vpack.c.b16 %v2841, %v2837
        %v3374 = vpack.c.b16 %v2842, %v2838
        %v3375 = vpack.c.b16 %v2847, %v2843
        %v3376 = vpack.c.b16 %v2848, %v2844
        %v3377 = vpack.c.b16 %v2849, %v2845
        %v3378 = vpack.c.b16 %v2850, %v2846
        %v3379 = vpack.c.b16 %v2855, %v2851
        %v3380 = vpack.c.b16 %v2856, %v2852
        %v3381 = vpack.c.b16 %v2857, %v2853
        %v3382 = vpack.c.b16 %v2858, %v2854
        %v3383 = vpack.c.b16 %v2863, %v2859
        %v3384 = vpack.c.b16 %v2864, %v2860
        %v3385 = vpack.c.b16 %v2865, %v2861
        %v3386 = vpack.c.b16 %v2866, %v2862
        %v3387 = vpack.c.b16 %v2871, %v2867
        %v3388 = vpack.c.b16 %v2872, %v2868
        %v3389 = vpack.c.b16 %v2873, %v2869
        %v3390 = vpack.c.b16 %v2874, %v2870
        %v3391 = vpack.c.b16 %v2879, %v2875
        %v3392 = vpack.c.b16 %v2880, %v2876
        %v3393 = vpack.c.b16 %v2881, %v2877
        %v3394 = vpack.c.b16 %v2882, %v2878
        %v3395 = vpack.c.b16 %v2887, %v2883
        %v3396 = vpack.c.b16 %v2888, %v2884
        %v3397 = vpack.c.b16 %v2889, %v2885
        %v3398 = vpack.c.b16 %v2890, %v2886
        %v3399 = vpack.c.b16 %v2895, %v2891
        %v3400 = vpack.c.b16 %v2896, %v2892
        %v3401 = vpack.c.b16 %v2897, %v2893
        %v3402 = vpack.c.b16 %v2898, %v2894
        %v3403 = vpack.c.b16 %v2903, %v2899
        %v3404 = vpack.c.b16 %v2904, %v2900
        %v3405 = vpack.c.b16 %v2905, %v2901
        %v3406 = vpack.c.b16 %v2906, %v2902
        %v3407 = vpack.c.b16 %v2911, %v2907
        %v3408 = vpack.c.b16 %v2912, %v2908
        %v3409 = vpack.c.b16 %v2913, %v2909
        %v3410 = vpack.c.b16 %v2914, %v2910
        %v3411 = vpack.c.b16 %v2919, %v2915
        %v3412 = vpack.c.b16 %v2920, %v2916
        %v3413 = vpack.c.b16 %v2921, %v2917
        %v3414 = vpack.c.b16 %v2922, %v2918
        %v3415 = vpack.c.b16 %v2927, %v2923
        %v3416 = vpack.c.b16 %v2928, %v2924
        %v3417 = vpack.c.b16 %v2929, %v2925
        %v3418 = vpack.c.b16 %v2930, %v2926
        %v3419 = vpack.c.b16 %v2935, %v2931
        %v3420 = vpack.c.b16 %v2936, %v2932
        %v3421 = vpack.c.b16 %v2937, %v2933
        %v3422 = vpack.c.b16 %v2938, %v2934
        %v3423 = vpack.c.b16 %v2943, %v2939
        %v3424 = vpack.c.b16 %v2944, %v2940
        %v3425 = vpack.c.b16 %v2945, %v2941
        %v3426 = vpack.c.b16 %v2946, %v2942
        %v3427 = vpack.c.b16 %v2951, %v2947
        %v3428 = vpack.c.b16 %v2952, %v2948
        %v3429 = vpack.c.b16 %v2953, %v2949
        %v3430 = vpack.c.b16 %v2954, %v2950
        %v3431 = vpack.c.b16 %v2959, %v2955
        %v3432 = vpack.c.b16 %v2960, %v2956
        %v3433 = vpack.c.b16 %v2961, %v2957
        %v3434 = vpack.c.b16 %v2962, %v2958
        %v3435 = vpack.c.b16 %v2967, %v2963
        %v3436 = vpack.c.b16 %v2968, %v2964
        %v3437 = vpack.c.b16 %v2969, %v2965
        %v3438 = vpack.c.b16 %v2970, %v2966
        %v3439 = vpack.c.b16 %v2975, %v2971
        %v3440 = vpack.c.b16 %v2976, %v2972
        %v3441 = vpack.c.b16 %v2977, %v2973
        %v3442 = vpack.c.b16 %v2978, %v2974
        %v3443 = vpack.c.b16 %v2983, %v2979
        %v3444 = vpack.c.b16 %v2984, %v2980
        %v3445 = vpack.c.b16 %v2985, %v2981
        %v3446 = vpack.c.b16 %v2986, %v2982
        %v3447 = vpack.c.b16 %v2991, %v2987
        %v3448 = vpack.c.b16 %v2992, %v2988
        %v3449 = vpack.c.b16 %v2993, %v2989
        %v3450 = vpack.c.b16 %v2994, %v2990
        %v3451 = vpack.c.b16 %v2999, %v2995
        %v3452 = vpack.c.b16 %v3000, %v2996
        %v3453 = vpack.c.b16 %v3001, %v2997
        %v3454 = vpack.c.b16 %v3002, %v2998
        %v3455 = vpack.c.b16 %v3007, %v3003
        %v3456 = vpack.c.b16 %v3008, %v3004
        %v3457 = vpack.c.b16 %v3009, %v3005
        %v3458 = vpack.c.b16 %v3010, %v3006
        %v3459 = vpack.c.b16 %v3015, %v3011
        %v3460 = vpack.c.b16 %v3016, %v3012
        %v3461 = vpack.c.b16 %v3017, %v3013
        %v3462 = vpack.c.b16 %v3018, %v3014
        %v3463 = vpack.c.b16 %v3023, %v3019
        %v3464 = vpack.c.b16 %v3024, %v3020
        %v3465 = vpack.c.b16 %v3025, %v3021
        %v3466 = vpack.c.b16 %v3026, %v3022
        %v3467 = vpack.c.b16 %v3031, %v3027
        %v3468 = vpack.c.b16 %v3032, %v3028
        %v3469 = vpack.c.b16 %v3033, %v3029
        %v3470 = vpack.c.b16 %v3034, %v3030
        %v3471 = vpack.c.b16 %v3039, %v3035
        %v3472 = vpack.c.b16 %v3040, %v3036
        %v3473 = vpack.c.b16 %v3041, %v3037
        %v3474 = vpack.c.b16 %v3042, %v3038
        %v3475 = vpack.c.b16 %v3047, %v3043
        %v3476 = vpack.c.b16 %v3048, %v3044
        %v3477 = vpack.c.b16 %v3049, %v3045
        %v3478 = vpack.c.b16 %v3050, %v3046
        %v3479 = vpack.c.b16 %v3055, %v3051
        %v3480 = vpack.c.b16 %v3056, %v3052
        %v3481 = vpack.c.b16 %v3057, %v3053
        %v3482 = vpack.c.b16 %v3058, %v3054
        %v3483 = vpack.c.b16 %v3063, %v3059
        %v3484 = vpack.c.b16 %v3064, %v3060
        %v3485 = vpack.c.b16 %v3065, %v3061
        %v3486 = vpack.c.b16 %v3066, %v3062
        %v3487 = vpack.c.b16 %v3071, %v3067
        %v3488 = vpack.c.b16 %v3072, %v3068
        %v3489 = vpack.c.b16 %v3073, %v3069
        %v3490 = vpack.c.b16 %v3074, %v3070
        %v3491 = vpack.c.b16 %v3079, %v3075
        %v3492 = vpack.c.b16 %v3080, %v3076
        %v3493 = vpack.c.b16 %v3081, %v3077
        %v3494 = vpack.c.b16 %v3082, %v3078
        %v3495 = vpack.c.b16 %v3087, %v3083
        %v3496 = vpack.c.b16 %v3088, %v3084
        %v3497 = vpack.c.b16 %v3089, %v3085
        %v3498 = vpack.c.b16 %v3090, %v3086
        %v3499 = vpack.c.b16 %v3095, %v3091
        %v3500 = vpack.c.b16 %v3096, %v3092
        %v3501 = vpack.c.b16 %v3097, %v3093
        %v3502 = vpack.c.b16 %v3098, %v3094
        %v3503 = vpack.c.b16 %v3103, %v3099
        %v3504 = vpack.c.b16 %v3104, %v3100
        %v3505 = vpack.c.b16 %v3105, %v3101
        %v3506 = vpack.c.b16 %v3106, %v3102
        %v3507 = vpack.c.b16 %v3111, %v3107
        %v3508 = vpack.c.b16 %v3112, %v3108
        %v3509 = vpack.c.b16 %v3113, %v3109
        %v3510 = vpack.c.b16 %v3114, %v3110
        %v3511 = vpack.c.b16 %v3119, %v3115
        %v3512 = vpack.c.b16 %v3120, %v3116
        %v3513 = vpack.c.b16 %v3121, %v3117
        %v3514 = vpack.c.b16 %v3122, %v3118
        %v3515 = vpack.c.b16 %v3127, %v3123
        %v3516 = vpack.c.b16 %v3128, %v3124
        %v3517 = vpack.c.b16 %v3129, %v3125
        %v3518 = vpack.c.b16 %v3130, %v3126
        %v3519 = vpack.c.b16 %v3135, %v3131
        %v3520 = vpack.c.b16 %v3136, %v3132
        %v3521 = vpack.c.b16 %v3137, %v3133
        %v3522 = vpack.c.b16 %v3138, %v3134
        %3907 = vmatprep.subr.bf16.mxu0 %v3140
        %3908 = vmatpush1.bf16.msra.mxu0 %v3139
        %3909 = vmatprep.subr.bf16.mxu0 %v3144
        %3910 = vmatpush1.bf16.msra.mxu0 %v3143
        %3911 = vmatprep.subr.bf16.mxu0 %v3148
        %3912 = vmatpush1.bf16.msra.mxu0 %v3147
        %3913 = vmatprep.subr.bf16.mxu0 %v3152
        %3914 = vmatpush1.bf16.msra.mxu0 %v3151
        %3915 = vmatprep.subr.bf16.mxu0 %v3156
        %3916 = vmatpush1.bf16.msra.mxu0 %v3155
        %3917 = vmatprep.subr.bf16.mxu0 %v3160
        %3918 = vmatpush1.bf16.msra.mxu0 %v3159
        %3919 = vmatprep.subr.bf16.mxu0 %v3164
        %3920 = vmatpush1.bf16.msra.mxu0 %v3163
        %3921 = vmatprep.subr.bf16.mxu0 %v3168
        %3922 = vmatpush1.bf16.msra.mxu0 %v3167
        %3923 = vmatprep.subr.bf16.mxu0 %v3172
        %3924 = vmatpush1.bf16.msra.mxu0 %v3171
        %3925 = vmatprep.subr.bf16.mxu0 %v3176
        %3926 = vmatpush1.bf16.msra.mxu0 %v3175
        %3927 = vmatprep.subr.bf16.mxu0 %v3180
        %3928 = vmatpush1.bf16.msra.mxu0 %v3179
        %3929 = vmatprep.subr.bf16.mxu0 %v3184
        %3930 = vmatpush1.bf16.msra.mxu0 %v3183
        %3931 = vmatprep.subr.bf16.mxu0 %v3188
        %3932 = vmatpush1.bf16.msra.mxu0 %v3187
        %3933 = vmatprep.subr.bf16.mxu0 %v3192
        %3934 = vmatpush1.bf16.msra.mxu0 %v3191
        %3935 = vmatprep.subr.bf16.mxu0 %v3196
        %3936 = vmatpush1.bf16.msra.mxu0 %v3195
        %3937 = vmatprep.subr.bf16.mxu0 %v3200
        %3938 = vmatpush1.bf16.msra.mxu0 %v3199
        %3939 = vmatprep.mubr.bf16.mxu0 %v1570
        %3940 = vmatmul.mubr.bf16.gmra.mrb[0].mxu0 %v1569
        %v3941 = vpop.f32.mrb[0].mxu0
        %v3942 = vadd.f32 %v1970, %v3941
        %v3943 = vpop.f32.mrb[0].mxu0
        %v3944 = vadd.f32 %v1974, %v3943
        %v3945 = vpop.f32.mrb[0].mxu0
        %v3946 = vpop.f32.mrb[0].mxu0
        %3947 = vdwg.mxu0
        %3948 = vmatprep.subr.bf16.mxu0 %v3204
        %3949 = vmatpush1.bf16.msra.mxu0 %v3203
        %3950 = vmatprep.subr.bf16.mxu0 %v3208
        %3951 = vmatpush1.bf16.msra.mxu0 %v3207
        %3952 = vmatprep.subr.bf16.mxu0 %v3212
        %3953 = vmatpush1.bf16.msra.mxu0 %v3211
        %3954 = vmatprep.subr.bf16.mxu0 %v3216
        %3955 = vmatpush1.bf16.msra.mxu0 %v3215
        %3956 = vmatprep.subr.bf16.mxu0 %v3220
        %3957 = vmatpush1.bf16.msra.mxu0 %v3219
        %3958 = vmatprep.subr.bf16.mxu0 %v3224
        %3959 = vmatpush1.bf16.msra.mxu0 %v3223
        %3960 = vmatprep.subr.bf16.mxu0 %v3228
        %3961 = vmatpush1.bf16.msra.mxu0 %v3227
        %3962 = vmatprep.subr.bf16.mxu0 %v3232
        %3963 = vmatpush1.bf16.msra.mxu0 %v3231
        %3964 = vmatprep.subr.bf16.mxu0 %v3236
        %3965 = vmatpush1.bf16.msra.mxu0 %v3235
        %3966 = vmatprep.subr.bf16.mxu0 %v3240
        %3967 = vmatpush1.bf16.msra.mxu0 %v3239
        %3968 = vmatprep.subr.bf16.mxu0 %v3244
        %3969 = vmatpush1.bf16.msra.mxu0 %v3243
        %3970 = vmatprep.subr.bf16.mxu0 %v3248
        %3971 = vmatpush1.bf16.msra.mxu0 %v3247
        %3972 = vmatprep.subr.bf16.mxu0 %v3252
        %3973 = vmatpush1.bf16.msra.mxu0 %v3251
        %3974 = vmatprep.subr.bf16.mxu0 %v3256
        %3975 = vmatpush1.bf16.msra.mxu0 %v3255
        %3976 = vmatprep.subr.bf16.mxu0 %v3260
        %3977 = vmatpush1.bf16.msra.mxu0 %v3259
        %3978 = vmatprep.subr.bf16.mxu0 %v3264
        %3979 = vmatpush1.bf16.msra.mxu0 %v3263
        %3980 = vmatprep.mubr.bf16.mxu0 %v1572
        %3981 = vmatmul.mubr.bf16.gmra.mrb[0].mxu0 %v1571
        %v3982 = vpop.f32.mrb[0].mxu0
        %v3983 = vadd.f32 %v3942, %v3982
        %v3984 = vpop.f32.mrb[0].mxu0
        %v3985 = vadd.f32 %v3944, %v3984
        %v3986 = vpop.f32.mrb[0].mxu0
        %v3987 = vpop.f32.mrb[0].mxu0
        %3988 = vdwg.mxu0
        %3989 = vmatprep.subr.bf16.mxu0 %v3268
        %3990 = vmatpush1.bf16.msra.mxu0 %v3267
        %3991 = vmatprep.subr.bf16.mxu0 %v3272
        %3992 = vmatpush1.bf16.msra.mxu0 %v3271
        %3993 = vmatprep.subr.bf16.mxu0 %v3276
        %3994 = vmatpush1.bf16.msra.mxu0 %v3275
        %3995 = vmatprep.subr.bf16.mxu0 %v3280
        %3996 = vmatpush1.bf16.msra.mxu0 %v3279
        %3997 = vmatprep.subr.bf16.mxu0 %v3284
        %3998 = vmatpush1.bf16.msra.mxu0 %v3283
        %3999 = vmatprep.subr.bf16.mxu0 %v3288
        %4000 = vmatpush1.bf16.msra.mxu0 %v3287
        %4001 = vmatprep.subr.bf16.mxu0 %v3292
        %4002 = vmatpush1.bf16.msra.mxu0 %v3291
        %4003 = vmatprep.subr.bf16.mxu0 %v3296
        %4004 = vmatpush1.bf16.msra.mxu0 %v3295
        %4005 = vmatprep.subr.bf16.mxu0 %v3300
        %4006 = vmatpush1.bf16.msra.mxu0 %v3299
        %4007 = vmatprep.subr.bf16.mxu0 %v3304
        %4008 = vmatpush1.bf16.msra.mxu0 %v3303
        %4009 = vmatprep.subr.bf16.mxu0 %v3308
        %4010 = vmatpush1.bf16.msra.mxu0 %v3307
        %4011 = vmatprep.subr.bf16.mxu0 %v3312
        %4012 = vmatpush1.bf16.msra.mxu0 %v3311
        %4013 = vmatprep.subr.bf16.mxu0 %v3316
        %4014 = vmatpush1.bf16.msra.mxu0 %v3315
        %4015 = vmatprep.subr.bf16.mxu0 %v3320
        %4016 = vmatpush1.bf16.msra.mxu0 %v3319
        %4017 = vmatprep.subr.bf16.mxu0 %v3324
        %4018 = vmatpush1.bf16.msra.mxu0 %v3323
        %4019 = vmatprep.subr.bf16.mxu0 %v3328
        %4020 = vmatpush1.bf16.msra.mxu0 %v3327
        %4021 = vmatprep.mubr.bf16.mxu0 %v1574
        %4022 = vmatmul.mubr.bf16.gmra.mrb[0].mxu0 %v1573
        %v4023 = vpop.f32.mrb[0].mxu0
        %v4024 = vadd.f32 %v3983, %v4023
        %v4025 = vpop.f32.mrb[0].mxu0
        %v4026 = vadd.f32 %v3985, %v4025
        %v4027 = vpop.f32.mrb[0].mxu0
        %v4028 = vpop.f32.mrb[0].mxu0
        %4029 = vdwg.mxu0
        %4030 = vmatprep.subr.bf16.mxu0 %v3332
        %4031 = vmatpush1.bf16.msra.mxu0 %v3331
        %4032 = vmatprep.subr.bf16.mxu0 %v3336
        %4033 = vmatpush1.bf16.msra.mxu0 %v3335
        %4034 = vmatprep.subr.bf16.mxu0 %v3340
        %4035 = vmatpush1.bf16.msra.mxu0 %v3339
        %4036 = vmatprep.subr.bf16.mxu0 %v3344
        %4037 = vmatpush1.bf16.msra.mxu0 %v3343
        %4038 = vmatprep.subr.bf16.mxu0 %v3348
        %4039 = vmatpush1.bf16.msra.mxu0 %v3347
        %4040 = vmatprep.subr.bf16.mxu0 %v3352
        %4041 = vmatpush1.bf16.msra.mxu0 %v3351
        %4042 = vmatprep.subr.bf16.mxu0 %v3356
        %4043 = vmatpush1.bf16.msra.mxu0 %v3355
        %4044 = vmatprep.subr.bf16.mxu0 %v3360
        %4045 = vmatpush1.bf16.msra.mxu0 %v3359
        %4046 = vmatprep.subr.bf16.mxu0 %v3364
        %4047 = vmatpush1.bf16.msra.mxu0 %v3363
        %4048 = vmatprep.subr.bf16.mxu0 %v3368
        %4049 = vmatpush1.bf16.msra.mxu0 %v3367
        %4050 = vmatprep.subr.bf16.mxu0 %v3372
        %4051 = vmatpush1.bf16.msra.mxu0 %v3371
        %4052 = vmatprep.subr.bf16.mxu0 %v3376
        %4053 = vmatpush1.bf16.msra.mxu0 %v3375
        %4054 = vmatprep.subr.bf16.mxu0 %v3380
        %4055 = vmatpush1.bf16.msra.mxu0 %v3379
        %4056 = vmatprep.subr.bf16.mxu0 %v3384
        %4057 = vmatpush1.bf16.msra.mxu0 %v3383
        %4058 = vmatprep.subr.bf16.mxu0 %v3388
        %4059 = vmatpush1.bf16.msra.mxu0 %v3387
        %4060 = vmatprep.subr.bf16.mxu0 %v3392
        %4061 = vmatpush1.bf16.msra.mxu0 %v3391
        %4062 = vmatprep.mubr.bf16.mxu0 %v1576
        %4063 = vmatmul.mubr.bf16.gmra.mrb[0].mxu0 %v1575
        %v4064 = vpop.f32.mrb[0].mxu0
        %v4065 = vadd.f32 %v4024, %v4064
        %v4066 = vpop.f32.mrb[0].mxu0
        %v4067 = vadd.f32 %v4026, %v4066
        %v4068 = vpop.f32.mrb[0].mxu0
        %v4069 = vpop.f32.mrb[0].mxu0
        %4070 = vdwg.mxu0
        %4071 = vmatprep.subr.bf16.mxu0 %v3396
        %4072 = vmatpush1.bf16.msra.mxu0 %v3395
        %4073 = vmatprep.subr.bf16.mxu0 %v3400
        %4074 = vmatpush1.bf16.msra.mxu0 %v3399
        %4075 = vmatprep.subr.bf16.mxu0 %v3404
        %4076 = vmatpush1.bf16.msra.mxu0 %v3403
        %4077 = vmatprep.subr.bf16.mxu0 %v3408
        %4078 = vmatpush1.bf16.msra.mxu0 %v3407
        %4079 = vmatprep.subr.bf16.mxu0 %v3412
        %4080 = vmatpush1.bf16.msra.mxu0 %v3411
        %4081 = vmatprep.subr.bf16.mxu0 %v3416
        %4082 = vmatpush1.bf16.msra.mxu0 %v3415
        %4083 = vmatprep.subr.bf16.mxu0 %v3420
        %4084 = vmatpush1.bf16.msra.mxu0 %v3419
        %4085 = vmatprep.subr.bf16.mxu0 %v3424
        %4086 = vmatpush1.bf16.msra.mxu0 %v3423
        %4087 = vmatprep.subr.bf16.mxu0 %v3428
        %4088 = vmatpush1.bf16.msra.mxu0 %v3427
        %4089 = vmatprep.subr.bf16.mxu0 %v3432
        %4090 = vmatpush1.bf16.msra.mxu0 %v3431
        %4091 = vmatprep.subr.bf16.mxu0 %v3436
        %4092 = vmatpush1.bf16.msra.mxu0 %v3435
        %4093 = vmatprep.subr.bf16.mxu0 %v3440
        %4094 = vmatpush1.bf16.msra.mxu0 %v3439
        %4095 = vmatprep.subr.bf16.mxu0 %v3444
        %4096 = vmatpush1.bf16.msra.mxu0 %v3443
        %4097 = vmatprep.subr.bf16.mxu0 %v3448
        %4098 = vmatpush1.bf16.msra.mxu0 %v3447
        %4099 = vmatprep.subr.bf16.mxu0 %v3452
        %4100 = vmatpush1.bf16.msra.mxu0 %v3451
        %4101 = vmatprep.subr.bf16.mxu0 %v3456
        %4102 = vmatpush1.bf16.msra.mxu0 %v3455
        %4103 = vmatprep.mubr.bf16.mxu0 %v1578
        %4104 = vmatmul.mubr.bf16.gmra.mrb[0].mxu0 %v1577
        %v4105 = vpop.f32.mrb[0].mxu0
        %v4106 = vadd.f32 %v4065, %v4105
        %v4107 = vpop.f32.mrb[0].mxu0
        %v4108 = vadd.f32 %v4067, %v4107
        %v4109 = vpop.f32.mrb[0].mxu0
        %v4110 = vpop.f32.mrb[0].mxu0
        %4111 = vdwg.mxu0
        %4112 = vmatprep.subr.bf16.mxu0 %v3460
        %4113 = vmatpush1.bf16.msra.mxu0 %v3459
        %4114 = vmatprep.subr.bf16.mxu0 %v3464
        %4115 = vmatpush1.bf16.msra.mxu0 %v3463
        %4116 = vmatprep.subr.bf16.mxu0 %v3468
        %4117 = vmatpush1.bf16.msra.mxu0 %v3467
        %4118 = vmatprep.subr.bf16.mxu0 %v3472
        %4119 = vmatpush1.bf16.msra.mxu0 %v3471
        %4120 = vmatprep.subr.bf16.mxu0 %v3476
        %4121 = vmatpush1.bf16.msra.mxu0 %v3475
        %4122 = vmatprep.subr.bf16.mxu0 %v3480
        %4123 = vmatpush1.bf16.msra.mxu0 %v3479
        %4124 = vmatprep.subr.bf16.mxu0 %v3484
        %4125 = vmatpush1.bf16.msra.mxu0 %v3483
        %4126 = vmatprep.subr.bf16.mxu0 %v3488
        %4127 = vmatpush1.bf16.msra.mxu0 %v3487
        %4128 = vmatprep.subr.bf16.mxu0 %v3492
        %4129 = vmatpush1.bf16.msra.mxu0 %v3491
        %4130 = vmatprep.subr.bf16.mxu0 %v3496
        %4131 = vmatpush1.bf16.msra.mxu0 %v3495
        %4132 = vmatprep.subr.bf16.mxu0 %v3500
        %4133 = vmatpush1.bf16.msra.mxu0 %v3499
        %4134 = vmatprep.subr.bf16.mxu0 %v3504
        %4135 = vmatpush1.bf16.msra.mxu0 %v3503
        %4136 = vmatprep.subr.bf16.mxu0 %v3508
        %4137 = vmatpush1.bf16.msra.mxu0 %v3507
        %4138 = vmatprep.subr.bf16.mxu0 %v3512
        %4139 = vmatpush1.bf16.msra.mxu0 %v3511
        %4140 = vmatprep.subr.bf16.mxu0 %v3516
        %4141 = vmatpush1.bf16.msra.mxu0 %v3515
        %4142 = vmatprep.subr.bf16.mxu0 %v3520
        %4143 = vmatpush1.bf16.msra.mxu0 %v3519
        %4144 = vmatprep.mubr.bf16.mxu0 %v1580
        %4145 = vmatmul.mubr.bf16.gmra.mrb[0].mxu0 %v1579
        %v4146 = vpop.f32.mrb[0].mxu0
        %v4147 = vadd.f32 %v4106, %v4146
        %v4148 = vpop.f32.mrb[0].mxu0
        %v4149 = vadd.f32 %v4108, %v4148
        %v4150 = vpop.f32.mrb[0].mxu0
        %v4151 = vpop.f32.mrb[0].mxu0
        %4152 = vdwg.mxu0
        %4153 = vmatprep.subr.bf16.mxu0 %v3142
        %4154 = vmatpush1.bf16.msra.mxu0 %v3141
        %4155 = vmatprep.subr.bf16.mxu0 %v3146
        %4156 = vmatpush1.bf16.msra.mxu0 %v3145
        %4157 = vmatprep.subr.bf16.mxu0 %v3150
        %4158 = vmatpush1.bf16.msra.mxu0 %v3149
        %4159 = vmatprep.subr.bf16.mxu0 %v3154
        %4160 = vmatpush1.bf16.msra.mxu0 %v3153
        %4161 = vmatprep.subr.bf16.mxu0 %v3158
        %4162 = vmatpush1.bf16.msra.mxu0 %v3157
        %4163 = vmatprep.subr.bf16.mxu0 %v3162
        %4164 = vmatpush1.bf16.msra.mxu0 %v3161
        %4165 = vmatprep.subr.bf16.mxu0 %v3166
        %4166 = vmatpush1.bf16.msra.mxu0 %v3165
        %4167 = vmatprep.subr.bf16.mxu0 %v3170
        %4168 = vmatpush1.bf16.msra.mxu0 %v3169
        %4169 = vmatprep.subr.bf16.mxu0 %v3174
        %4170 = vmatpush1.bf16.msra.mxu0 %v3173
        %4171 = vmatprep.subr.bf16.mxu0 %v3178
        %4172 = vmatpush1.bf16.msra.mxu0 %v3177
        %4173 = vmatprep.subr.bf16.mxu0 %v3182
        %4174 = vmatpush1.bf16.msra.mxu0 %v3181
        %4175 = vmatprep.subr.bf16.mxu0 %v3186
        %4176 = vmatpush1.bf16.msra.mxu0 %v3185
        %4177 = vmatprep.subr.bf16.mxu0 %v3190
        %4178 = vmatpush1.bf16.msra.mxu0 %v3189
        %4179 = vmatprep.subr.bf16.mxu0 %v3194
        %4180 = vmatpush1.bf16.msra.mxu0 %v3193
        %4181 = vmatprep.subr.bf16.mxu0 %v3198
        %4182 = vmatpush1.bf16.msra.mxu0 %v3197
        %4183 = vmatprep.subr.bf16.mxu0 %v3202
        %4184 = vmatpush1.bf16.msra.mxu0 %v3201
        %4185 = vmatprep.mubr.bf16.mxu0 %v1570
        %4186 = vmatmul.mubr.bf16.gmra.mrb[0].mxu0 %v1569
        %v4187 = vpop.f32.mrb[0].mxu0
        %v4188 = vadd.f32 %v1978, %v4187
        %v4189 = vpop.f32.mrb[0].mxu0
        %v4190 = vadd.f32 %v1982, %v4189
        %v4191 = vpop.f32.mrb[0].mxu0
        %v4192 = vpop.f32.mrb[0].mxu0
        %4193 = vdwg.mxu0
        %4194 = vmatprep.subr.bf16.mxu0 %v3206
        %4195 = vmatpush1.bf16.msra.mxu0 %v3205
        %4196 = vmatprep.subr.bf16.mxu0 %v3210
        %4197 = vmatpush1.bf16.msra.mxu0 %v3209
        %4198 = vmatprep.subr.bf16.mxu0 %v3214
        %4199 = vmatpush1.bf16.msra.mxu0 %v3213
        %4200 = vmatprep.subr.bf16.mxu0 %v3218
        %4201 = vmatpush1.bf16.msra.mxu0 %v3217
        %4202 = vmatprep.subr.bf16.mxu0 %v3222
        %4203 = vmatpush1.bf16.msra.mxu0 %v3221
        %4204 = vmatprep.subr.bf16.mxu0 %v3226
        %4205 = vmatpush1.bf16.msra.mxu0 %v3225
        %4206 = vmatprep.subr.bf16.mxu0 %v3230
        %4207 = vmatpush1.bf16.msra.mxu0 %v3229
        %4208 = vmatprep.subr.bf16.mxu0 %v3234
        %4209 = vmatpush1.bf16.msra.mxu0 %v3233
        %4210 = vmatprep.subr.bf16.mxu0 %v3238
        %4211 = vmatpush1.bf16.msra.mxu0 %v3237
        %4212 = vmatprep.subr.bf16.mxu0 %v3242
        %4213 = vmatpush1.bf16.msra.mxu0 %v3241
        %4214 = vmatprep.subr.bf16.mxu0 %v3246
        %4215 = vmatpush1.bf16.msra.mxu0 %v3245
        %4216 = vmatprep.subr.bf16.mxu0 %v3250
        %4217 = vmatpush1.bf16.msra.mxu0 %v3249
        %4218 = vmatprep.subr.bf16.mxu0 %v3254
        %4219 = vmatpush1.bf16.msra.mxu0 %v3253
        %4220 = vmatprep.subr.bf16.mxu0 %v3258
        %4221 = vmatpush1.bf16.msra.mxu0 %v3257
        %4222 = vmatprep.subr.bf16.mxu0 %v3262
        %4223 = vmatpush1.bf16.msra.mxu0 %v3261
        %4224 = vmatprep.subr.bf16.mxu0 %v3266
        %4225 = vmatpush1.bf16.msra.mxu0 %v3265
        %4226 = vmatprep.mubr.bf16.mxu0 %v1572
        %4227 = vmatmul.mubr.bf16.gmra.mrb[0].mxu0 %v1571
        %v4228 = vpop.f32.mrb[0].mxu0
        %v4229 = vadd.f32 %v4188, %v4228
        %v4230 = vpop.f32.mrb[0].mxu0
        %v4231 = vadd.f32 %v4190, %v4230
        %v4232 = vpop.f32.mrb[0].mxu0
        %v4233 = vpop.f32.mrb[0].mxu0
        %4234 = vdwg.mxu0
        %4235 = vmatprep.subr.bf16.mxu0 %v3270
        %4236 = vmatpush1.bf16.msra.mxu0 %v3269
        %4237 = vmatprep.subr.bf16.mxu0 %v3274
        %4238 = vmatpush1.bf16.msra.mxu0 %v3273
        %4239 = vmatprep.subr.bf16.mxu0 %v3278
        %4240 = vmatpush1.bf16.msra.mxu0 %v3277
        %4241 = vmatprep.subr.bf16.mxu0 %v3282
        %4242 = vmatpush1.bf16.msra.mxu0 %v3281
        %4243 = vmatprep.subr.bf16.mxu0 %v3286
        %4244 = vmatpush1.bf16.msra.mxu0 %v3285
        %4245 = vmatprep.subr.bf16.mxu0 %v3290
        %4246 = vmatpush1.bf16.msra.mxu0 %v3289
        %4247 = vmatprep.subr.bf16.mxu0 %v3294
        %4248 = vmatpush1.bf16.msra.mxu0 %v3293
        %4249 = vmatprep.subr.bf16.mxu0 %v3298
        %4250 = vmatpush1.bf16.msra.mxu0 %v3297
        %4251 = vmatprep.subr.bf16.mxu0 %v3302
        %4252 = vmatpush1.bf16.msra.mxu0 %v3301
        %4253 = vmatprep.subr.bf16.mxu0 %v3306
        %4254 = vmatpush1.bf16.msra.mxu0 %v3305
        %4255 = vmatprep.subr.bf16.mxu0 %v3310
        %4256 = vmatpush1.bf16.msra.mxu0 %v3309
        %4257 = vmatprep.subr.bf16.mxu0 %v3314
        %4258 = vmatpush1.bf16.msra.mxu0 %v3313
        %4259 = vmatprep.subr.bf16.mxu0 %v3318
        %4260 = vmatpush1.bf16.msra.mxu0 %v3317
        %4261 = vmatprep.subr.bf16.mxu0 %v3322
        %4262 = vmatpush1.bf16.msra.mxu0 %v3321
        %4263 = vmatprep.subr.bf16.mxu0 %v3326
        %4264 = vmatpush1.bf16.msra.mxu0 %v3325
        %4265 = vmatprep.subr.bf16.mxu0 %v3330
        %4266 = vmatpush1.bf16.msra.mxu0 %v3329
        %4267 = vmatprep.mubr.bf16.mxu0 %v1574
        %4268 = vmatmul.mubr.bf16.gmra.mrb[0].mxu0 %v1573
        %v4269 = vpop.f32.mrb[0].mxu0
        %v4270 = vadd.f32 %v4229, %v4269
        %v4271 = vpop.f32.mrb[0].mxu0
        %v4272 = vadd.f32 %v4231, %v4271
        %v4273 = vpop.f32.mrb[0].mxu0
        %v4274 = vpop.f32.mrb[0].mxu0
        %4275 = vdwg.mxu0
        %4276 = vmatprep.subr.bf16.mxu0 %v3334
        %4277 = vmatpush1.bf16.msra.mxu0 %v3333
        %4278 = vmatprep.subr.bf16.mxu0 %v3338
        %4279 = vmatpush1.bf16.msra.mxu0 %v3337
        %4280 = vmatprep.subr.bf16.mxu0 %v3342
        %4281 = vmatpush1.bf16.msra.mxu0 %v3341
        %4282 = vmatprep.subr.bf16.mxu0 %v3346
        %4283 = vmatpush1.bf16.msra.mxu0 %v3345
        %4284 = vmatprep.subr.bf16.mxu0 %v3350
        %4285 = vmatpush1.bf16.msra.mxu0 %v3349
        %4286 = vmatprep.subr.bf16.mxu0 %v3354
        %4287 = vmatpush1.bf16.msra.mxu0 %v3353
        %4288 = vmatprep.subr.bf16.mxu0 %v3358
        %4289 = vmatpush1.bf16.msra.mxu0 %v3357
        %4290 = vmatprep.subr.bf16.mxu0 %v3362
        %4291 = vmatpush1.bf16.msra.mxu0 %v3361
        %4292 = vmatprep.subr.bf16.mxu0 %v3366
        %4293 = vmatpush1.bf16.msra.mxu0 %v3365
        %4294 = vmatprep.subr.bf16.mxu0 %v3370
        %4295 = vmatpush1.bf16.msra.mxu0 %v3369
        %4296 = vmatprep.subr.bf16.mxu0 %v3374
        %4297 = vmatpush1.bf16.msra.mxu0 %v3373
        %4298 = vmatprep.subr.bf16.mxu0 %v3378
        %4299 = vmatpush1.bf16.msra.mxu0 %v3377
        %4300 = vmatprep.subr.bf16.mxu0 %v3382
        %4301 = vmatpush1.bf16.msra.mxu0 %v3381
        %4302 = vmatprep.subr.bf16.mxu0 %v3386
        %4303 = vmatpush1.bf16.msra.mxu0 %v3385
        %4304 = vmatprep.subr.bf16.mxu0 %v3390
        %4305 = vmatpush1.bf16.msra.mxu0 %v3389
        %4306 = vmatprep.subr.bf16.mxu0 %v3394
        %4307 = vmatpush1.bf16.msra.mxu0 %v3393
        %4308 = vmatprep.mubr.bf16.mxu0 %v1576
        %4309 = vmatmul.mubr.bf16.gmra.mrb[0].mxu0 %v1575
        %v4310 = vpop.f32.mrb[0].mxu0
        %v4311 = vadd.f32 %v4270, %v4310
        %v4312 = vpop.f32.mrb[0].mxu0
        %v4313 = vadd.f32 %v4272, %v4312
        %v4314 = vpop.f32.mrb[0].mxu0
        %v4315 = vpop.f32.mrb[0].mxu0
        %4316 = vdwg.mxu0
        %4317 = vmatprep.subr.bf16.mxu0 %v3398
        %4318 = vmatpush1.bf16.msra.mxu0 %v3397
        %4319 = vmatprep.subr.bf16.mxu0 %v3402
        %4320 = vmatpush1.bf16.msra.mxu0 %v3401
        %4321 = vmatprep.subr.bf16.mxu0 %v3406
        %4322 = vmatpush1.bf16.msra.mxu0 %v3405
        %4323 = vmatprep.subr.bf16.mxu0 %v3410
        %4324 = vmatpush1.bf16.msra.mxu0 %v3409
        %4325 = vmatprep.subr.bf16.mxu0 %v3414
        %4326 = vmatpush1.bf16.msra.mxu0 %v3413
        %4327 = vmatprep.subr.bf16.mxu0 %v3418
        %4328 = vmatpush1.bf16.msra.mxu0 %v3417
        %4329 = vmatprep.subr.bf16.mxu0 %v3422
        %4330 = vmatpush1.bf16.msra.mxu0 %v3421
        %4331 = vmatprep.subr.bf16.mxu0 %v3426
        %4332 = vmatpush1.bf16.msra.mxu0 %v3425
        %4333 = vmatprep.subr.bf16.mxu0 %v3430
        %4334 = vmatpush1.bf16.msra.mxu0 %v3429
        %4335 = vmatprep.subr.bf16.mxu0 %v3434
        %4336 = vmatpush1.bf16.msra.mxu0 %v3433
        %4337 = vmatprep.subr.bf16.mxu0 %v3438
        %4338 = vmatpush1.bf16.msra.mxu0 %v3437
        %4339 = vmatprep.subr.bf16.mxu0 %v3442
        %4340 = vmatpush1.bf16.msra.mxu0 %v3441
        %4341 = vmatprep.subr.bf16.mxu0 %v3446
        %4342 = vmatpush1.bf16.msra.mxu0 %v3445
        %4343 = vmatprep.subr.bf16.mxu0 %v3450
        %4344 = vmatpush1.bf16.msra.mxu0 %v3449
        %4345 = vmatprep.subr.bf16.mxu0 %v3454
        %4346 = vmatpush1.bf16.msra.mxu0 %v3453
        %4347 = vmatprep.subr.bf16.mxu0 %v3458
        %4348 = vmatpush1.bf16.msra.mxu0 %v3457
        %4349 = vmatprep.mubr.bf16.mxu0 %v1578
        %4350 = vmatmul.mubr.bf16.gmra.mrb[0].mxu0 %v1577
        %v4351 = vpop.f32.mrb[0].mxu0
        %v4352 = vadd.f32 %v4311, %v4351
        %v4353 = vpop.f32.mrb[0].mxu0
        %v4354 = vadd.f32 %v4313, %v4353
        %v4355 = vpop.f32.mrb[0].mxu0
        %v4356 = vpop.f32.mrb[0].mxu0
        %4357 = vdwg.mxu0
        %4358 = vmatprep.subr.bf16.mxu0 %v3462
        %4359 = vmatpush1.bf16.msra.mxu0 %v3461
        %4360 = vmatprep.subr.bf16.mxu0 %v3466
        %4361 = vmatpush1.bf16.msra.mxu0 %v3465
        %4362 = vmatprep.subr.bf16.mxu0 %v3470
        %4363 = vmatpush1.bf16.msra.mxu0 %v3469
        %4364 = vmatprep.subr.bf16.mxu0 %v3474
        %4365 = vmatpush1.bf16.msra.mxu0 %v3473
        %4366 = vmatprep.subr.bf16.mxu0 %v3478
        %4367 = vmatpush1.bf16.msra.mxu0 %v3477
        %4368 = vmatprep.subr.bf16.mxu0 %v3482
        %4369 = vmatpush1.bf16.msra.mxu0 %v3481
        %4370 = vmatprep.subr.bf16.mxu0 %v3486
        %4371 = vmatpush1.bf16.msra.mxu0 %v3485
        %4372 = vmatprep.subr.bf16.mxu0 %v3490
        %4373 = vmatpush1.bf16.msra.mxu0 %v3489
        %4374 = vmatprep.subr.bf16.mxu0 %v3494
        %4375 = vmatpush1.bf16.msra.mxu0 %v3493
        %4376 = vmatprep.subr.bf16.mxu0 %v3498
        %4377 = vmatpush1.bf16.msra.mxu0 %v3497
        %4378 = vmatprep.subr.bf16.mxu0 %v3502
        %4379 = vmatpush1.bf16.msra.mxu0 %v3501
        %4380 = vmatprep.subr.bf16.mxu0 %v3506
        %4381 = vmatpush1.bf16.msra.mxu0 %v3505
        %4382 = vmatprep.subr.bf16.mxu0 %v3510
        %4383 = vmatpush1.bf16.msra.mxu0 %v3509
        %4384 = vmatprep.subr.bf16.mxu0 %v3514
        %4385 = vmatpush1.bf16.msra.mxu0 %v3513
        %4386 = vmatprep.subr.bf16.mxu0 %v3518
        %4387 = vmatpush1.bf16.msra.mxu0 %v3517
        %4388 = vmatprep.subr.bf16.mxu0 %v3522
        %4389 = vmatpush1.bf16.msra.mxu0 %v3521
        %4390 = vmatprep.mubr.bf16.mxu0 %v1580
        %4391 = vmatmul.mubr.bf16.gmra.mrb[0].mxu0 %v1579
        %v4392 = vpop.f32.mrb[0].mxu0
        %v4393 = vadd.f32 %v4352, %v4392
        %v4394 = vpop.f32.mrb[0].mxu0
        %v4395 = vadd.f32 %v4354, %v4394
        %v4396 = vpop.f32.mrb[0].mxu0
        %v4397 = vpop.f32.mrb[0].mxu0
        %4398 = vdwg.mxu0
        %p4399 = scmp.eq.s32.totalorder %s20, 0
        %s4400 = scalar_select %p4399, 1, 0
        %s4401 = scvt.s32.f32 %s4400
        %v4402 = vpack.c.bf16 %v4147, %v4147
        %v4403 = vpack.c.bf16 %v4149, %v4149
        %v4404 = vpack.c.bf16 %v4393, %v4393
        %v4405 = vpack.c.bf16 %v4395, %v4395
        %v4406 = vld [vmem:[%s1156] sm:$0xff]
        %v4407 = vld [vmem:[%s1156 + $0x8] sm:$0xff]
        %v4408 = vld [vmem:[%s1156 + $0x10] sm:$0xff]
        %v4409 = vld [vmem:[%s1156 + $0x18] sm:$0xff]
        %v4410 = vld [vmem:[%s1156 + $0x20] sm:$0xff]
        %v4411 = vld [vmem:[%s1156 + $0x28] sm:$0xff]
        %v4412 = vld [vmem:[%s1156 + $0x30] sm:$0xff]
        %v4413 = vld [vmem:[%s1156 + $0x38] sm:$0xff]
        %v4414 = vld [vmem:[%s1156 + $0x40] sm:$0xff]
        %v4415 = vld [vmem:[%s1156 + $0x48] sm:$0xff]
        %v4416 = vld [vmem:[%s1156 + $0x50] sm:$0xff]
        %v4417 = vld [vmem:[%s1156 + $0x58] sm:$0xff]
        %v4418 = vld [vmem:[%s1156 + $0x60] sm:$0xff]
        %v4419 = vld [vmem:[%s1156 + $0x68] sm:$0xff]
        %v4420 = vld [vmem:[%s1156 + $0x70] sm:$0xff]
        %v4421 = vld [vmem:[%s1156 + $0x78] sm:$0xff]
        %v4422 = vld [vmem:[%s1156 + $0x80] sm:$0xff]
        %v4423 = vld [vmem:[%s1156 + $0x88] sm:$0xff]
        %v4424 = vld [vmem:[%s1156 + $0x90] sm:$0xff]
        %v4425 = vld [vmem:[%s1156 + $0x98] sm:$0xff]
        %v4426 = vld [vmem:[%s1156 + $0xa0] sm:$0xff]
        %v4427 = vld [vmem:[%s1156 + $0xa8] sm:$0xff]
        %v4428 = vld [vmem:[%s1156 + $0xb0] sm:$0xff]
        %v4429 = vld [vmem:[%s1156 + $0xb8] sm:$0xff]
        %v4430 = vld [vmem:[%s1156 + $0xc0] sm:$0xff]
        %v4431 = vld [vmem:[%s1156 + $0xc8] sm:$0xff]
        %v4432 = vld [vmem:[%s1156 + $0xd0] sm:$0xff]
        %v4433 = vld [vmem:[%s1156 + $0xd8] sm:$0xff]
        %v4434 = vld [vmem:[%s1156 + $0xe0] sm:$0xff]
        %v4435 = vld [vmem:[%s1156 + $0xe8] sm:$0xff]
        %v4436 = vld [vmem:[%s1156 + $0xf0] sm:$0xff]
        %v4437 = vld [vmem:[%s1156 + $0xf8] sm:$0xff]
        %v4438 = vld [vmem:[%s1156 + $0x100] sm:$0xff]
        %v4439 = vld [vmem:[%s1156 + $0x108] sm:$0xff]
        %v4440 = vld [vmem:[%s1156 + $0x110] sm:$0xff]
        %v4441 = vld [vmem:[%s1156 + $0x118] sm:$0xff]
        %v4442 = vld [vmem:[%s1156 + $0x120] sm:$0xff]
        %v4443 = vld [vmem:[%s1156 + $0x128] sm:$0xff]
        %v4444 = vld [vmem:[%s1156 + $0x130] sm:$0xff]
        %v4445 = vld [vmem:[%s1156 + $0x138] sm:$0xff]
        %v4446 = vld [vmem:[%s1156 + $0x140] sm:$0xff]
        %v4447 = vld [vmem:[%s1156 + $0x148] sm:$0xff]
        %v4448 = vld [vmem:[%s1156 + $0x150] sm:$0xff]
        %v4449 = vld [vmem:[%s1156 + $0x158] sm:$0xff]
        %v4450 = vld [vmem:[%s1156 + $0x160] sm:$0xff]
        %v4451 = vld [vmem:[%s1156 + $0x168] sm:$0xff]
        %v4452 = vld [vmem:[%s1156 + $0x170] sm:$0xff]
        %v4453 = vld [vmem:[%s1156 + $0x178] sm:$0xff]
        %v4454 = vld [vmem:[%s1156 + $0x180] sm:$0xff]
        %v4455 = vld [vmem:[%s1156 + $0x188] sm:$0xff]
        %v4456 = vld [vmem:[%s1156 + $0x190] sm:$0xff]
        %v4457 = vld [vmem:[%s1156 + $0x198] sm:$0xff]
        %v4458 = vld [vmem:[%s1156 + $0x1a0] sm:$0xff]
        %v4459 = vld [vmem:[%s1156 + $0x1a8] sm:$0xff]
        %v4460 = vld [vmem:[%s1156 + $0x1b0] sm:$0xff]
        %v4461 = vld [vmem:[%s1156 + $0x1b8] sm:$0xff]
        %v4462 = vld [vmem:[%s1156 + $0x1c0] sm:$0xff]
        %v4463 = vld [vmem:[%s1156 + $0x1c8] sm:$0xff]
        %v4464 = vld [vmem:[%s1156 + $0x1d0] sm:$0xff]
        %v4465 = vld [vmem:[%s1156 + $0x1d8] sm:$0xff]
        %v4466 = vld [vmem:[%s1156 + $0x1e0] sm:$0xff]
        %v4467 = vld [vmem:[%s1156 + $0x1e8] sm:$0xff]
        %v4468 = vld [vmem:[%s1156 + $0x1f0] sm:$0xff]
        %v4469 = vld [vmem:[%s1156 + $0x1f8] sm:$0xff]
        %v4470 = vld [vmem:[%s6] sm:$0x3]
        %v4471 = vstv %s4401
        %v4472 = vmul.f32 %v4471, %v4470
        %v4474 = vlaneseq
        %v4475 = vshrl.u32 %v4474, 7
        %v4476 = vsub.s32 0, %v4475
        %v4477 = vrot.slane %v4472, %v4476
        %v4478 = vlaneseq
        %v4479 = vshrl.u32 %v4478, 7
        %v4480 = vsub.s32 1, %v4479
        %v4481 = vrot.slane %v4472, %v4480
        %v4548 = vunpack.c.l.b16 %v4406
        %v4549 = vunpack.c.h.b16 %v4406
        %v4550 = vunpack.c.l.b16 %v4407
        %v4551 = vunpack.c.h.b16 %v4407
        %v4552 = vunpack.c.l.b16 %v4408
        %v4553 = vunpack.c.h.b16 %v4408
        %v4554 = vunpack.c.l.b16 %v4409
        %v4555 = vunpack.c.h.b16 %v4409
        %v4556 = vunpack.c.l.b16 %v4410
        %v4557 = vunpack.c.h.b16 %v4410
        %v4558 = vunpack.c.l.b16 %v4411
        %v4559 = vunpack.c.h.b16 %v4411
        %v4560 = vunpack.c.l.b16 %v4412
        %v4561 = vunpack.c.h.b16 %v4412
        %v4562 = vunpack.c.l.b16 %v4413
        %v4563 = vunpack.c.h.b16 %v4413
        %v4564 = vunpack.c.l.b16 %v4414
        %v4565 = vunpack.c.h.b16 %v4414
        %v4566 = vunpack.c.l.b16 %v4415
        %v4567 = vunpack.c.h.b16 %v4415
        %v4568 = vunpack.c.l.b16 %v4416
        %v4569 = vunpack.c.h.b16 %v4416
        %v4570 = vunpack.c.l.b16 %v4417
        %v4571 = vunpack.c.h.b16 %v4417
        %v4572 = vunpack.c.l.b16 %v4418
        %v4573 = vunpack.c.h.b16 %v4418
        %v4574 = vunpack.c.l.b16 %v4419
        %v4575 = vunpack.c.h.b16 %v4419
        %v4576 = vunpack.c.l.b16 %v4420
        %v4577 = vunpack.c.h.b16 %v4420
        %v4578 = vunpack.c.l.b16 %v4421
        %v4579 = vunpack.c.h.b16 %v4421
        %v4580 = vunpack.c.l.b16 %v4422
        %v4581 = vunpack.c.h.b16 %v4422
        %v4582 = vunpack.c.l.b16 %v4423
        %v4583 = vunpack.c.h.b16 %v4423
        %v4584 = vunpack.c.l.b16 %v4424
        %v4585 = vunpack.c.h.b16 %v4424
        %v4586 = vunpack.c.l.b16 %v4425
        %v4587 = vunpack.c.h.b16 %v4425
        %v4588 = vunpack.c.l.b16 %v4426
        %v4589 = vunpack.c.h.b16 %v4426
        %v4590 = vunpack.c.l.b16 %v4427
        %v4591 = vunpack.c.h.b16 %v4427
        %v4592 = vunpack.c.l.b16 %v4428
        %v4593 = vunpack.c.h.b16 %v4428
        %v4594 = vunpack.c.l.b16 %v4429
        %v4595 = vunpack.c.h.b16 %v4429
        %v4596 = vunpack.c.l.b16 %v4430
        %v4597 = vunpack.c.h.b16 %v4430
        %v4598 = vunpack.c.l.b16 %v4431
        %v4599 = vunpack.c.h.b16 %v4431
        %v4600 = vunpack.c.l.b16 %v4432
        %v4601 = vunpack.c.h.b16 %v4432
        %v4602 = vunpack.c.l.b16 %v4433
        %v4603 = vunpack.c.h.b16 %v4433
        %v4604 = vunpack.c.l.b16 %v4434
        %v4605 = vunpack.c.h.b16 %v4434
        %v4606 = vunpack.c.l.b16 %v4435
        %v4607 = vunpack.c.h.b16 %v4435
        %v4608 = vunpack.c.l.b16 %v4436
        %v4609 = vunpack.c.h.b16 %v4436
        %v4610 = vunpack.c.l.b16 %v4437
        %v4611 = vunpack.c.h.b16 %v4437
        %v4612 = vunpack.c.l.b16 %v4438
        %v4613 = vunpack.c.h.b16 %v4438
        %v4614 = vunpack.c.l.b16 %v4439
        %v4615 = vunpack.c.h.b16 %v4439
        %v4616 = vunpack.c.l.b16 %v4440
        %v4617 = vunpack.c.h.b16 %v4440
        %v4618 = vunpack.c.l.b16 %v4441
        %v4619 = vunpack.c.h.b16 %v4441
        %v4620 = vunpack.c.l.b16 %v4442
        %v4621 = vunpack.c.h.b16 %v4442
        %v4622 = vunpack.c.l.b16 %v4443
        %v4623 = vunpack.c.h.b16 %v4443
        %v4624 = vunpack.c.l.b16 %v4444
        %v4625 = vunpack.c.h.b16 %v4444
        %v4626 = vunpack.c.l.b16 %v4445
        %v4627 = vunpack.c.h.b16 %v4445
        %v4628 = vunpack.c.l.b16 %v4446
        %v4629 = vunpack.c.h.b16 %v4446
        %v4630 = vunpack.c.l.b16 %v4447
        %v4631 = vunpack.c.h.b16 %v4447
        %v4632 = vunpack.c.l.b16 %v4448
        %v4633 = vunpack.c.h.b16 %v4448
        %v4634 = vunpack.c.l.b16 %v4449
        %v4635 = vunpack.c.h.b16 %v4449
        %v4636 = vunpack.c.l.b16 %v4450
        %v4637 = vunpack.c.h.b16 %v4450
        %v4638 = vunpack.c.l.b16 %v4451
        %v4639 = vunpack.c.h.b16 %v4451
        %v4640 = vunpack.c.l.b16 %v4452
        %v4641 = vunpack.c.h.b16 %v4452
        %v4642 = vunpack.c.l.b16 %v4453
        %v4643 = vunpack.c.h.b16 %v4453
        %v4644 = vunpack.c.l.b16 %v4454
        %v4645 = vunpack.c.h.b16 %v4454
        %v4646 = vunpack.c.l.b16 %v4455
        %v4647 = vunpack.c.h.b16 %v4455
        %v4648 = vunpack.c.l.b16 %v4456
        %v4649 = vunpack.c.h.b16 %v4456
        %v4650 = vunpack.c.l.b16 %v4457
        %v4651 = vunpack.c.h.b16 %v4457
        %v4652 = vunpack.c.l.b16 %v4458
        %v4653 = vunpack.c.h.b16 %v4458
        %v4654 = vunpack.c.l.b16 %v4459
        %v4655 = vunpack.c.h.b16 %v4459
        %v4656 = vunpack.c.l.b16 %v4460
        %v4657 = vunpack.c.h.b16 %v4460
        %v4658 = vunpack.c.l.b16 %v4461
        %v4659 = vunpack.c.h.b16 %v4461
        %v4660 = vunpack.c.l.b16 %v4462
        %v4661 = vunpack.c.h.b16 %v4462
        %v4662 = vunpack.c.l.b16 %v4463
        %v4663 = vunpack.c.h.b16 %v4463
        %v4664 = vunpack.c.l.b16 %v4464
        %v4665 = vunpack.c.h.b16 %v4464
        %v4666 = vunpack.c.l.b16 %v4465
        %v4667 = vunpack.c.h.b16 %v4465
        %v4668 = vunpack.c.l.b16 %v4466
        %v4669 = vunpack.c.h.b16 %v4466
        %v4670 = vunpack.c.l.b16 %v4467
        %v4671 = vunpack.c.h.b16 %v4467
        %v4672 = vunpack.c.l.b16 %v4468
        %v4673 = vunpack.c.h.b16 %v4468
        %v4674 = vunpack.c.l.b16 %v4469
        %v4675 = vunpack.c.h.b16 %v4469
        %v4676 = vpack.c.b16 %v4550, %v4548
        %v4677 = vpack.c.b16 %v4551, %v4549
        %v4678 = vpack.c.b16 %v4554, %v4552
        %v4679 = vpack.c.b16 %v4555, %v4553
        %v4680 = vpack.c.b16 %v4558, %v4556
        %v4681 = vpack.c.b16 %v4559, %v4557
        %v4682 = vpack.c.b16 %v4562, %v4560
        %v4683 = vpack.c.b16 %v4563, %v4561
        %v4684 = vpack.c.b16 %v4566, %v4564
        %v4685 = vpack.c.b16 %v4567, %v4565
        %v4686 = vpack.c.b16 %v4570, %v4568
        %v4687 = vpack.c.b16 %v4571, %v4569
        %v4688 = vpack.c.b16 %v4574, %v4572
        %v4689 = vpack.c.b16 %v4575, %v4573
        %v4690 = vpack.c.b16 %v4578, %v4576
        %v4691 = vpack.c.b16 %v4579, %v4577
        %v4692 = vpack.c.b16 %v4582, %v4580
        %v4693 = vpack.c.b16 %v4583, %v4581
        %v4694 = vpack.c.b16 %v4586, %v4584
        %v4695 = vpack.c.b16 %v4587, %v4585
        %v4696 = vpack.c.b16 %v4590, %v4588
        %v4697 = vpack.c.b16 %v4591, %v4589
        %v4698 = vpack.c.b16 %v4594, %v4592
        %v4699 = vpack.c.b16 %v4595, %v4593
        %v4700 = vpack.c.b16 %v4598, %v4596
        %v4701 = vpack.c.b16 %v4599, %v4597
        %v4702 = vpack.c.b16 %v4602, %v4600
        %v4703 = vpack.c.b16 %v4603, %v4601
        %v4704 = vpack.c.b16 %v4606, %v4604
        %v4705 = vpack.c.b16 %v4607, %v4605
        %v4706 = vpack.c.b16 %v4610, %v4608
        %v4707 = vpack.c.b16 %v4611, %v4609
        %v4708 = vpack.c.b16 %v4614, %v4612
        %v4709 = vpack.c.b16 %v4615, %v4613
        %v4710 = vpack.c.b16 %v4618, %v4616
        %v4711 = vpack.c.b16 %v4619, %v4617
        %v4712 = vpack.c.b16 %v4622, %v4620
        %v4713 = vpack.c.b16 %v4623, %v4621
        %v4714 = vpack.c.b16 %v4626, %v4624
        %v4715 = vpack.c.b16 %v4627, %v4625
        %v4716 = vpack.c.b16 %v4630, %v4628
        %v4717 = vpack.c.b16 %v4631, %v4629
        %v4718 = vpack.c.b16 %v4634, %v4632
        %v4719 = vpack.c.b16 %v4635, %v4633
        %v4720 = vpack.c.b16 %v4638, %v4636
        %v4721 = vpack.c.b16 %v4639, %v4637
        %v4722 = vpack.c.b16 %v4642, %v4640
        %v4723 = vpack.c.b16 %v4643, %v4641
        %v4724 = vpack.c.b16 %v4646, %v4644
        %v4725 = vpack.c.b16 %v4647, %v4645
        %v4726 = vpack.c.b16 %v4650, %v4648
        %v4727 = vpack.c.b16 %v4651, %v4649
        %v4728 = vpack.c.b16 %v4654, %v4652
        %v4729 = vpack.c.b16 %v4655, %v4653
        %v4730 = vpack.c.b16 %v4658, %v4656
        %v4731 = vpack.c.b16 %v4659, %v4657
        %v4732 = vpack.c.b16 %v4662, %v4660
        %v4733 = vpack.c.b16 %v4663, %v4661
        %v4734 = vpack.c.b16 %v4666, %v4664
        %v4735 = vpack.c.b16 %v4667, %v4665
        %v4736 = vpack.c.b16 %v4670, %v4668
        %v4737 = vpack.c.b16 %v4671, %v4669
        %v4738 = vpack.c.b16 %v4674, %v4672
        %v4739 = vpack.c.b16 %v4675, %v4673
        %4804 = vmatprep.subr.bf16.mxu0 %v4677
        %4805 = vmatpush1.bf16.msra.mxu0 %v4676
        %4806 = vmatprep.subr.bf16.mxu0 %v4679
        %4807 = vmatpush1.bf16.msra.mxu0 %v4678
        %4808 = vmatprep.subr.bf16.mxu0 %v4681
        %4809 = vmatpush1.bf16.msra.mxu0 %v4680
        %4810 = vmatprep.subr.bf16.mxu0 %v4683
        %4811 = vmatpush1.bf16.msra.mxu0 %v4682
        %4812 = vmatprep.subr.bf16.mxu0 %v4685
        %4813 = vmatpush1.bf16.msra.mxu0 %v4684
        %4814 = vmatprep.subr.bf16.mxu0 %v4687
        %4815 = vmatpush1.bf16.msra.mxu0 %v4686
        %4816 = vmatprep.subr.bf16.mxu0 %v4689
        %4817 = vmatpush1.bf16.msra.mxu0 %v4688
        %4818 = vmatprep.subr.bf16.mxu0 %v4691
        %4819 = vmatpush1.bf16.msra.mxu0 %v4690
        %4820 = vmatprep.subr.bf16.mxu0 %v4693
        %4821 = vmatpush1.bf16.msra.mxu0 %v4692
        %4822 = vmatprep.subr.bf16.mxu0 %v4695
        %4823 = vmatpush1.bf16.msra.mxu0 %v4694
        %4824 = vmatprep.subr.bf16.mxu0 %v4697
        %4825 = vmatpush1.bf16.msra.mxu0 %v4696
        %4826 = vmatprep.subr.bf16.mxu0 %v4699
        %4827 = vmatpush1.bf16.msra.mxu0 %v4698
        %4828 = vmatprep.subr.bf16.mxu0 %v4701
        %4829 = vmatpush1.bf16.msra.mxu0 %v4700
        %4830 = vmatprep.subr.bf16.mxu0 %v4703
        %4831 = vmatpush1.bf16.msra.mxu0 %v4702
        %4832 = vmatprep.subr.bf16.mxu0 %v4705
        %4833 = vmatpush1.bf16.msra.mxu0 %v4704
        %4834 = vmatprep.subr.bf16.mxu0 %v4707
        %4835 = vmatpush1.bf16.msra.mxu0 %v4706
        %4836 = vmatprep.mubr.bf16.mxu0 %v4403
        %4837 = vmatmul.mubr.bf16.gmra.mrb[0].mxu0 %v4402
        %v4838 = vpop.f32.mrb[0].mxu0
        %v4839 = vadd.f32 %v4477, %v4838
        %v4840 = vpop.f32.mrb[0].mxu0
        %v4841 = vadd.f32 %v4481, %v4840
        %v4842 = vpop.f32.mrb[0].mxu0
        %v4843 = vpop.f32.mrb[0].mxu0
        %4844 = vdwg.mxu0
        %4845 = vmatprep.subr.bf16.mxu0 %v4709
        %4846 = vmatpush1.bf16.msra.mxu0 %v4708
        %4847 = vmatprep.subr.bf16.mxu0 %v4711
        %4848 = vmatpush1.bf16.msra.mxu0 %v4710
        %4849 = vmatprep.subr.bf16.mxu0 %v4713
        %4850 = vmatpush1.bf16.msra.mxu0 %v4712
        %4851 = vmatprep.subr.bf16.mxu0 %v4715
        %4852 = vmatpush1.bf16.msra.mxu0 %v4714
        %4853 = vmatprep.subr.bf16.mxu0 %v4717
        %4854 = vmatpush1.bf16.msra.mxu0 %v4716
        %4855 = vmatprep.subr.bf16.mxu0 %v4719
        %4856 = vmatpush1.bf16.msra.mxu0 %v4718
        %4857 = vmatprep.subr.bf16.mxu0 %v4721
        %4858 = vmatpush1.bf16.msra.mxu0 %v4720
        %4859 = vmatprep.subr.bf16.mxu0 %v4723
        %4860 = vmatpush1.bf16.msra.mxu0 %v4722
        %4861 = vmatprep.subr.bf16.mxu0 %v4725
        %4862 = vmatpush1.bf16.msra.mxu0 %v4724
        %4863 = vmatprep.subr.bf16.mxu0 %v4727
        %4864 = vmatpush1.bf16.msra.mxu0 %v4726
        %4865 = vmatprep.subr.bf16.mxu0 %v4729
        %4866 = vmatpush1.bf16.msra.mxu0 %v4728
        %4867 = vmatprep.subr.bf16.mxu0 %v4731
        %4868 = vmatpush1.bf16.msra.mxu0 %v4730
        %4869 = vmatprep.subr.bf16.mxu0 %v4733
        %4870 = vmatpush1.bf16.msra.mxu0 %v4732
        %4871 = vmatprep.subr.bf16.mxu0 %v4735
        %4872 = vmatpush1.bf16.msra.mxu0 %v4734
        %4873 = vmatprep.subr.bf16.mxu0 %v4737
        %4874 = vmatpush1.bf16.msra.mxu0 %v4736
        %4875 = vmatprep.subr.bf16.mxu0 %v4739
        %4876 = vmatpush1.bf16.msra.mxu0 %v4738
        %4877 = vmatprep.mubr.bf16.mxu0 %v4405
        %4878 = vmatmul.mubr.bf16.gmra.mrb[0].mxu0 %v4404
        %v4879 = vpop.f32.mrb[0].mxu0
        %v4880 = vadd.f32 %v4839, %v4879
        %v4881 = vpop.f32.mrb[0].mxu0
        %v4882 = vadd.f32 %v4841, %v4881
        %v4883 = vpop.f32.mrb[0].mxu0
        %v4884 = vpop.f32.mrb[0].mxu0
        %4885 = vdwg.mxu0
        %v4886 = vpack.c.bf16 %v4880, %v4880
        %v4887 = vpack.c.bf16 %v4882, %v4882
        %v4888 = vld [vmem:[%s7] sm:$0xf]
        %v4889 = vld [vmem:[%s7 + $0x4] sm:$0xf]
        %v4890 = vld [vmem:[%s7 + $0x8] sm:$0xf]
        %v4891 = vld [vmem:[%s7 + $0xc] sm:$0xf]
        %v4892 = vld [vmem:[%s7 + $0x10] sm:$0xf]
        %v4893 = vld [vmem:[%s7 + $0x14] sm:$0xf]
        %v4894 = vld [vmem:[%s7 + $0x18] sm:$0xf]
        %v4895 = vld [vmem:[%s7 + $0x1c] sm:$0xf]
        %v4896 = vld [vmem:[%s7 + $0x20] sm:$0xf]
        %v4897 = vld [vmem:[%s7 + $0x24] sm:$0xf]
        %v4898 = vld [vmem:[%s7 + $0x28] sm:$0xf]
        %v4899 = vld [vmem:[%s7 + $0x2c] sm:$0xf]
        %v4900 = vld [vmem:[%s7 + $0x30] sm:$0xf]
        %v4901 = vld [vmem:[%s7 + $0x34] sm:$0xf]
        %v4902 = vld [vmem:[%s7 + $0x38] sm:$0xf]
        %v4903 = vld [vmem:[%s7 + $0x3c] sm:$0xf]
        %v4904 = vld [vmem:[%s7 + $0x40] sm:$0xf]
        %v4905 = vld [vmem:[%s7 + $0x44] sm:$0xf]
        %v4906 = vld [vmem:[%s7 + $0x48] sm:$0xf]
        %v4907 = vld [vmem:[%s7 + $0x4c] sm:$0xf]
        %v4908 = vld [vmem:[%s7 + $0x50] sm:$0xf]
        %v4909 = vld [vmem:[%s7 + $0x54] sm:$0xf]
        %v4910 = vld [vmem:[%s7 + $0x58] sm:$0xf]
        %v4911 = vld [vmem:[%s7 + $0x5c] sm:$0xf]
        %v4912 = vld [vmem:[%s7 + $0x60] sm:$0xf]
        %v4913 = vld [vmem:[%s7 + $0x64] sm:$0xf]
        %v4914 = vld [vmem:[%s7 + $0x68] sm:$0xf]
        %v4915 = vld [vmem:[%s7 + $0x6c] sm:$0xf]
        %v4916 = vld [vmem:[%s7 + $0x70] sm:$0xf]
        %v4917 = vld [vmem:[%s7 + $0x74] sm:$0xf]
        %v4918 = vld [vmem:[%s7 + $0x78] sm:$0xf]
        %v4919 = vld [vmem:[%s7 + $0x7c] sm:$0xf]
        %v4920 = vld [vmem:[%s8] sm:$0x1]
        %v4921 = vmul.f32 %v4471, %v4920
        %v4923 = vlaneseq
        %v4924 = vshrl.u32 %v4923, 7
        %v4925 = vsub.s32 0, %v4924
        %v4926 = vrot.slane %v4921, %v4925
        %v4960 = vunpack.c.l.b16 %v4888
        %v4961 = vunpack.c.l.b16 %v4889
        %v4962 = vunpack.c.l.b16 %v4890
        %v4963 = vunpack.c.l.b16 %v4891
        %v4964 = vunpack.c.l.b16 %v4892
        %v4965 = vunpack.c.l.b16 %v4893
        %v4966 = vunpack.c.l.b16 %v4894
        %v4967 = vunpack.c.l.b16 %v4895
        %v4968 = vunpack.c.l.b16 %v4896
        %v4969 = vunpack.c.l.b16 %v4897
        %v4970 = vunpack.c.l.b16 %v4898
        %v4971 = vunpack.c.l.b16 %v4899
        %v4972 = vunpack.c.l.b16 %v4900
        %v4973 = vunpack.c.l.b16 %v4901
        %v4974 = vunpack.c.l.b16 %v4902
        %v4975 = vunpack.c.l.b16 %v4903
        %v4976 = vunpack.c.l.b16 %v4904
        %v4977 = vunpack.c.l.b16 %v4905
        %v4978 = vunpack.c.l.b16 %v4906
        %v4979 = vunpack.c.l.b16 %v4907
        %v4980 = vunpack.c.l.b16 %v4908
        %v4981 = vunpack.c.l.b16 %v4909
        %v4982 = vunpack.c.l.b16 %v4910
        %v4983 = vunpack.c.l.b16 %v4911
        %v4984 = vunpack.c.l.b16 %v4912
        %v4985 = vunpack.c.l.b16 %v4913
        %v4986 = vunpack.c.l.b16 %v4914
        %v4987 = vunpack.c.l.b16 %v4915
        %v4988 = vunpack.c.l.b16 %v4916
        %v4989 = vunpack.c.l.b16 %v4917
        %v4990 = vunpack.c.l.b16 %v4918
        %v4991 = vunpack.c.l.b16 %v4919
        %v4992 = vpack.c.b16 %v4961, %v4960
        %v4993 = vpack.c.b16 %v4963, %v4962
        %v4994 = vpack.c.b16 %v4965, %v4964
        %v4995 = vpack.c.b16 %v4967, %v4966
        %v4996 = vpack.c.b16 %v4969, %v4968
        %v4997 = vpack.c.b16 %v4971, %v4970
        %v4998 = vpack.c.b16 %v4973, %v4972
        %v4999 = vpack.c.b16 %v4975, %v4974
        %v5000 = vpack.c.b16 %v4977, %v4976
        %v5001 = vpack.c.b16 %v4979, %v4978
        %v5002 = vpack.c.b16 %v4981, %v4980
        %v5003 = vpack.c.b16 %v4983, %v4982
        %v5004 = vpack.c.b16 %v4985, %v4984
        %v5005 = vpack.c.b16 %v4987, %v4986
        %v5006 = vpack.c.b16 %v4989, %v4988
        %v5007 = vpack.c.b16 %v4991, %v4990
        %5024 = vmatprep.subr.bf16.mxu0 0
        %5025 = vmatpush1.bf16.msra.mxu0 %v4992
        %5026 = vmatprep.subr.bf16.mxu0 0
        %5027 = vmatpush1.bf16.msra.mxu0 %v4993
        %5028 = vmatprep.subr.bf16.mxu0 0
        %5029 = vmatpush1.bf16.msra.mxu0 %v4994
        %5030 = vmatprep.subr.bf16.mxu0 0
        %5031 = vmatpush1.bf16.msra.mxu0 %v4995
        %5032 = vmatprep.subr.bf16.mxu0 0
        %5033 = vmatpush1.bf16.msra.mxu0 %v4996
        %5034 = vmatprep.subr.bf16.mxu0 0
        %5035 = vmatpush1.bf16.msra.mxu0 %v4997
        %5036 = vmatprep.subr.bf16.mxu0 0
        %5037 = vmatpush1.bf16.msra.mxu0 %v4998
        %5038 = vmatprep.subr.bf16.mxu0 0
        %5039 = vmatpush1.bf16.msra.mxu0 %v4999
        %5040 = vmatprep.subr.bf16.mxu0 0
        %5041 = vmatpush1.bf16.msra.mxu0 %v5000
        %5042 = vmatprep.subr.bf16.mxu0 0
        %5043 = vmatpush1.bf16.msra.mxu0 %v5001
        %5044 = vmatprep.subr.bf16.mxu0 0
        %5045 = vmatpush1.bf16.msra.mxu0 %v5002
        %5046 = vmatprep.subr.bf16.mxu0 0
        %5047 = vmatpush1.bf16.msra.mxu0 %v5003
        %5048 = vmatprep.subr.bf16.mxu0 0
        %5049 = vmatpush1.bf16.msra.mxu0 %v5004
        %5050 = vmatprep.subr.bf16.mxu0 0
        %5051 = vmatpush1.bf16.msra.mxu0 %v5005
        %5052 = vmatprep.subr.bf16.mxu0 0
        %5053 = vmatpush1.bf16.msra.mxu0 %v5006
        %5054 = vmatprep.subr.bf16.mxu0 0
        %5055 = vmatpush1.bf16.msra.mxu0 %v5007
        %5056 = vmatprep.mubr.bf16.mxu0 %v4887
        %5057 = vmatmul.mubr.bf16.gmra.mrb[0].mxu0 %v4886
        %v5058 = vpop.f32.mrb[0].mxu0
        %v5059 = vadd.f32 %v4926, %v5058
        %v5060 = vpop.f32.mrb[0].mxu0
        %v5061 = vpop.f32.mrb[0].mxu0
        %v5062 = vpop.f32.mrb[0].mxu0
        %5063 = vdwg.mxu0
        %vm5064 = vcmask 25600
        %5065 = vst.msk [vmem:[%s1161] sm:$0x3] %vm5064, %v5059
        %p5066 = scmp.lt.s32.totalorder %s20, 1
        %s5067 = scalar_select %p5066, %s20, 1
        %s5068 = smul.addr %s5067, 2
        %s5069 = scalar_lea.vmem %s9, %s5068
        // Predicated region
        $region80: #{net_forward.1} parent=74 // pred_check
          %p5070 = pneg %p242
        $region81: #{net_forward.1} parent=74 // pred_check_branch
          %5072 = sbr.rel (%p5070) target = $region83
        $region82: #{net_forward.1} parent=74 // pred_region
          _
        $region83: #{net_forward.1} parent=74 // pred_fallthru
          _
      $region75: #{net_forward.1} parent=5 // pred_fallthru
        _
      %p5073 = scmp.le.s32.totalorder 2, %s15
      // Predicated region
      $region84: #{net_forward.1} parent=5 // pred_check
        %p5074 = pneg %p5073
      $region85: #{net_forward.1} parent=5 // pred_check_branch
        %5076 = sbr.rel (%p5074) target = $region87
      $region86: #{net_forward.1} parent=5 // pred_region
        %s5077 = ssub.s32 %s15, 2
        // Predicated region
        $region88: #{net_forward.1} parent=86 // pred_check
          %p5078 = pneg %p248
        $region89: #{net_forward.1} parent=86 // pred_check_branch
          %5080 = sbr.rel (%p5078) target = $region91
        $region90: #{net_forward.1} parent=86 // pred_region
          %p5081 = scmp.lt.s32.totalorder %s21, 1
          %s5082 = scalar_select %p5081, %s21, 1
          %s5083 = smul.addr %s5082, 2
          %s5084 = scalar_lea.vmem %s9, %s5083
        $region91: #{net_forward.1} parent=86 // pred_fallthru
          _
      $region87: #{net_forward.1} parent=5 // pred_fallthru
        _
    $region6: #{net_forward.1} parent=1 // loop_footer
      %s19 = sadd.s32 1, %s15
    $region7: #{net_forward.1} parent=1 // loop_footer_branch
      %14 = sbr.rel target = $region3
    $region8: #{net_forward.1} parent=1 // loop_exit
      _

</llo_original>
